<compile_context>
chip_gen: v5e
topology: v5e:2x2
jax: 0.10.0
libtpu: 0.0.40
codegen_flags: <defaults>
</compile_context>

<pallas_src>
import functools

import jax
import jax.numpy as jnp
from jax.experimental import pallas as pl
from jax.experimental.pallas import tpu as pltpu

LN_EPS = 1e-5  # torch.nn.LayerNorm default


def _layer_norm(x, gamma, beta):
    """LayerNorm over last axis (biased variance), like nn.LayerNorm."""
    mu = jnp.mean(x, axis=-1, keepdims=True)
    var = jnp.mean((x - mu) ** 2, axis=-1, keepdims=True)
    return (x - mu) * jax.lax.rsqrt(var + LN_EPS) * gamma + beta


# ---------------------------------------------------------------------------
# Fused Pallas kernel: one batch element through ALL layers
# ---------------------------------------------------------------------------
def transformer_kernel(*refs, depth, heads, dim_head, mode):
    has_skip = (mode == "CAF") and depth > 2
    if has_skip:
        (x_ref, a_g, a_b, wq, wk, wv, wo, bo,
         f_g, f_b, w1, b1, w2, b2, sc_w, sc_b, o_ref) = refs
    else:
        (x_ref, a_g, a_b, wq, wk, wv, wo, bo,
         f_g, f_b, w1, b1, w2, b2, o_ref) = refs
        sc_w = sc_b = None

    _, n, dim = x_ref.shape
    x = x_ref[0].astype(jnp.float32)                       # (n, dim)

    last_output = []
    for l in range(depth):                                 # static layer loop
        # ---- CAF skip connection: Conv2d(n, n, [1, 2]) fused to one matmul ----
        if mode == "CAF":
            last_output.append(x)
            if l > 1:
                prev = last_output[l - 2]
                xp = jnp.concatenate([x, prev], axis=0)    # (2n, dim)
                x = (jnp.dot(sc_w[l - 2], xp,
                             preferred_element_type=jnp.float32)
                     + sc_b[l - 2])                        # (n, 1) bias broadcast

        # ---- Residual(PreNorm(Attention)) ----
        y = _layer_norm(x, a_g[l], a_b[l])                 # (n, dim)
        y3 = jnp.broadcast_to(y, (heads, n, dim))          # shared across heads
        # scale already folded into wq at init (q = (y @ Wq) * scale)
        q = jnp.einsum('hnd,hde->hne', y3, wq[l],
                       preferred_element_type=jnp.float32)
        k = jnp.einsum('hnd,hde->hne', y3, wk[l],
                       preferred_element_type=jnp.float32)
        v = jnp.einsum('hnd,hde->hne', y3, wv[l],
                       preferred_element_type=jnp.float32)
        dots = jnp.einsum('hnd,hmd->hnm', q, k,
                          preferred_element_type=jnp.float32)   # (h, n, n)
        dots = dots - jnp.max(dots, axis=-1, keepdims=True)
        e = jnp.exp(dots)
        attn = e * pl.reciprocal(jnp.sum(e, axis=-1, keepdims=True), approx=True)
        ctx = jnp.einsum('hnm,hmd->hnd', attn, v,
                         preferred_element_type=jnp.float32)    # (h, n, d)
        proj = jnp.einsum('hnd,hde->hne', ctx, wo[l],
                          preferred_element_type=jnp.float32)   # (h, n, dim)
        # to_out Linear == sum over heads of per-head projections, plus bias.
        # Dropout(p) in eval mode is identity.
        x = jnp.sum(proj, axis=0) + bo[l] + x               # Residual

        # ---- Residual(PreNorm(FeedForward)) ----
        y = _layer_norm(x, f_g[l], f_b[l])
        h = jnp.dot(y, w1[l], preferred_element_type=jnp.float32) + b1[l]
        # Exact GELU (torch nn.GELU() default, erf based).
        h = 0.5 * h * (1.0 + jax.lax.erf(h * 0.7071067811865476))
        x = jnp.dot(h, w2[l], preferred_element_type=jnp.float32) + b2[l] + x

    o_ref[0] = x.astype(o_ref.dtype)


# ---------------------------------------------------------------------------
# pallas_call wrapper
# ---------------------------------------------------------------------------
def _const_spec(shape):
    nd = len(shape)
    return pl.BlockSpec(shape, lambda i, _nd=nd: (0,) * _nd)


def transformer_forward(x, params, *, heads, dim_head, mode):
    """Mirrors Transformer.forward (mask=None, MLP_model='MLP')."""
    b, n, dim = x.shape
    depth = params["attn_ln_g"].shape[0]
    has_skip = (mode == "CAF") and depth > 2

    weight_names = ["attn_ln_g", "attn_ln_b", "w_q", "w_k", "w_v", "w_out",
                    "b_out", "ff_ln_g", "ff_ln_b", "w1", "b1", "w2", "b2"]
    weights = [params[name] for name in weight_names]
    if has_skip:
        weights += [params["sc_w"], params["sc_b"]]

    act_spec = pl.BlockSpec((1, n, dim), lambda i: (i, 0, 0))
    in_specs = [act_spec] + [_const_spec(w.shape) for w in weights]

    kern = functools.partial(transformer_kernel, depth=depth, heads=heads,
                             dim_head=dim_head, mode=mode)
    return pl.pallas_call(
        kern,
        out_shape=jax.ShapeDtypeStruct((b, n, dim), x.dtype),
        grid=(b,),
        in_specs=in_specs,
        out_specs=act_spec,
        compiler_params=pltpu.CompilerParams(
            dimension_semantics=("parallel",)),
    )(x, *weights)


# ---------------------------------------------------------------------------
# Deterministic parameter init (shapes follow the PyTorch __init__), with
# weights pre-reshaped into the kernel-friendly layout:
#   w_q/w_k/w_v: (depth, heads, dim, dim_head)   (scale folded into w_q)
#   w_out:       (depth, heads, dim_head, dim)
#   sc_w:        (depth-2, n, 2n) = [W0 | W1] of the [1,2] Conv2d
# ---------------------------------------------------------------------------
def init_transformer_params(key, *, dim, depth, heads, dim_head, mlp_head, num_channel):
    inner = heads * dim_head
    n_tok = num_channel + 1
    scale = dim_head ** (-0.5)
    n_keys = 7 * depth + 3 * max(depth - 2, 0) + 4
    kit = iter(jax.random.split(key, n_keys))

    def nrm(shape, s=0.05):
        return (s * jax.random.normal(next(kit), shape)).astype(jnp.float32)

    a_g, a_b, w_q, w_k, w_v, w_o, b_o = [], [], [], [], [], [], []
    f_g, f_b, w1, b1, w2, b2 = [], [], [], [], [], []
    for _ in range(depth):
        a_g.append(jnp.ones((1, dim), jnp.float32))      # LayerNorm default init
        a_b.append(jnp.zeros((1, dim), jnp.float32))
        w_qkv = nrm((dim, 3 * inner))                    # to_qkv (no bias), (in, out)
        wq_, wk_, wv_ = [
            w_qkv[:, c * inner:(c + 1) * inner]
            .reshape(dim, heads, dim_head).transpose(1, 0, 2)  # (heads, dim, d)
            for c in range(3)]
        w_q.append(wq_ * scale)                          # fold softmax scale in
        w_k.append(wk_)
        w_v.append(wv_)
        w_o.append(nrm((inner, dim)).reshape(heads, dim_head, dim))
        b_o.append(nrm((1, dim)))
        f_g.append(jnp.ones((1, dim), jnp.float32))
        f_b.append(jnp.zeros((1, dim), jnp.float32))
        w1.append(nrm((dim, mlp_head)))
        b1.append(nrm((1, mlp_head)))
        w2.append(nrm((mlp_head, dim)))
        b2.append(nrm((1, dim)))

    params = {
        "attn_ln_g": jnp.stack(a_g), "attn_ln_b": jnp.stack(a_b),
        "w_q": jnp.stack(w_q), "w_k": jnp.stack(w_k), "w_v": jnp.stack(w_v),
        "w_out": jnp.stack(w_o), "b_out": jnp.stack(b_o),
        "ff_ln_g": jnp.stack(f_g), "ff_ln_b": jnp.stack(f_b),
        "w1": jnp.stack(w1), "b1": jnp.stack(b1),
        "w2": jnp.stack(w2), "b2": jnp.stack(b2),
    }
    if depth > 2:
        sc_w, sc_b = [], []
        for _ in range(depth - 2):
            w0_ = nrm((n_tok, n_tok), 0.1)               # Conv2d weight[:, :, 0, 0]
            w1_ = nrm((n_tok, n_tok), 0.1)               # Conv2d weight[:, :, 0, 1]
            sc_w.append(jnp.concatenate([w0_, w1_], axis=1))   # (n, 2n) fused
            sc_b.append(nrm((n_tok, 1), 0.1))            # Conv2d bias
        params["sc_w"] = jnp.stack(sc_w)
        params["sc_b"] = jnp.stack(sc_b)
    return params


if __name__ == "__main__":
    # Small ViT-style config: dim=32, depth=3, heads=4, dim_head=8, mlp_head=64,
    # dropout=0.0, num_channel=8 -> sequence length n = num_channel + 1 = 9.
    dim, depth, heads, dim_head, mlp_head = 32, 3, 4, 8, 64
    num_channel = 8
    batch, n_tok = 2, num_channel + 1

    key = jax.random.PRNGKey(0)
    kx, kp = jax.random.split(key)
    x = jax.random.normal(kx, (batch, n_tok, dim), dtype=jnp.float32)

    params = init_transformer_params(
        kp, dim=dim, depth=depth, heads=heads, dim_head=dim_head,
        mlp_head=mlp_head, num_channel=num_channel)

    out_vit = transformer_forward(x, params, heads=heads, dim_head=dim_head, mode="ViT")
    out_caf = transformer_forward(x, params, heads=heads, dim_head=dim_head, mode="CAF")
    jax.block_until_ready((out_vit, out_caf))

    assert out_vit.shape == (batch, n_tok, dim)
    assert out_caf.shape == (batch, n_tok, dim)
    print("KERNEL_OK")
</pallas_src>

<mosaic_0001>
module attributes {stable_mosaic.version = 11 : i64} {
  func.func @transformer_kernel(%arg0: i32, %arg1: memref<1x9x32xf32, #tpu.memory_space<vmem>>, %arg2: memref<3x1x32xf32, #tpu.memory_space<vmem>>, %arg3: memref<3x1x32xf32, #tpu.memory_space<vmem>>, %arg4: memref<3x4x32x8xf32, #tpu.memory_space<vmem>>, %arg5: memref<3x4x32x8xf32, #tpu.memory_space<vmem>>, %arg6: memref<3x4x32x8xf32, #tpu.memory_space<vmem>>, %arg7: memref<3x4x8x32xf32, #tpu.memory_space<vmem>>, %arg8: memref<3x1x32xf32, #tpu.memory_space<vmem>>, %arg9: memref<3x1x32xf32, #tpu.memory_space<vmem>>, %arg10: memref<3x1x32xf32, #tpu.memory_space<vmem>>, %arg11: memref<3x32x64xf32, #tpu.memory_space<vmem>>, %arg12: memref<3x1x64xf32, #tpu.memory_space<vmem>>, %arg13: memref<3x64x32xf32, #tpu.memory_space<vmem>>, %arg14: memref<3x1x32xf32, #tpu.memory_space<vmem>>, %arg15: memref<1x9x32xf32, #tpu.memory_space<vmem>>) attributes {dimension_semantics = [#tpu.dimension_semantics<parallel>], iteration_bounds = array<i64: 2>, scalar_prefetch = 0 : i64, scratch_operands = 0 : i64, tpu.core_type = #tpu.core_type<tc>, window_params = [{transform_indices = @transform_0, window_bounds = array<i64: 1, 9, 32>}, {pipeline_mode = #tpu.pipeline_mode<synchronous>, transform_indices = @transform_1, window_bounds = array<i64: 3, 1, 32>}, {pipeline_mode = #tpu.pipeline_mode<synchronous>, transform_indices = @transform_2, window_bounds = array<i64: 3, 1, 32>}, {pipeline_mode = #tpu.pipeline_mode<synchronous>, transform_indices = @transform_3, window_bounds = array<i64: 3, 4, 32, 8>}, {pipeline_mode = #tpu.pipeline_mode<synchronous>, transform_indices = @transform_4, window_bounds = array<i64: 3, 4, 32, 8>}, {pipeline_mode = #tpu.pipeline_mode<synchronous>, transform_indices = @transform_5, window_bounds = array<i64: 3, 4, 32, 8>}, {pipeline_mode = #tpu.pipeline_mode<synchronous>, transform_indices = @transform_6, window_bounds = array<i64: 3, 4, 8, 32>}, {pipeline_mode = #tpu.pipeline_mode<synchronous>, transform_indices = @transform_7, window_bounds = array<i64: 3, 1, 32>}, {pipeline_mode = #tpu.pipeline_mode<synchronous>, transform_indices = @transform_8, window_bounds = array<i64: 3, 1, 32>}, {pipeline_mode = #tpu.pipeline_mode<synchronous>, transform_indices = @transform_9, window_bounds = array<i64: 3, 1, 32>}, {pipeline_mode = #tpu.pipeline_mode<synchronous>, transform_indices = @transform_10, window_bounds = array<i64: 3, 32, 64>}, {pipeline_mode = #tpu.pipeline_mode<synchronous>, transform_indices = @transform_11, window_bounds = array<i64: 3, 1, 64>}, {pipeline_mode = #tpu.pipeline_mode<synchronous>, transform_indices = @transform_12, window_bounds = array<i64: 3, 64, 32>}, {pipeline_mode = #tpu.pipeline_mode<synchronous>, transform_indices = @transform_13, window_bounds = array<i64: 3, 1, 32>}, {transform_indices = @transform_14, window_bounds = array<i64: 1, 9, 32>}]} {
    %c0 = arith.constant 0 : index
    %c0_0 = arith.constant 0 : index
    %c0_1 = arith.constant 0 : index
    %0 = vector.load %arg1[%c0, %c0_0, %c0_1] : memref<1x9x32xf32, #tpu.memory_space<vmem>>, vector<1x9x32xf32>
    %1 = vector.shape_cast %0 : vector<1x9x32xf32> to vector<9x32xf32>
    %c0_2 = arith.constant 0 : index
    %c0_3 = arith.constant 0 : index
    %c0_4 = arith.constant 0 : index
    %2 = vector.load %arg2[%c0_2, %c0_3, %c0_4] : memref<3x1x32xf32, #tpu.memory_space<vmem>>, vector<1x1x32xf32>
    %3 = vector.shape_cast %2 : vector<1x1x32xf32> to vector<1x32xf32>
    %c0_5 = arith.constant 0 : index
    %c0_6 = arith.constant 0 : index
    %c0_7 = arith.constant 0 : index
    %4 = vector.load %arg3[%c0_5, %c0_6, %c0_7] : memref<3x1x32xf32, #tpu.memory_space<vmem>>, vector<1x1x32xf32>
    %5 = vector.shape_cast %4 : vector<1x1x32xf32> to vector<1x32xf32>
    %cst = arith.constant dense<0.000000e+00> : vector<9xf32>
    %6 = vector.multi_reduction <add>, %1, %cst [1] : vector<9x32xf32> to vector<9xf32>
    %7 = vector.shape_cast %6 : vector<9xf32> to vector<9x1xf32>
    %cst_8 = arith.constant 3.200000e+01 : f32
    %8 = vector.broadcast %cst_8 : f32 to vector<9x1xf32>
    %9 = arith.divf %7, %8 : vector<9x1xf32>
    %10 = vector.broadcast %9 : vector<9x1xf32> to vector<9x32xf32>
    %11 = arith.subf %1, %10 : vector<9x32xf32>
    %12 = arith.mulf %11, %11 : vector<9x32xf32>
    %cst_9 = arith.constant dense<0.000000e+00> : vector<9xf32>
    %13 = vector.multi_reduction <add>, %12, %cst_9 [1] : vector<9x32xf32> to vector<9xf32>
    %14 = vector.shape_cast %13 : vector<9xf32> to vector<9x1xf32>
    %cst_10 = arith.constant 3.200000e+01 : f32
    %15 = vector.broadcast %cst_10 : f32 to vector<9x1xf32>
    %16 = arith.divf %14, %15 : vector<9x1xf32>
    %17 = vector.broadcast %9 : vector<9x1xf32> to vector<9x32xf32>
    %18 = arith.subf %1, %17 : vector<9x32xf32>
    %cst_11 = arith.constant 9.99999974E-6 : f32
    %19 = vector.broadcast %cst_11 : f32 to vector<9x1xf32>
    %20 = arith.addf %16, %19 : vector<9x1xf32>
    %21 = math.rsqrt %20 : vector<9x1xf32>
    %22 = vector.broadcast %21 : vector<9x1xf32> to vector<9x32xf32>
    %23 = arith.mulf %18, %22 : vector<9x32xf32>
    %24 = vector.broadcast %3 : vector<1x32xf32> to vector<9x32xf32>
    %25 = arith.mulf %23, %24 : vector<9x32xf32>
    %26 = vector.broadcast %5 : vector<1x32xf32> to vector<9x32xf32>
    %27 = arith.addf %25, %26 : vector<9x32xf32>
    %28 = vector.shape_cast %27 : vector<9x32xf32> to vector<1x9x32xf32>
    %29 = vector.broadcast %28 : vector<1x9x32xf32> to vector<4x9x32xf32>
    %c0_12 = arith.constant 0 : index
    %c0_13 = arith.constant 0 : index
    %c0_14 = arith.constant 0 : index
    %c0_15 = arith.constant 0 : index
    %30 = vector.load %arg4[%c0_12, %c0_13, %c0_14, %c0_15] : memref<3x4x32x8xf32, #tpu.memory_space<vmem>>, vector<1x4x32x8xf32>
    %31 = vector.shape_cast %30 : vector<1x4x32x8xf32> to vector<4x32x8xf32>
    "tpu.trace_start"() <{level = 10 : i32, message = "hnd,hde->hne"}> : () -> ()
    %cst_16 = arith.constant dense<0.000000e+00> : vector<4x9x8xf32>
    %32 = tpu.matmul %29, %31, %cst_16 {dimension_numbers = #tpu.dot_dimension_numbers<[2], [1], [1], [2], [0, 0, 0, 1, 1, 2], [0], [0]>} : vector<4x9x32xf32>, vector<4x32x8xf32>, vector<4x9x8xf32> -> vector<4x9x8xf32>
    "tpu.trace_stop"() : () -> ()
    %c0_17 = arith.constant 0 : index
    %c0_18 = arith.constant 0 : index
    %c0_19 = arith.constant 0 : index
    %c0_20 = arith.constant 0 : index
    %33 = vector.load %arg5[%c0_17, %c0_18, %c0_19, %c0_20] : memref<3x4x32x8xf32, #tpu.memory_space<vmem>>, vector<1x4x32x8xf32>
    %34 = vector.shape_cast %33 : vector<1x4x32x8xf32> to vector<4x32x8xf32>
    "tpu.trace_start"() <{level = 10 : i32, message = "hnd,hde->hne"}> : () -> ()
    %cst_21 = arith.constant dense<0.000000e+00> : vector<4x9x8xf32>
    %35 = tpu.matmul %29, %34, %cst_21 {dimension_numbers = #tpu.dot_dimension_numbers<[2], [1], [1], [2], [0, 0, 0, 1, 1, 2], [0], [0]>} : vector<4x9x32xf32>, vector<4x32x8xf32>, vector<4x9x8xf32> -> vector<4x9x8xf32>
    "tpu.trace_stop"() : () -> ()
    %c0_22 = arith.constant 0 : index
    %c0_23 = arith.constant 0 : index
    %c0_24 = arith.constant 0 : index
    %c0_25 = arith.constant 0 : index
    %36 = vector.load %arg6[%c0_22, %c0_23, %c0_24, %c0_25] : memref<3x4x32x8xf32, #tpu.memory_space<vmem>>, vector<1x4x32x8xf32>
    %37 = vector.shape_cast %36 : vector<1x4x32x8xf32> to vector<4x32x8xf32>
    "tpu.trace_start"() <{level = 10 : i32, message = "hnd,hde->hne"}> : () -> ()
    %cst_26 = arith.constant dense<0.000000e+00> : vector<4x9x8xf32>
    %38 = tpu.matmul %29, %37, %cst_26 {dimension_numbers = #tpu.dot_dimension_numbers<[2], [1], [1], [2], [0, 0, 0, 1, 1, 2], [0], [0]>} : vector<4x9x32xf32>, vector<4x32x8xf32>, vector<4x9x8xf32> -> vector<4x9x8xf32>
    "tpu.trace_stop"() : () -> ()
    "tpu.trace_start"() <{level = 10 : i32, message = "hnd,hmd->hnm"}> : () -> ()
    %cst_27 = arith.constant dense<0.000000e+00> : vector<4x9x9xf32>
    %39 = tpu.matmul %32, %35, %cst_27 {dimension_numbers = #tpu.dot_dimension_numbers<[2], [2], [1], [1], [0, 0, 0, 1, 1, 1], [0], [0]>} : vector<4x9x8xf32>, vector<4x9x8xf32>, vector<4x9x9xf32> -> vector<4x9x9xf32>
    "tpu.trace_stop"() : () -> ()
    %cst_28 = arith.constant dense<0xFF800000> : vector<4x9xf32>
    %40 = vector.multi_reduction <maximumf>, %39, %cst_28 [2] : vector<4x9x9xf32> to vector<4x9xf32>
    %41 = vector.shape_cast %40 : vector<4x9xf32> to vector<4x9x1xf32>
    %42 = vector.broadcast %41 : vector<4x9x1xf32> to vector<4x9x9xf32>
    %43 = arith.subf %39, %42 : vector<4x9x9xf32>
    %44 = math.exp %43 : vector<4x9x9xf32>
    %cst_29 = arith.constant dense<0.000000e+00> : vector<4x9xf32>
    %45 = vector.multi_reduction <add>, %44, %cst_29 [2] : vector<4x9x9xf32> to vector<4x9xf32>
    %46 = vector.shape_cast %45 : vector<4x9xf32> to vector<4x9x1xf32>
    %47 = tpu.reciprocal %46 {approx = true} : vector<4x9x1xf32> -> vector<4x9x1xf32>
    %48 = vector.broadcast %47 : vector<4x9x1xf32> to vector<4x9x9xf32>
    %49 = arith.mulf %44, %48 : vector<4x9x9xf32>
    "tpu.trace_start"() <{level = 10 : i32, message = "hnm,hmd->hnd"}> : () -> ()
    %cst_30 = arith.constant dense<0.000000e+00> : vector<4x9x8xf32>
    %50 = tpu.matmul %49, %38, %cst_30 {dimension_numbers = #tpu.dot_dimension_numbers<[2], [1], [1], [2], [0, 0, 0, 1, 1, 2], [0], [0]>} : vector<4x9x9xf32>, vector<4x9x8xf32>, vector<4x9x8xf32> -> vector<4x9x8xf32>
    "tpu.trace_stop"() : () -> ()
    %c0_31 = arith.constant 0 : index
    %c0_32 = arith.constant 0 : index
    %c0_33 = arith.constant 0 : index
    %c0_34 = arith.constant 0 : index
    %51 = vector.load %arg7[%c0_31, %c0_32, %c0_33, %c0_34] : memref<3x4x8x32xf32, #tpu.memory_space<vmem>>, vector<1x4x8x32xf32>
    %52 = vector.shape_cast %51 : vector<1x4x8x32xf32> to vector<4x8x32xf32>
    "tpu.trace_start"() <{level = 10 : i32, message = "hnd,hde->hne"}> : () -> ()
    %cst_35 = arith.constant dense<0.000000e+00> : vector<4x9x32xf32>
    %53 = tpu.matmul %50, %52, %cst_35 {dimension_numbers = #tpu.dot_dimension_numbers<[2], [1], [1], [2], [0, 0, 0, 1, 1, 2], [0], [0]>} : vector<4x9x8xf32>, vector<4x8x32xf32>, vector<4x9x32xf32> -> vector<4x9x32xf32>
    "tpu.trace_stop"() : () -> ()
    %cst_36 = arith.constant dense<0.000000e+00> : vector<9x32xf32>
    %54 = vector.multi_reduction <add>, %53, %cst_36 [0] : vector<4x9x32xf32> to vector<9x32xf32>
    %c0_37 = arith.constant 0 : index
    %c0_38 = arith.constant 0 : index
    %c0_39 = arith.constant 0 : index
    %55 = vector.load %arg8[%c0_37, %c0_38, %c0_39] : memref<3x1x32xf32, #tpu.memory_space<vmem>>, vector<1x1x32xf32>
    %56 = vector.shape_cast %55 : vector<1x1x32xf32> to vector<1x32xf32>
    %57 = vector.broadcast %56 : vector<1x32xf32> to vector<9x32xf32>
    %58 = arith.addf %54, %57 : vector<9x32xf32>
    %59 = arith.addf %58, %1 : vector<9x32xf32>
    %c0_40 = arith.constant 0 : index
    %c0_41 = arith.constant 0 : index
    %c0_42 = arith.constant 0 : index
    %60 = vector.load %arg9[%c0_40, %c0_41, %c0_42] : memref<3x1x32xf32, #tpu.memory_space<vmem>>, vector<1x1x32xf32>
    %61 = vector.shape_cast %60 : vector<1x1x32xf32> to vector<1x32xf32>
    %c0_43 = arith.constant 0 : index
    %c0_44 = arith.constant 0 : index
    %c0_45 = arith.constant 0 : index
    %62 = vector.load %arg10[%c0_43, %c0_44, %c0_45] : memref<3x1x32xf32, #tpu.memory_space<vmem>>, vector<1x1x32xf32>
    %63 = vector.shape_cast %62 : vector<1x1x32xf32> to vector<1x32xf32>
    %cst_46 = arith.constant dense<0.000000e+00> : vector<9xf32>
    %64 = vector.multi_reduction <add>, %59, %cst_46 [1] : vector<9x32xf32> to vector<9xf32>
    %65 = vector.shape_cast %64 : vector<9xf32> to vector<9x1xf32>
    %cst_47 = arith.constant 3.200000e+01 : f32
    %66 = vector.broadcast %cst_47 : f32 to vector<9x1xf32>
    %67 = arith.divf %65, %66 : vector<9x1xf32>
    %68 = vector.broadcast %67 : vector<9x1xf32> to vector<9x32xf32>
    %69 = arith.subf %59, %68 : vector<9x32xf32>
    %70 = arith.mulf %69, %69 : vector<9x32xf32>
    %cst_48 = arith.constant dense<0.000000e+00> : vector<9xf32>
    %71 = vector.multi_reduction <add>, %70, %cst_48 [1] : vector<9x32xf32> to vector<9xf32>
    %72 = vector.shape_cast %71 : vector<9xf32> to vector<9x1xf32>
    %cst_49 = arith.constant 3.200000e+01 : f32
    %73 = vector.broadcast %cst_49 : f32 to vector<9x1xf32>
    %74 = arith.divf %72, %73 : vector<9x1xf32>
    %75 = vector.broadcast %67 : vector<9x1xf32> to vector<9x32xf32>
    %76 = arith.subf %59, %75 : vector<9x32xf32>
    %cst_50 = arith.constant 9.99999974E-6 : f32
    %77 = vector.broadcast %cst_50 : f32 to vector<9x1xf32>
    %78 = arith.addf %74, %77 : vector<9x1xf32>
    %79 = math.rsqrt %78 : vector<9x1xf32>
    %80 = vector.broadcast %79 : vector<9x1xf32> to vector<9x32xf32>
    %81 = arith.mulf %76, %80 : vector<9x32xf32>
    %82 = vector.broadcast %61 : vector<1x32xf32> to vector<9x32xf32>
    %83 = arith.mulf %81, %82 : vector<9x32xf32>
    %84 = vector.broadcast %63 : vector<1x32xf32> to vector<9x32xf32>
    %85 = arith.addf %83, %84 : vector<9x32xf32>
    %c0_51 = arith.constant 0 : index
    %c0_52 = arith.constant 0 : index
    %c0_53 = arith.constant 0 : index
    %86 = vector.load %arg11[%c0_51, %c0_52, %c0_53] : memref<3x32x64xf32, #tpu.memory_space<vmem>>, vector<1x32x64xf32>
    %87 = vector.shape_cast %86 : vector<1x32x64xf32> to vector<32x64xf32>
    %cst_54 = arith.constant dense<0.000000e+00> : vector<9x64xf32>
    %88 = tpu.matmul %85, %87, %cst_54 {dimension_numbers = #tpu.dot_dimension_numbers<[1], [0], [0], [1], [0, 0, 1, 1], [], []>} : vector<9x32xf32>, vector<32x64xf32>, vector<9x64xf32> -> vector<9x64xf32>
    %c0_55 = arith.constant 0 : index
    %c0_56 = arith.constant 0 : index
    %c0_57 = arith.constant 0 : index
    %89 = vector.load %arg12[%c0_55, %c0_56, %c0_57] : memref<3x1x64xf32, #tpu.memory_space<vmem>>, vector<1x1x64xf32>
    %90 = vector.shape_cast %89 : vector<1x1x64xf32> to vector<1x64xf32>
    %91 = vector.broadcast %90 : vector<1x64xf32> to vector<9x64xf32>
    %92 = arith.addf %88, %91 : vector<9x64xf32>
    %cst_58 = arith.constant 5.000000e-01 : f32
    %93 = vector.broadcast %cst_58 : f32 to vector<9x64xf32>
    %94 = arith.mulf %93, %92 : vector<9x64xf32>
    %cst_59 = arith.constant 0.707106769 : f32
    %95 = vector.broadcast %cst_59 : f32 to vector<9x64xf32>
    %96 = arith.mulf %92, %95 : vector<9x64xf32>
    %97 = math.erf %96 : vector<9x64xf32>
    %cst_60 = arith.constant 1.000000e+00 : f32
    %98 = vector.broadcast %cst_60 : f32 to vector<9x64xf32>
    %99 = arith.addf %98, %97 : vector<9x64xf32>
    %100 = arith.mulf %94, %99 : vector<9x64xf32>
    %c0_61 = arith.constant 0 : index
    %c0_62 = arith.constant 0 : index
    %c0_63 = arith.constant 0 : index
    %101 = vector.load %arg13[%c0_61, %c0_62, %c0_63] : memref<3x64x32xf32, #tpu.memory_space<vmem>>, vector<1x64x32xf32>
    %102 = vector.shape_cast %101 : vector<1x64x32xf32> to vector<64x32xf32>
    %cst_64 = arith.constant dense<0.000000e+00> : vector<9x32xf32>
    %103 = tpu.matmul %100, %102, %cst_64 {dimension_numbers = #tpu.dot_dimension_numbers<[1], [0], [0], [1], [0, 0, 1, 1], [], []>} : vector<9x64xf32>, vector<64x32xf32>, vector<9x32xf32> -> vector<9x32xf32>
    %c0_65 = arith.constant 0 : index
    %c0_66 = arith.constant 0 : index
    %c0_67 = arith.constant 0 : index
    %104 = vector.load %arg14[%c0_65, %c0_66, %c0_67] : memref<3x1x32xf32, #tpu.memory_space<vmem>>, vector<1x1x32xf32>
    %105 = vector.shape_cast %104 : vector<1x1x32xf32> to vector<1x32xf32>
    %106 = vector.broadcast %105 : vector<1x32xf32> to vector<9x32xf32>
    %107 = arith.addf %103, %106 : vector<9x32xf32>
    %108 = arith.addf %107, %59 : vector<9x32xf32>
    %c1 = arith.constant 1 : index
    %c0_68 = arith.constant 0 : index
    %c0_69 = arith.constant 0 : index
    %109 = vector.load %arg2[%c1, %c0_68, %c0_69] : memref<3x1x32xf32, #tpu.memory_space<vmem>>, vector<1x1x32xf32>
    %110 = vector.shape_cast %109 : vector<1x1x32xf32> to vector<1x32xf32>
    %c1_70 = arith.constant 1 : index
    %c0_71 = arith.constant 0 : index
    %c0_72 = arith.constant 0 : index
    %111 = vector.load %arg3[%c1_70, %c0_71, %c0_72] : memref<3x1x32xf32, #tpu.memory_space<vmem>>, vector<1x1x32xf32>
    %112 = vector.shape_cast %111 : vector<1x1x32xf32> to vector<1x32xf32>
    %cst_73 = arith.constant dense<0.000000e+00> : vector<9xf32>
    %113 = vector.multi_reduction <add>, %108, %cst_73 [1] : vector<9x32xf32> to vector<9xf32>
    %114 = vector.shape_cast %113 : vector<9xf32> to vector<9x1xf32>
    %cst_74 = arith.constant 3.200000e+01 : f32
    %115 = vector.broadcast %cst_74 : f32 to vector<9x1xf32>
    %116 = arith.divf %114, %115 : vector<9x1xf32>
    %117 = vector.broadcast %116 : vector<9x1xf32> to vector<9x32xf32>
    %118 = arith.subf %108, %117 : vector<9x32xf32>
    %119 = arith.mulf %118, %118 : vector<9x32xf32>
    %cst_75 = arith.constant dense<0.000000e+00> : vector<9xf32>
    %120 = vector.multi_reduction <add>, %119, %cst_75 [1] : vector<9x32xf32> to vector<9xf32>
    %121 = vector.shape_cast %120 : vector<9xf32> to vector<9x1xf32>
    %cst_76 = arith.constant 3.200000e+01 : f32
    %122 = vector.broadcast %cst_76 : f32 to vector<9x1xf32>
    %123 = arith.divf %121, %122 : vector<9x1xf32>
    %124 = vector.broadcast %116 : vector<9x1xf32> to vector<9x32xf32>
    %125 = arith.subf %108, %124 : vector<9x32xf32>
    %cst_77 = arith.constant 9.99999974E-6 : f32
    %126 = vector.broadcast %cst_77 : f32 to vector<9x1xf32>
    %127 = arith.addf %123, %126 : vector<9x1xf32>
    %128 = math.rsqrt %127 : vector<9x1xf32>
    %129 = vector.broadcast %128 : vector<9x1xf32> to vector<9x32xf32>
    %130 = arith.mulf %125, %129 : vector<9x32xf32>
    %131 = vector.broadcast %110 : vector<1x32xf32> to vector<9x32xf32>
    %132 = arith.mulf %130, %131 : vector<9x32xf32>
    %133 = vector.broadcast %112 : vector<1x32xf32> to vector<9x32xf32>
    %134 = arith.addf %132, %133 : vector<9x32xf32>
    %135 = vector.shape_cast %134 : vector<9x32xf32> to vector<1x9x32xf32>
    %136 = vector.broadcast %135 : vector<1x9x32xf32> to vector<4x9x32xf32>
    %c1_78 = arith.constant 1 : index
    %c0_79 = arith.constant 0 : index
    %c0_80 = arith.constant 0 : index
    %c0_81 = arith.constant 0 : index
    %137 = vector.load %arg4[%c1_78, %c0_79, %c0_80, %c0_81] : memref<3x4x32x8xf32, #tpu.memory_space<vmem>>, vector<1x4x32x8xf32>
    %138 = vector.shape_cast %137 : vector<1x4x32x8xf32> to vector<4x32x8xf32>
    "tpu.trace_start"() <{level = 10 : i32, message = "hnd,hde->hne"}> : () -> ()
    %cst_82 = arith.constant dense<0.000000e+00> : vector<4x9x8xf32>
    %139 = tpu.matmul %136, %138, %cst_82 {dimension_numbers = #tpu.dot_dimension_numbers<[2], [1], [1], [2], [0, 0, 0, 1, 1, 2], [0], [0]>} : vector<4x9x32xf32>, vector<4x32x8xf32>, vector<4x9x8xf32> -> vector<4x9x8xf32>
    "tpu.trace_stop"() : () -> ()
    %c1_83 = arith.constant 1 : index
    %c0_84 = arith.constant 0 : index
    %c0_85 = arith.constant 0 : index
    %c0_86 = arith.constant 0 : index
    %140 = vector.load %arg5[%c1_83, %c0_84, %c0_85, %c0_86] : memref<3x4x32x8xf32, #tpu.memory_space<vmem>>, vector<1x4x32x8xf32>
    %141 = vector.shape_cast %140 : vector<1x4x32x8xf32> to vector<4x32x8xf32>
    "tpu.trace_start"() <{level = 10 : i32, message = "hnd,hde->hne"}> : () -> ()
    %cst_87 = arith.constant dense<0.000000e+00> : vector<4x9x8xf32>
    %142 = tpu.matmul %136, %141, %cst_87 {dimension_numbers = #tpu.dot_dimension_numbers<[2], [1], [1], [2], [0, 0, 0, 1, 1, 2], [0], [0]>} : vector<4x9x32xf32>, vector<4x32x8xf32>, vector<4x9x8xf32> -> vector<4x9x8xf32>
    "tpu.trace_stop"() : () -> ()
    %c1_88 = arith.constant 1 : index
    %c0_89 = arith.constant 0 : index
    %c0_90 = arith.constant 0 : index
    %c0_91 = arith.constant 0 : index
    %143 = vector.load %arg6[%c1_88, %c0_89, %c0_90, %c0_91] : memref<3x4x32x8xf32, #tpu.memory_space<vmem>>, vector<1x4x32x8xf32>
    %144 = vector.shape_cast %143 : vector<1x4x32x8xf32> to vector<4x32x8xf32>
    "tpu.trace_start"() <{level = 10 : i32, message = "hnd,hde->hne"}> : () -> ()
    %cst_92 = arith.constant dense<0.000000e+00> : vector<4x9x8xf32>
    %145 = tpu.matmul %136, %144, %cst_92 {dimension_numbers = #tpu.dot_dimension_numbers<[2], [1], [1], [2], [0, 0, 0, 1, 1, 2], [0], [0]>} : vector<4x9x32xf32>, vector<4x32x8xf32>, vector<4x9x8xf32> -> vector<4x9x8xf32>
    "tpu.trace_stop"() : () -> ()
    "tpu.trace_start"() <{level = 10 : i32, message = "hnd,hmd->hnm"}> : () -> ()
    %cst_93 = arith.constant dense<0.000000e+00> : vector<4x9x9xf32>
    %146 = tpu.matmul %139, %142, %cst_93 {dimension_numbers = #tpu.dot_dimension_numbers<[2], [2], [1], [1], [0, 0, 0, 1, 1, 1], [0], [0]>} : vector<4x9x8xf32>, vector<4x9x8xf32>, vector<4x9x9xf32> -> vector<4x9x9xf32>
    "tpu.trace_stop"() : () -> ()
    %cst_94 = arith.constant dense<0xFF800000> : vector<4x9xf32>
    %147 = vector.multi_reduction <maximumf>, %146, %cst_94 [2] : vector<4x9x9xf32> to vector<4x9xf32>
    %148 = vector.shape_cast %147 : vector<4x9xf32> to vector<4x9x1xf32>
    %149 = vector.broadcast %148 : vector<4x9x1xf32> to vector<4x9x9xf32>
    %150 = arith.subf %146, %149 : vector<4x9x9xf32>
    %151 = math.exp %150 : vector<4x9x9xf32>
    %cst_95 = arith.constant dense<0.000000e+00> : vector<4x9xf32>
    %152 = vector.multi_reduction <add>, %151, %cst_95 [2] : vector<4x9x9xf32> to vector<4x9xf32>
    %153 = vector.shape_cast %152 : vector<4x9xf32> to vector<4x9x1xf32>
    %154 = tpu.reciprocal %153 {approx = true} : vector<4x9x1xf32> -> vector<4x9x1xf32>
    %155 = vector.broadcast %154 : vector<4x9x1xf32> to vector<4x9x9xf32>
    %156 = arith.mulf %151, %155 : vector<4x9x9xf32>
    "tpu.trace_start"() <{level = 10 : i32, message = "hnm,hmd->hnd"}> : () -> ()
    %cst_96 = arith.constant dense<0.000000e+00> : vector<4x9x8xf32>
    %157 = tpu.matmul %156, %145, %cst_96 {dimension_numbers = #tpu.dot_dimension_numbers<[2], [1], [1], [2], [0, 0, 0, 1, 1, 2], [0], [0]>} : vector<4x9x9xf32>, vector<4x9x8xf32>, vector<4x9x8xf32> -> vector<4x9x8xf32>
    "tpu.trace_stop"() : () -> ()
    %c1_97 = arith.constant 1 : index
    %c0_98 = arith.constant 0 : index
    %c0_99 = arith.constant 0 : index
    %c0_100 = arith.constant 0 : index
    %158 = vector.load %arg7[%c1_97, %c0_98, %c0_99, %c0_100] : memref<3x4x8x32xf32, #tpu.memory_space<vmem>>, vector<1x4x8x32xf32>
    %159 = vector.shape_cast %158 : vector<1x4x8x32xf32> to vector<4x8x32xf32>
    "tpu.trace_start"() <{level = 10 : i32, message = "hnd,hde->hne"}> : () -> ()
    %cst_101 = arith.constant dense<0.000000e+00> : vector<4x9x32xf32>
    %160 = tpu.matmul %157, %159, %cst_101 {dimension_numbers = #tpu.dot_dimension_numbers<[2], [1], [1], [2], [0, 0, 0, 1, 1, 2], [0], [0]>} : vector<4x9x8xf32>, vector<4x8x32xf32>, vector<4x9x32xf32> -> vector<4x9x32xf32>
    "tpu.trace_stop"() : () -> ()
    %cst_102 = arith.constant dense<0.000000e+00> : vector<9x32xf32>
    %161 = vector.multi_reduction <add>, %160, %cst_102 [0] : vector<4x9x32xf32> to vector<9x32xf32>
    %c1_103 = arith.constant 1 : index
    %c0_104 = arith.constant 0 : index
    %c0_105 = arith.constant 0 : index
    %162 = vector.load %arg8[%c1_103, %c0_104, %c0_105] : memref<3x1x32xf32, #tpu.memory_space<vmem>>, vector<1x1x32xf32>
    %163 = vector.shape_cast %162 : vector<1x1x32xf32> to vector<1x32xf32>
    %164 = vector.broadcast %163 : vector<1x32xf32> to vector<9x32xf32>
    %165 = arith.addf %161, %164 : vector<9x32xf32>
    %166 = arith.addf %165, %108 : vector<9x32xf32>
    %c1_106 = arith.constant 1 : index
    %c0_107 = arith.constant 0 : index
    %c0_108 = arith.constant 0 : index
    %167 = vector.load %arg9[%c1_106, %c0_107, %c0_108] : memref<3x1x32xf32, #tpu.memory_space<vmem>>, vector<1x1x32xf32>
    %168 = vector.shape_cast %167 : vector<1x1x32xf32> to vector<1x32xf32>
    %c1_109 = arith.constant 1 : index
    %c0_110 = arith.constant 0 : index
    %c0_111 = arith.constant 0 : index
    %169 = vector.load %arg10[%c1_109, %c0_110, %c0_111] : memref<3x1x32xf32, #tpu.memory_space<vmem>>, vector<1x1x32xf32>
    %170 = vector.shape_cast %169 : vector<1x1x32xf32> to vector<1x32xf32>
    %cst_112 = arith.constant dense<0.000000e+00> : vector<9xf32>
    %171 = vector.multi_reduction <add>, %166, %cst_112 [1] : vector<9x32xf32> to vector<9xf32>
    %172 = vector.shape_cast %171 : vector<9xf32> to vector<9x1xf32>
    %cst_113 = arith.constant 3.200000e+01 : f32
    %173 = vector.broadcast %cst_113 : f32 to vector<9x1xf32>
    %174 = arith.divf %172, %173 : vector<9x1xf32>
    %175 = vector.broadcast %174 : vector<9x1xf32> to vector<9x32xf32>
    %176 = arith.subf %166, %175 : vector<9x32xf32>
    %177 = arith.mulf %176, %176 : vector<9x32xf32>
    %cst_114 = arith.constant dense<0.000000e+00> : vector<9xf32>
    %178 = vector.multi_reduction <add>, %177, %cst_114 [1] : vector<9x32xf32> to vector<9xf32>
    %179 = vector.shape_cast %178 : vector<9xf32> to vector<9x1xf32>
    %cst_115 = arith.constant 3.200000e+01 : f32
    %180 = vector.broadcast %cst_115 : f32 to vector<9x1xf32>
    %181 = arith.divf %179, %180 : vector<9x1xf32>
    %182 = vector.broadcast %174 : vector<9x1xf32> to vector<9x32xf32>
    %183 = arith.subf %166, %182 : vector<9x32xf32>
    %cst_116 = arith.constant 9.99999974E-6 : f32
    %184 = vector.broadcast %cst_116 : f32 to vector<9x1xf32>
    %185 = arith.addf %181, %184 : vector<9x1xf32>
    %186 = math.rsqrt %185 : vector<9x1xf32>
    %187 = vector.broadcast %186 : vector<9x1xf32> to vector<9x32xf32>
    %188 = arith.mulf %183, %187 : vector<9x32xf32>
    %189 = vector.broadcast %168 : vector<1x32xf32> to vector<9x32xf32>
    %190 = arith.mulf %188, %189 : vector<9x32xf32>
    %191 = vector.broadcast %170 : vector<1x32xf32> to vector<9x32xf32>
    %192 = arith.addf %190, %191 : vector<9x32xf32>
    %c1_117 = arith.constant 1 : index
    %c0_118 = arith.constant 0 : index
    %c0_119 = arith.constant 0 : index
    %193 = vector.load %arg11[%c1_117, %c0_118, %c0_119] : memref<3x32x64xf32, #tpu.memory_space<vmem>>, vector<1x32x64xf32>
    %194 = vector.shape_cast %193 : vector<1x32x64xf32> to vector<32x64xf32>
    %cst_120 = arith.constant dense<0.000000e+00> : vector<9x64xf32>
    %195 = tpu.matmul %192, %194, %cst_120 {dimension_numbers = #tpu.dot_dimension_numbers<[1], [0], [0], [1], [0, 0, 1, 1], [], []>} : vector<9x32xf32>, vector<32x64xf32>, vector<9x64xf32> -> vector<9x64xf32>
    %c1_121 = arith.constant 1 : index
    %c0_122 = arith.constant 0 : index
    %c0_123 = arith.constant 0 : index
    %196 = vector.load %arg12[%c1_121, %c0_122, %c0_123] : memref<3x1x64xf32, #tpu.memory_space<vmem>>, vector<1x1x64xf32>
    %197 = vector.shape_cast %196 : vector<1x1x64xf32> to vector<1x64xf32>
    %198 = vector.broadcast %197 : vector<1x64xf32> to vector<9x64xf32>
    %199 = arith.addf %195, %198 : vector<9x64xf32>
    %cst_124 = arith.constant 5.000000e-01 : f32
    %200 = vector.broadcast %cst_124 : f32 to vector<9x64xf32>
    %201 = arith.mulf %200, %199 : vector<9x64xf32>
    %cst_125 = arith.constant 0.707106769 : f32
    %202 = vector.broadcast %cst_125 : f32 to vector<9x64xf32>
    %203 = arith.mulf %199, %202 : vector<9x64xf32>
    %204 = math.erf %203 : vector<9x64xf32>
    %cst_126 = arith.constant 1.000000e+00 : f32
    %205 = vector.broadcast %cst_126 : f32 to vector<9x64xf32>
    %206 = arith.addf %205, %204 : vector<9x64xf32>
    %207 = arith.mulf %201, %206 : vector<9x64xf32>
    %c1_127 = arith.constant 1 : index
    %c0_128 = arith.constant 0 : index
    %c0_129 = arith.constant 0 : index
    %208 = vector.load %arg13[%c1_127, %c0_128, %c0_129] : memref<3x64x32xf32, #tpu.memory_space<vmem>>, vector<1x64x32xf32>
    %209 = vector.shape_cast %208 : vector<1x64x32xf32> to vector<64x32xf32>
    %cst_130 = arith.constant dense<0.000000e+00> : vector<9x32xf32>
    %210 = tpu.matmul %207, %209, %cst_130 {dimension_numbers = #tpu.dot_dimension_numbers<[1], [0], [0], [1], [0, 0, 1, 1], [], []>} : vector<9x64xf32>, vector<64x32xf32>, vector<9x32xf32> -> vector<9x32xf32>
    %c1_131 = arith.constant 1 : index
    %c0_132 = arith.constant 0 : index
    %c0_133 = arith.constant 0 : index
    %211 = vector.load %arg14[%c1_131, %c0_132, %c0_133] : memref<3x1x32xf32, #tpu.memory_space<vmem>>, vector<1x1x32xf32>
    %212 = vector.shape_cast %211 : vector<1x1x32xf32> to vector<1x32xf32>
    %213 = vector.broadcast %212 : vector<1x32xf32> to vector<9x32xf32>
    %214 = arith.addf %210, %213 : vector<9x32xf32>
    %215 = arith.addf %214, %166 : vector<9x32xf32>
    %c2 = arith.constant 2 : index
    %c0_134 = arith.constant 0 : index
    %c0_135 = arith.constant 0 : index
    %216 = vector.load %arg2[%c2, %c0_134, %c0_135] : memref<3x1x32xf32, #tpu.memory_space<vmem>>, vector<1x1x32xf32>
    %217 = vector.shape_cast %216 : vector<1x1x32xf32> to vector<1x32xf32>
    %c2_136 = arith.constant 2 : index
    %c0_137 = arith.constant 0 : index
    %c0_138 = arith.constant 0 : index
    %218 = vector.load %arg3[%c2_136, %c0_137, %c0_138] : memref<3x1x32xf32, #tpu.memory_space<vmem>>, vector<1x1x32xf32>
    %219 = vector.shape_cast %218 : vector<1x1x32xf32> to vector<1x32xf32>
    %cst_139 = arith.constant dense<0.000000e+00> : vector<9xf32>
    %220 = vector.multi_reduction <add>, %215, %cst_139 [1] : vector<9x32xf32> to vector<9xf32>
    %221 = vector.shape_cast %220 : vector<9xf32> to vector<9x1xf32>
    %cst_140 = arith.constant 3.200000e+01 : f32
    %222 = vector.broadcast %cst_140 : f32 to vector<9x1xf32>
    %223 = arith.divf %221, %222 : vector<9x1xf32>
    %224 = vector.broadcast %223 : vector<9x1xf32> to vector<9x32xf32>
    %225 = arith.subf %215, %224 : vector<9x32xf32>
    %226 = arith.mulf %225, %225 : vector<9x32xf32>
    %cst_141 = arith.constant dense<0.000000e+00> : vector<9xf32>
    %227 = vector.multi_reduction <add>, %226, %cst_141 [1] : vector<9x32xf32> to vector<9xf32>
    %228 = vector.shape_cast %227 : vector<9xf32> to vector<9x1xf32>
    %cst_142 = arith.constant 3.200000e+01 : f32
    %229 = vector.broadcast %cst_142 : f32 to vector<9x1xf32>
    %230 = arith.divf %228, %229 : vector<9x1xf32>
    %231 = vector.broadcast %223 : vector<9x1xf32> to vector<9x32xf32>
    %232 = arith.subf %215, %231 : vector<9x32xf32>
    %cst_143 = arith.constant 9.99999974E-6 : f32
    %233 = vector.broadcast %cst_143 : f32 to vector<9x1xf32>
    %234 = arith.addf %230, %233 : vector<9x1xf32>
    %235 = math.rsqrt %234 : vector<9x1xf32>
    %236 = vector.broadcast %235 : vector<9x1xf32> to vector<9x32xf32>
    %237 = arith.mulf %232, %236 : vector<9x32xf32>
    %238 = vector.broadcast %217 : vector<1x32xf32> to vector<9x32xf32>
    %239 = arith.mulf %237, %238 : vector<9x32xf32>
    %240 = vector.broadcast %219 : vector<1x32xf32> to vector<9x32xf32>
    %241 = arith.addf %239, %240 : vector<9x32xf32>
    %242 = vector.shape_cast %241 : vector<9x32xf32> to vector<1x9x32xf32>
    %243 = vector.broadcast %242 : vector<1x9x32xf32> to vector<4x9x32xf32>
    %c2_144 = arith.constant 2 : index
    %c0_145 = arith.constant 0 : index
    %c0_146 = arith.constant 0 : index
    %c0_147 = arith.constant 0 : index
    %244 = vector.load %arg4[%c2_144, %c0_145, %c0_146, %c0_147] : memref<3x4x32x8xf32, #tpu.memory_space<vmem>>, vector<1x4x32x8xf32>
    %245 = vector.shape_cast %244 : vector<1x4x32x8xf32> to vector<4x32x8xf32>
    "tpu.trace_start"() <{level = 10 : i32, message = "hnd,hde->hne"}> : () -> ()
    %cst_148 = arith.constant dense<0.000000e+00> : vector<4x9x8xf32>
    %246 = tpu.matmul %243, %245, %cst_148 {dimension_numbers = #tpu.dot_dimension_numbers<[2], [1], [1], [2], [0, 0, 0, 1, 1, 2], [0], [0]>} : vector<4x9x32xf32>, vector<4x32x8xf32>, vector<4x9x8xf32> -> vector<4x9x8xf32>
    "tpu.trace_stop"() : () -> ()
    %c2_149 = arith.constant 2 : index
    %c0_150 = arith.constant 0 : index
    %c0_151 = arith.constant 0 : index
    %c0_152 = arith.constant 0 : index
    %247 = vector.load %arg5[%c2_149, %c0_150, %c0_151, %c0_152] : memref<3x4x32x8xf32, #tpu.memory_space<vmem>>, vector<1x4x32x8xf32>
    %248 = vector.shape_cast %247 : vector<1x4x32x8xf32> to vector<4x32x8xf32>
    "tpu.trace_start"() <{level = 10 : i32, message = "hnd,hde->hne"}> : () -> ()
    %cst_153 = arith.constant dense<0.000000e+00> : vector<4x9x8xf32>
    %249 = tpu.matmul %243, %248, %cst_153 {dimension_numbers = #tpu.dot_dimension_numbers<[2], [1], [1], [2], [0, 0, 0, 1, 1, 2], [0], [0]>} : vector<4x9x32xf32>, vector<4x32x8xf32>, vector<4x9x8xf32> -> vector<4x9x8xf32>
    "tpu.trace_stop"() : () -> ()
    %c2_154 = arith.constant 2 : index
    %c0_155 = arith.constant 0 : index
    %c0_156 = arith.constant 0 : index
    %c0_157 = arith.constant 0 : index
    %250 = vector.load %arg6[%c2_154, %c0_155, %c0_156, %c0_157] : memref<3x4x32x8xf32, #tpu.memory_space<vmem>>, vector<1x4x32x8xf32>
    %251 = vector.shape_cast %250 : vector<1x4x32x8xf32> to vector<4x32x8xf32>
    "tpu.trace_start"() <{level = 10 : i32, message = "hnd,hde->hne"}> : () -> ()
    %cst_158 = arith.constant dense<0.000000e+00> : vector<4x9x8xf32>
    %252 = tpu.matmul %243, %251, %cst_158 {dimension_numbers = #tpu.dot_dimension_numbers<[2], [1], [1], [2], [0, 0, 0, 1, 1, 2], [0], [0]>} : vector<4x9x32xf32>, vector<4x32x8xf32>, vector<4x9x8xf32> -> vector<4x9x8xf32>
    "tpu.trace_stop"() : () -> ()
    "tpu.trace_start"() <{level = 10 : i32, message = "hnd,hmd->hnm"}> : () -> ()
    %cst_159 = arith.constant dense<0.000000e+00> : vector<4x9x9xf32>
    %253 = tpu.matmul %246, %249, %cst_159 {dimension_numbers = #tpu.dot_dimension_numbers<[2], [2], [1], [1], [0, 0, 0, 1, 1, 1], [0], [0]>} : vector<4x9x8xf32>, vector<4x9x8xf32>, vector<4x9x9xf32> -> vector<4x9x9xf32>
    "tpu.trace_stop"() : () -> ()
    %cst_160 = arith.constant dense<0xFF800000> : vector<4x9xf32>
    %254 = vector.multi_reduction <maximumf>, %253, %cst_160 [2] : vector<4x9x9xf32> to vector<4x9xf32>
    %255 = vector.shape_cast %254 : vector<4x9xf32> to vector<4x9x1xf32>
    %256 = vector.broadcast %255 : vector<4x9x1xf32> to vector<4x9x9xf32>
    %257 = arith.subf %253, %256 : vector<4x9x9xf32>
    %258 = math.exp %257 : vector<4x9x9xf32>
    %cst_161 = arith.constant dense<0.000000e+00> : vector<4x9xf32>
    %259 = vector.multi_reduction <add>, %258, %cst_161 [2] : vector<4x9x9xf32> to vector<4x9xf32>
    %260 = vector.shape_cast %259 : vector<4x9xf32> to vector<4x9x1xf32>
    %261 = tpu.reciprocal %260 {approx = true} : vector<4x9x1xf32> -> vector<4x9x1xf32>
    %262 = vector.broadcast %261 : vector<4x9x1xf32> to vector<4x9x9xf32>
    %263 = arith.mulf %258, %262 : vector<4x9x9xf32>
    "tpu.trace_start"() <{level = 10 : i32, message = "hnm,hmd->hnd"}> : () -> ()
    %cst_162 = arith.constant dense<0.000000e+00> : vector<4x9x8xf32>
    %264 = tpu.matmul %263, %252, %cst_162 {dimension_numbers = #tpu.dot_dimension_numbers<[2], [1], [1], [2], [0, 0, 0, 1, 1, 2], [0], [0]>} : vector<4x9x9xf32>, vector<4x9x8xf32>, vector<4x9x8xf32> -> vector<4x9x8xf32>
    "tpu.trace_stop"() : () -> ()
    %c2_163 = arith.constant 2 : index
    %c0_164 = arith.constant 0 : index
    %c0_165 = arith.constant 0 : index
    %c0_166 = arith.constant 0 : index
    %265 = vector.load %arg7[%c2_163, %c0_164, %c0_165, %c0_166] : memref<3x4x8x32xf32, #tpu.memory_space<vmem>>, vector<1x4x8x32xf32>
    %266 = vector.shape_cast %265 : vector<1x4x8x32xf32> to vector<4x8x32xf32>
    "tpu.trace_start"() <{level = 10 : i32, message = "hnd,hde->hne"}> : () -> ()
    %cst_167 = arith.constant dense<0.000000e+00> : vector<4x9x32xf32>
    %267 = tpu.matmul %264, %266, %cst_167 {dimension_numbers = #tpu.dot_dimension_numbers<[2], [1], [1], [2], [0, 0, 0, 1, 1, 2], [0], [0]>} : vector<4x9x8xf32>, vector<4x8x32xf32>, vector<4x9x32xf32> -> vector<4x9x32xf32>
    "tpu.trace_stop"() : () -> ()
    %cst_168 = arith.constant dense<0.000000e+00> : vector<9x32xf32>
    %268 = vector.multi_reduction <add>, %267, %cst_168 [0] : vector<4x9x32xf32> to vector<9x32xf32>
    %c2_169 = arith.constant 2 : index
    %c0_170 = arith.constant 0 : index
    %c0_171 = arith.constant 0 : index
    %269 = vector.load %arg8[%c2_169, %c0_170, %c0_171] : memref<3x1x32xf32, #tpu.memory_space<vmem>>, vector<1x1x32xf32>
    %270 = vector.shape_cast %269 : vector<1x1x32xf32> to vector<1x32xf32>
    %271 = vector.broadcast %270 : vector<1x32xf32> to vector<9x32xf32>
    %272 = arith.addf %268, %271 : vector<9x32xf32>
    %273 = arith.addf %272, %215 : vector<9x32xf32>
    %c2_172 = arith.constant 2 : index
    %c0_173 = arith.constant 0 : index
    %c0_174 = arith.constant 0 : index
    %274 = vector.load %arg9[%c2_172, %c0_173, %c0_174] : memref<3x1x32xf32, #tpu.memory_space<vmem>>, vector<1x1x32xf32>
    %275 = vector.shape_cast %274 : vector<1x1x32xf32> to vector<1x32xf32>
    %c2_175 = arith.constant 2 : index
    %c0_176 = arith.constant 0 : index
    %c0_177 = arith.constant 0 : index
    %276 = vector.load %arg10[%c2_175, %c0_176, %c0_177] : memref<3x1x32xf32, #tpu.memory_space<vmem>>, vector<1x1x32xf32>
    %277 = vector.shape_cast %276 : vector<1x1x32xf32> to vector<1x32xf32>
    %cst_178 = arith.constant dense<0.000000e+00> : vector<9xf32>
    %278 = vector.multi_reduction <add>, %273, %cst_178 [1] : vector<9x32xf32> to vector<9xf32>
    %279 = vector.shape_cast %278 : vector<9xf32> to vector<9x1xf32>
    %cst_179 = arith.constant 3.200000e+01 : f32
    %280 = vector.broadcast %cst_179 : f32 to vector<9x1xf32>
    %281 = arith.divf %279, %280 : vector<9x1xf32>
    %282 = vector.broadcast %281 : vector<9x1xf32> to vector<9x32xf32>
    %283 = arith.subf %273, %282 : vector<9x32xf32>
    %284 = arith.mulf %283, %283 : vector<9x32xf32>
    %cst_180 = arith.constant dense<0.000000e+00> : vector<9xf32>
    %285 = vector.multi_reduction <add>, %284, %cst_180 [1] : vector<9x32xf32> to vector<9xf32>
    %286 = vector.shape_cast %285 : vector<9xf32> to vector<9x1xf32>
    %cst_181 = arith.constant 3.200000e+01 : f32
    %287 = vector.broadcast %cst_181 : f32 to vector<9x1xf32>
    %288 = arith.divf %286, %287 : vector<9x1xf32>
    %289 = vector.broadcast %281 : vector<9x1xf32> to vector<9x32xf32>
    %290 = arith.subf %273, %289 : vector<9x32xf32>
    %cst_182 = arith.constant 9.99999974E-6 : f32
    %291 = vector.broadcast %cst_182 : f32 to vector<9x1xf32>
    %292 = arith.addf %288, %291 : vector<9x1xf32>
    %293 = math.rsqrt %292 : vector<9x1xf32>
    %294 = vector.broadcast %293 : vector<9x1xf32> to vector<9x32xf32>
    %295 = arith.mulf %290, %294 : vector<9x32xf32>
    %296 = vector.broadcast %275 : vector<1x32xf32> to vector<9x32xf32>
    %297 = arith.mulf %295, %296 : vector<9x32xf32>
    %298 = vector.broadcast %277 : vector<1x32xf32> to vector<9x32xf32>
    %299 = arith.addf %297, %298 : vector<9x32xf32>
    %c2_183 = arith.constant 2 : index
    %c0_184 = arith.constant 0 : index
    %c0_185 = arith.constant 0 : index
    %300 = vector.load %arg11[%c2_183, %c0_184, %c0_185] : memref<3x32x64xf32, #tpu.memory_space<vmem>>, vector<1x32x64xf32>
    %301 = vector.shape_cast %300 : vector<1x32x64xf32> to vector<32x64xf32>
    %cst_186 = arith.constant dense<0.000000e+00> : vector<9x64xf32>
    %302 = tpu.matmul %299, %301, %cst_186 {dimension_numbers = #tpu.dot_dimension_numbers<[1], [0], [0], [1], [0, 0, 1, 1], [], []>} : vector<9x32xf32>, vector<32x64xf32>, vector<9x64xf32> -> vector<9x64xf32>
    %c2_187 = arith.constant 2 : index
    %c0_188 = arith.constant 0 : index
    %c0_189 = arith.constant 0 : index
    %303 = vector.load %arg12[%c2_187, %c0_188, %c0_189] : memref<3x1x64xf32, #tpu.memory_space<vmem>>, vector<1x1x64xf32>
    %304 = vector.shape_cast %303 : vector<1x1x64xf32> to vector<1x64xf32>
    %305 = vector.broadcast %304 : vector<1x64xf32> to vector<9x64xf32>
    %306 = arith.addf %302, %305 : vector<9x64xf32>
    %cst_190 = arith.constant 5.000000e-01 : f32
    %307 = vector.broadcast %cst_190 : f32 to vector<9x64xf32>
    %308 = arith.mulf %307, %306 : vector<9x64xf32>
    %cst_191 = arith.constant 0.707106769 : f32
    %309 = vector.broadcast %cst_191 : f32 to vector<9x64xf32>
    %310 = arith.mulf %306, %309 : vector<9x64xf32>
    %311 = math.erf %310 : vector<9x64xf32>
    %cst_192 = arith.constant 1.000000e+00 : f32
    %312 = vector.broadcast %cst_192 : f32 to vector<9x64xf32>
    %313 = arith.addf %312, %311 : vector<9x64xf32>
    %314 = arith.mulf %308, %313 : vector<9x64xf32>
    %c2_193 = arith.constant 2 : index
    %c0_194 = arith.constant 0 : index
    %c0_195 = arith.constant 0 : index
    %315 = vector.load %arg13[%c2_193, %c0_194, %c0_195] : memref<3x64x32xf32, #tpu.memory_space<vmem>>, vector<1x64x32xf32>
    %316 = vector.shape_cast %315 : vector<1x64x32xf32> to vector<64x32xf32>
    %cst_196 = arith.constant dense<0.000000e+00> : vector<9x32xf32>
    %317 = tpu.matmul %314, %316, %cst_196 {dimension_numbers = #tpu.dot_dimension_numbers<[1], [0], [0], [1], [0, 0, 1, 1], [], []>} : vector<9x64xf32>, vector<64x32xf32>, vector<9x32xf32> -> vector<9x32xf32>
    %c2_197 = arith.constant 2 : index
    %c0_198 = arith.constant 0 : index
    %c0_199 = arith.constant 0 : index
    %318 = vector.load %arg14[%c2_197, %c0_198, %c0_199] : memref<3x1x32xf32, #tpu.memory_space<vmem>>, vector<1x1x32xf32>
    %319 = vector.shape_cast %318 : vector<1x1x32xf32> to vector<1x32xf32>
    %320 = vector.broadcast %319 : vector<1x32xf32> to vector<9x32xf32>
    %321 = arith.addf %317, %320 : vector<9x32xf32>
    %322 = arith.addf %321, %273 : vector<9x32xf32>
    %c0_200 = arith.constant 0 : index
    %c0_201 = arith.constant 0 : index
    %c0_202 = arith.constant 0 : index
    %323 = vector.load %arg15[%c0_200, %c0_201, %c0_202] : memref<1x9x32xf32, #tpu.memory_space<vmem>>, vector<1x9x32xf32>
    %324 = vector.shape_cast %323 : vector<1x9x32xf32> to vector<9x32xf32>
    %325 = vector.shape_cast %322 : vector<9x32xf32> to vector<1x9x32xf32>
    tpu.vector_store %arg15[%c0_200, %c0_201, %c0_202], %325 {strides = array<i32>} : memref<1x9x32xf32, #tpu.memory_space<vmem>>, vector<1x9x32xf32>,
    return
  }
  func.func @transform_0(%arg0: i32) -> (i32, i32, i32) {
    %c0_i32 = arith.constant 0 : i32
    %c0_i32_0 = arith.constant 0 : i32
    %c0_i32_1 = arith.constant 0 : i32
    return %arg0, %c0_i32, %c0_i32_0 : i32, i32, i32
  }
  func.func @transform_1(%arg0: i32) -> (i32, i32, i32) {
    %c0_i32 = arith.constant 0 : i32
    %c0_i32_0 = arith.constant 0 : i32
    %c0_i32_1 = arith.constant 0 : i32
    %c0_i32_2 = arith.constant 0 : i32
    return %c0_i32, %c0_i32_0, %c0_i32_1 : i32, i32, i32
  }
  func.func @transform_2(%arg0: i32) -> (i32, i32, i32) {
    %c0_i32 = arith.constant 0 : i32
    %c0_i32_0 = arith.constant 0 : i32
    %c0_i32_1 = arith.constant 0 : i32
    %c0_i32_2 = arith.constant 0 : i32
    return %c0_i32, %c0_i32_0, %c0_i32_1 : i32, i32, i32
  }
  func.func @transform_3(%arg0: i32) -> (i32, i32, i32, i32) {
    %c0_i32 = arith.constant 0 : i32
    %c0_i32_0 = arith.constant 0 : i32
    %c0_i32_1 = arith.constant 0 : i32
    %c0_i32_2 = arith.constant 0 : i32
    %c0_i32_3 = arith.constant 0 : i32
    return %c0_i32, %c0_i32_0, %c0_i32_1, %c0_i32_2 : i32, i32, i32, i32
  }
  func.func @transform_4(%arg0: i32) -> (i32, i32, i32, i32) {
    %c0_i32 = arith.constant 0 : i32
    %c0_i32_0 = arith.constant 0 : i32
    %c0_i32_1 = arith.constant 0 : i32
    %c0_i32_2 = arith.constant 0 : i32
    %c0_i32_3 = arith.constant 0 : i32
    return %c0_i32, %c0_i32_0, %c0_i32_1, %c0_i32_2 : i32, i32, i32, i32
  }
  func.func @transform_5(%arg0: i32) -> (i32, i32, i32, i32) {
    %c0_i32 = arith.constant 0 : i32
    %c0_i32_0 = arith.constant 0 : i32
    %c0_i32_1 = arith.constant 0 : i32
    %c0_i32_2 = arith.constant 0 : i32
    %c0_i32_3 = arith.constant 0 : i32
    return %c0_i32, %c0_i32_0, %c0_i32_1, %c0_i32_2 : i32, i32, i32, i32
  }
  func.func @transform_6(%arg0: i32) -> (i32, i32, i32, i32) {
    %c0_i32 = arith.constant 0 : i32
    %c0_i32_0 = arith.constant 0 : i32
    %c0_i32_1 = arith.constant 0 : i32
    %c0_i32_2 = arith.constant 0 : i32
    %c0_i32_3 = arith.constant 0 : i32
    return %c0_i32, %c0_i32_0, %c0_i32_1, %c0_i32_2 : i32, i32, i32, i32
  }
  func.func @transform_7(%arg0: i32) -> (i32, i32, i32) {
    %c0_i32 = arith.constant 0 : i32
    %c0_i32_0 = arith.constant 0 : i32
    %c0_i32_1 = arith.constant 0 : i32
    %c0_i32_2 = arith.constant 0 : i32
    return %c0_i32, %c0_i32_0, %c0_i32_1 : i32, i32, i32
  }
  func.func @transform_8(%arg0: i32) -> (i32, i32, i32) {
    %c0_i32 = arith.constant 0 : i32
    %c0_i32_0 = arith.constant 0 : i32
    %c0_i32_1 = arith.constant 0 : i32
    %c0_i32_2 = arith.constant 0 : i32
    return %c0_i32, %c0_i32_0, %c0_i32_1 : i32, i32, i32
  }
  func.func @transform_9(%arg0: i32) -> (i32, i32, i32) {
    %c0_i32 = arith.constant 0 : i32
    %c0_i32_0 = arith.constant 0 : i32
    %c0_i32_1 = arith.constant 0 : i32
    %c0_i32_2 = arith.constant 0 : i32
    return %c0_i32, %c0_i32_0, %c0_i32_1 : i32, i32, i32
  }
  func.func @transform_10(%arg0: i32) -> (i32, i32, i32) {
    %c0_i32 = arith.constant 0 : i32
    %c0_i32_0 = arith.constant 0 : i32
    %c0_i32_1 = arith.constant 0 : i32
    %c0_i32_2 = arith.constant 0 : i32
    return %c0_i32, %c0_i32_0, %c0_i32_1 : i32, i32, i32
  }
  func.func @transform_11(%arg0: i32) -> (i32, i32, i32) {
    %c0_i32 = arith.constant 0 : i32
    %c0_i32_0 = arith.constant 0 : i32
    %c0_i32_1 = arith.constant 0 : i32
    %c0_i32_2 = arith.constant 0 : i32
    return %c0_i32, %c0_i32_0, %c0_i32_1 : i32, i32, i32
  }
  func.func @transform_12(%arg0: i32) -> (i32, i32, i32) {
    %c0_i32 = arith.constant 0 : i32
    %c0_i32_0 = arith.constant 0 : i32
    %c0_i32_1 = arith.constant 0 : i32
    %c0_i32_2 = arith.constant 0 : i32
    return %c0_i32, %c0_i32_0, %c0_i32_1 : i32, i32, i32
  }
  func.func @transform_13(%arg0: i32) -> (i32, i32, i32) {
    %c0_i32 = arith.constant 0 : i32
    %c0_i32_0 = arith.constant 0 : i32
    %c0_i32_1 = arith.constant 0 : i32
    %c0_i32_2 = arith.constant 0 : i32
    return %c0_i32, %c0_i32_0, %c0_i32_1 : i32, i32, i32
  }
  func.func @transform_14(%arg0: i32) -> (i32, i32, i32) {
    %c0_i32 = arith.constant 0 : i32
    %c0_i32_0 = arith.constant 0 : i32
    %c0_i32_1 = arith.constant 0 : i32
    return %arg0, %c0_i32, %c0_i32_0 : i32, i32, i32
  }
}

</mosaic_0001>

<llo_original>
// kernel: tpu_custom_call.1
$region0: #{tpu_custom_call.1}
  #allocation0 [shape = 'u32[]', space=smem, size = 0x4, offset = 0x4, fixed_abs, tag = 'smem constant byte address 0x4 - core index']
  #allocation1 [shape = 'u32[72,128]{1,0:T(1,128)}', space=vmem, size = 0x9000, scoped, tag = 'internal scratch']
  %s0 = inlined_call_operand.vmem [shape: f32[2,9,32], index: 0, kind: input, shape index: {}]
  %s1 = inlined_call_operand.vmem [shape: f32[3,1,32], index: 1, kind: input, shape index: {}]
  %s2 = inlined_call_operand.vmem [shape: f32[3,1,32], index: 2, kind: input, shape index: {}]
  %s3 = inlined_call_operand.vmem [shape: f32[3,4,32,8], index: 3, kind: input, shape index: {}]
  %s4 = inlined_call_operand.vmem [shape: f32[3,4,32,8], index: 4, kind: input, shape index: {}]
  %s5 = inlined_call_operand.vmem [shape: f32[3,4,32,8], index: 5, kind: input, shape index: {}]
  %s6 = inlined_call_operand.vmem [shape: f32[3,4,8,32], index: 6, kind: input, shape index: {}]
  %s7 = inlined_call_operand.vmem [shape: f32[3,1,32], index: 7, kind: input, shape index: {}]
  %s8 = inlined_call_operand.vmem [shape: f32[3,1,32], index: 8, kind: input, shape index: {}]
  %s9 = inlined_call_operand.vmem [shape: f32[3,1,32], index: 9, kind: input, shape index: {}]
  %s10 = inlined_call_operand.vmem [shape: f32[3,32,64], index: 10, kind: input, shape index: {}]
  %s11 = inlined_call_operand.vmem [shape: f32[3,1,64], index: 11, kind: input, shape index: {}]
  %s12 = inlined_call_operand.vmem [shape: f32[3,64,32], index: 12, kind: input, shape index: {}]
  %s13 = inlined_call_operand.vmem [shape: f32[3,1,32], index: 13, kind: input, shape index: {}]
  %s14 = inlined_call_operand.vmem [shape: f32[2,9,32], index: 14, kind: output, shape index: {}]
  %s15 = sld [smem:[#allocation0]]
  $region89: #{tpu_custom_call.1} parent=0
    _
  %s17 = ssub.s32 1, %s15
  %s18 = scalar_select 0, %s17, %s15
  loop: start=0, step=1, limit=4
  $region2: #{tpu_custom_call.1} parent=0 // loop_pre_header
    _
  $region3: #{tpu_custom_call.1} parent=0 // loop_header
    %s20 = sphi 0, %s24
    %p21 = scmp.ge.s32.totalorder %s20, 4
    %s30 = sphi 0, %s32
    %s33 = sphi 0, %s30
    %s34 = sphi 0, %s33
    %s50 = sphi 0, %s34
    %s54 = sphi 0, %s54
    %s56 = sphi 0, %s54
    %s57 = sphi 0, %s56
    %s71 = sphi 0, %s57
    %s75 = sphi 0, %s75
    %s77 = sphi 0, %s75
    %s78 = sphi 0, %s77
    %s92 = sphi 0, %s78
    %s96 = sphi 0, %s96
    %s98 = sphi 0, %s96
    %s99 = sphi 0, %s98
    %s113 = sphi 0, %s99
    %s117 = sphi 0, %s117
    %s119 = sphi 0, %s117
    %s120 = sphi 0, %s119
    %s134 = sphi 0, %s120
    %s138 = sphi 0, %s138
    %s140 = sphi 0, %s138
    %s141 = sphi 0, %s140
    %s155 = sphi 0, %s141
    %s159 = sphi 0, %s159
    %s161 = sphi 0, %s159
    %s162 = sphi 0, %s161
    %s176 = sphi 0, %s162
    %s180 = sphi 0, %s180
    %s182 = sphi 0, %s180
    %s183 = sphi 0, %s182
    %s197 = sphi 0, %s183
    %s201 = sphi 0, %s201
    %s203 = sphi 0, %s201
    %s204 = sphi 0, %s203
    %s218 = sphi 0, %s204
    %s222 = sphi 0, %s222
    %s224 = sphi 0, %s222
    %s225 = sphi 0, %s224
    %s239 = sphi 0, %s225
    %s243 = sphi 0, %s243
    %s245 = sphi 0, %s243
    %s246 = sphi 0, %s245
    %s260 = sphi 0, %s246
    %s264 = sphi 0, %s264
    %s266 = sphi 0, %s264
    %s267 = sphi 0, %s266
    %s281 = sphi 0, %s267
    %s285 = sphi 0, %s285
    %s287 = sphi 0, %s285
    %s288 = sphi 0, %s287
    %s302 = sphi 0, %s288
    %s306 = sphi 0, %s306
    %s308 = sphi 0, %s306
    %s309 = sphi 0, %s308
    %s323 = sphi 0, %s309
    %s329 = sphi 0, %s331
    %s332 = sphi 0, %s329
    %s333 = sphi 0, %s332
    %s349 = sphi 0, %s333
  $region4: #{tpu_custom_call.1} parent=0 // loop_header_branch
    %23 = sbr.rel (%p21) target = $region8
  $region5: #{tpu_custom_call.1} parent=0 // loop_body
    %s25 = ssub.s32 %s20, 1
    %s26 = ssub.s32 %s20, 2
    %s27 = sadd.s32 %s20, 1
    %s28 = ssub.s32 %s20, %s27
    %p29 = scmp.eq.s32.totalorder %s28, 0
    %s31 = sadd.s32 %s30, 1
    %s32 = scalar_select %p29, %s30, %s31
    %p35 = pneg %p29
    %p36 = scmp.eq.s32.totalorder %s20, 1
    %p37 = por %p35, %p36
    %p38 = scmp.ne.s32.totalorder %s30, %s33
    %p39 = scmp.eq.s32.totalorder %s20, 0
    %p40 = por %p38, %p39
    %p41 = scmp.ne.s32.totalorder %s30, %s33
    %p42 = scmp.eq.s32.totalorder %s25, 1
    %p43 = por %p41, %p42
    %p44 = scmp.ne.s32.totalorder %s33, %s34
    %p45 = scmp.eq.s32.totalorder %s25, 0
    %p46 = por %p44, %p45
    %p47 = scmp.ne.s32.totalorder %s33, %s34
    %p48 = scmp.eq.s32.totalorder %s26, 1
    %p49 = por %p47, %p48
    %p51 = scmp.ne.s32.totalorder %s34, %s50
    %p52 = scmp.eq.s32.totalorder %s26, 0
    %p53 = por %p51, %p52
    %s55 = sadd.s32 %s54, 1
    %p58 = scmp.eq.s32.totalorder %s20, 1
    %p59 = scmp.ne.s32.totalorder %s54, %s56
    %p60 = scmp.eq.s32.totalorder %s20, 0
    %p61 = por %p59, %p60
    %p62 = scmp.ne.s32.totalorder %s54, %s56
    %p63 = scmp.eq.s32.totalorder %s25, 1
    %p64 = por %p62, %p63
    %p65 = scmp.ne.s32.totalorder %s56, %s57
    %p66 = scmp.eq.s32.totalorder %s25, 0
    %p67 = por %p65, %p66
    %p68 = scmp.ne.s32.totalorder %s56, %s57
    %p69 = scmp.eq.s32.totalorder %s26, 1
    %p70 = por %p68, %p69
    %p72 = scmp.ne.s32.totalorder %s57, %s71
    %p73 = scmp.eq.s32.totalorder %s26, 0
    %p74 = por %p72, %p73
    %s76 = sadd.s32 %s75, 1
    %p79 = scmp.eq.s32.totalorder %s20, 1
    %p80 = scmp.ne.s32.totalorder %s75, %s77
    %p81 = scmp.eq.s32.totalorder %s20, 0
    %p82 = por %p80, %p81
    %p83 = scmp.ne.s32.totalorder %s75, %s77
    %p84 = scmp.eq.s32.totalorder %s25, 1
    %p85 = por %p83, %p84
    %p86 = scmp.ne.s32.totalorder %s77, %s78
    %p87 = scmp.eq.s32.totalorder %s25, 0
    %p88 = por %p86, %p87
    %p89 = scmp.ne.s32.totalorder %s77, %s78
    %p90 = scmp.eq.s32.totalorder %s26, 1
    %p91 = por %p89, %p90
    %p93 = scmp.ne.s32.totalorder %s78, %s92
    %p94 = scmp.eq.s32.totalorder %s26, 0
    %p95 = por %p93, %p94
    %s97 = sadd.s32 %s96, 1
    %p100 = scmp.eq.s32.totalorder %s20, 1
    %p101 = scmp.ne.s32.totalorder %s96, %s98
    %p102 = scmp.eq.s32.totalorder %s20, 0
    %p103 = por %p101, %p102
    %p104 = scmp.ne.s32.totalorder %s96, %s98
    %p105 = scmp.eq.s32.totalorder %s25, 1
    %p106 = por %p104, %p105
    %p107 = scmp.ne.s32.totalorder %s98, %s99
    %p108 = scmp.eq.s32.totalorder %s25, 0
    %p109 = por %p107, %p108
    %p110 = scmp.ne.s32.totalorder %s98, %s99
    %p111 = scmp.eq.s32.totalorder %s26, 1
    %p112 = por %p110, %p111
    %p114 = scmp.ne.s32.totalorder %s99, %s113
    %p115 = scmp.eq.s32.totalorder %s26, 0
    %p116 = por %p114, %p115
    %s118 = sadd.s32 %s117, 1
    %p121 = scmp.eq.s32.totalorder %s20, 1
    %p122 = scmp.ne.s32.totalorder %s117, %s119
    %p123 = scmp.eq.s32.totalorder %s20, 0
    %p124 = por %p122, %p123
    %p125 = scmp.ne.s32.totalorder %s117, %s119
    %p126 = scmp.eq.s32.totalorder %s25, 1
    %p127 = por %p125, %p126
    %p128 = scmp.ne.s32.totalorder %s119, %s120
    %p129 = scmp.eq.s32.totalorder %s25, 0
    %p130 = por %p128, %p129
    %p131 = scmp.ne.s32.totalorder %s119, %s120
    %p132 = scmp.eq.s32.totalorder %s26, 1
    %p133 = por %p131, %p132
    %p135 = scmp.ne.s32.totalorder %s120, %s134
    %p136 = scmp.eq.s32.totalorder %s26, 0
    %p137 = por %p135, %p136
    %s139 = sadd.s32 %s138, 1
    %p142 = scmp.eq.s32.totalorder %s20, 1
    %p143 = scmp.ne.s32.totalorder %s138, %s140
    %p144 = scmp.eq.s32.totalorder %s20, 0
    %p145 = por %p143, %p144
    %p146 = scmp.ne.s32.totalorder %s138, %s140
    %p147 = scmp.eq.s32.totalorder %s25, 1
    %p148 = por %p146, %p147
    %p149 = scmp.ne.s32.totalorder %s140, %s141
    %p150 = scmp.eq.s32.totalorder %s25, 0
    %p151 = por %p149, %p150
    %p152 = scmp.ne.s32.totalorder %s140, %s141
    %p153 = scmp.eq.s32.totalorder %s26, 1
    %p154 = por %p152, %p153
    %p156 = scmp.ne.s32.totalorder %s141, %s155
    %p157 = scmp.eq.s32.totalorder %s26, 0
    %p158 = por %p156, %p157
    %s160 = sadd.s32 %s159, 1
    %p163 = scmp.eq.s32.totalorder %s20, 1
    %p164 = scmp.ne.s32.totalorder %s159, %s161
    %p165 = scmp.eq.s32.totalorder %s20, 0
    %p166 = por %p164, %p165
    %p167 = scmp.ne.s32.totalorder %s159, %s161
    %p168 = scmp.eq.s32.totalorder %s25, 1
    %p169 = por %p167, %p168
    %p170 = scmp.ne.s32.totalorder %s161, %s162
    %p171 = scmp.eq.s32.totalorder %s25, 0
    %p172 = por %p170, %p171
    %p173 = scmp.ne.s32.totalorder %s161, %s162
    %p174 = scmp.eq.s32.totalorder %s26, 1
    %p175 = por %p173, %p174
    %p177 = scmp.ne.s32.totalorder %s162, %s176
    %p178 = scmp.eq.s32.totalorder %s26, 0
    %p179 = por %p177, %p178
    %s181 = sadd.s32 %s180, 1
    %p184 = scmp.eq.s32.totalorder %s20, 1
    %p185 = scmp.ne.s32.totalorder %s180, %s182
    %p186 = scmp.eq.s32.totalorder %s20, 0
    %p187 = por %p185, %p186
    %p188 = scmp.ne.s32.totalorder %s180, %s182
    %p189 = scmp.eq.s32.totalorder %s25, 1
    %p190 = por %p188, %p189
    %p191 = scmp.ne.s32.totalorder %s182, %s183
    %p192 = scmp.eq.s32.totalorder %s25, 0
    %p193 = por %p191, %p192
    %p194 = scmp.ne.s32.totalorder %s182, %s183
    %p195 = scmp.eq.s32.totalorder %s26, 1
    %p196 = por %p194, %p195
    %p198 = scmp.ne.s32.totalorder %s183, %s197
    %p199 = scmp.eq.s32.totalorder %s26, 0
    %p200 = por %p198, %p199
    %s202 = sadd.s32 %s201, 1
    %p205 = scmp.eq.s32.totalorder %s20, 1
    %p206 = scmp.ne.s32.totalorder %s201, %s203
    %p207 = scmp.eq.s32.totalorder %s20, 0
    %p208 = por %p206, %p207
    %p209 = scmp.ne.s32.totalorder %s201, %s203
    %p210 = scmp.eq.s32.totalorder %s25, 1
    %p211 = por %p209, %p210
    %p212 = scmp.ne.s32.totalorder %s203, %s204
    %p213 = scmp.eq.s32.totalorder %s25, 0
    %p214 = por %p212, %p213
    %p215 = scmp.ne.s32.totalorder %s203, %s204
    %p216 = scmp.eq.s32.totalorder %s26, 1
    %p217 = por %p215, %p216
    %p219 = scmp.ne.s32.totalorder %s204, %s218
    %p220 = scmp.eq.s32.totalorder %s26, 0
    %p221 = por %p219, %p220
    %s223 = sadd.s32 %s222, 1
    %p226 = scmp.eq.s32.totalorder %s20, 1
    %p227 = scmp.ne.s32.totalorder %s222, %s224
    %p228 = scmp.eq.s32.totalorder %s20, 0
    %p229 = por %p227, %p228
    %p230 = scmp.ne.s32.totalorder %s222, %s224
    %p231 = scmp.eq.s32.totalorder %s25, 1
    %p232 = por %p230, %p231
    %p233 = scmp.ne.s32.totalorder %s224, %s225
    %p234 = scmp.eq.s32.totalorder %s25, 0
    %p235 = por %p233, %p234
    %p236 = scmp.ne.s32.totalorder %s224, %s225
    %p237 = scmp.eq.s32.totalorder %s26, 1
    %p238 = por %p236, %p237
    %p240 = scmp.ne.s32.totalorder %s225, %s239
    %p241 = scmp.eq.s32.totalorder %s26, 0
    %p242 = por %p240, %p241
    %s244 = sadd.s32 %s243, 1
    %p247 = scmp.eq.s32.totalorder %s20, 1
    %p248 = scmp.ne.s32.totalorder %s243, %s245
    %p249 = scmp.eq.s32.totalorder %s20, 0
    %p250 = por %p248, %p249
    %p251 = scmp.ne.s32.totalorder %s243, %s245
    %p252 = scmp.eq.s32.totalorder %s25, 1
    %p253 = por %p251, %p252
    %p254 = scmp.ne.s32.totalorder %s245, %s246
    %p255 = scmp.eq.s32.totalorder %s25, 0
    %p256 = por %p254, %p255
    %p257 = scmp.ne.s32.totalorder %s245, %s246
    %p258 = scmp.eq.s32.totalorder %s26, 1
    %p259 = por %p257, %p258
    %p261 = scmp.ne.s32.totalorder %s246, %s260
    %p262 = scmp.eq.s32.totalorder %s26, 0
    %p263 = por %p261, %p262
    %s265 = sadd.s32 %s264, 1
    %p268 = scmp.eq.s32.totalorder %s20, 1
    %p269 = scmp.ne.s32.totalorder %s264, %s266
    %p270 = scmp.eq.s32.totalorder %s20, 0
    %p271 = por %p269, %p270
    %p272 = scmp.ne.s32.totalorder %s264, %s266
    %p273 = scmp.eq.s32.totalorder %s25, 1
    %p274 = por %p272, %p273
    %p275 = scmp.ne.s32.totalorder %s266, %s267
    %p276 = scmp.eq.s32.totalorder %s25, 0
    %p277 = por %p275, %p276
    %p278 = scmp.ne.s32.totalorder %s266, %s267
    %p279 = scmp.eq.s32.totalorder %s26, 1
    %p280 = por %p278, %p279
    %p282 = scmp.ne.s32.totalorder %s267, %s281
    %p283 = scmp.eq.s32.totalorder %s26, 0
    %p284 = por %p282, %p283
    %s286 = sadd.s32 %s285, 1
    %p289 = scmp.eq.s32.totalorder %s20, 1
    %p290 = scmp.ne.s32.totalorder %s285, %s287
    %p291 = scmp.eq.s32.totalorder %s20, 0
    %p292 = por %p290, %p291
    %p293 = scmp.ne.s32.totalorder %s285, %s287
    %p294 = scmp.eq.s32.totalorder %s25, 1
    %p295 = por %p293, %p294
    %p296 = scmp.ne.s32.totalorder %s287, %s288
    %p297 = scmp.eq.s32.totalorder %s25, 0
    %p298 = por %p296, %p297
    %p299 = scmp.ne.s32.totalorder %s287, %s288
    %p300 = scmp.eq.s32.totalorder %s26, 1
    %p301 = por %p299, %p300
    %p303 = scmp.ne.s32.totalorder %s288, %s302
    %p304 = scmp.eq.s32.totalorder %s26, 0
    %p305 = por %p303, %p304
    %s307 = sadd.s32 %s306, 1
    %p310 = scmp.eq.s32.totalorder %s20, 1
    %p311 = scmp.ne.s32.totalorder %s306, %s308
    %p312 = scmp.eq.s32.totalorder %s20, 0
    %p313 = por %p311, %p312
    %p314 = scmp.ne.s32.totalorder %s306, %s308
    %p315 = scmp.eq.s32.totalorder %s25, 1
    %p316 = por %p314, %p315
    %p317 = scmp.ne.s32.totalorder %s308, %s309
    %p318 = scmp.eq.s32.totalorder %s25, 0
    %p319 = por %p317, %p318
    %p320 = scmp.ne.s32.totalorder %s308, %s309
    %p321 = scmp.eq.s32.totalorder %s26, 1
    %p322 = por %p320, %p321
    %p324 = scmp.ne.s32.totalorder %s309, %s323
    %p325 = scmp.eq.s32.totalorder %s26, 0
    %p326 = por %p324, %p325
    %s327 = ssub.s32 %s20, %s27
    %p328 = scmp.eq.s32.totalorder %s327, 0
    %s330 = sadd.s32 %s329, 1
    %s331 = scalar_select %p328, %s329, %s330
    %p334 = pneg %p328
    %p335 = scmp.eq.s32.totalorder %s20, 1
    %p336 = por %p334, %p335
    %p337 = scmp.ne.s32.totalorder %s329, %s332
    %p338 = scmp.eq.s32.totalorder %s20, 0
    %p339 = por %p337, %p338
    %p340 = scmp.ne.s32.totalorder %s329, %s332
    %p341 = scmp.eq.s32.totalorder %s25, 1
    %p342 = por %p340, %p341
    %p343 = scmp.ne.s32.totalorder %s332, %s333
    %p344 = scmp.eq.s32.totalorder %s25, 0
    %p345 = por %p343, %p344
    %p346 = scmp.ne.s32.totalorder %s332, %s333
    %p347 = scmp.eq.s32.totalorder %s26, 1
    %p348 = por %p346, %p347
    %p350 = scmp.ne.s32.totalorder %s333, %s349
    %p351 = scmp.eq.s32.totalorder %s26, 0
    %p352 = por %p350, %p351
    %p353 = scmp.le.s32.totalorder 1, %s20
    %p354 = scmp.lt.s32.totalorder %s20, 3
    %p355 = pnand %p353, %p354
    %p356 = pneg %p355
    // Predicated region
    $region9: #{tpu_custom_call.1} parent=5 // pred_check
      _
    $region10: #{tpu_custom_call.1} parent=5 // pred_check_branch
      %358 = sbr.rel (%p355) target = $region12
    $region11: #{tpu_custom_call.1} parent=5 // pred_region
      %s359 = ssub.s32 %s20, 1
      // Predicated region
      $region13: #{tpu_custom_call.1} parent=11 // pred_check
        %p360 = pneg %p67
      $region14: #{tpu_custom_call.1} parent=11 // pred_check_branch
        %362 = sbr.rel (%p360) target = $region16
      $region15: #{tpu_custom_call.1} parent=11 // pred_region
        _
      $region16: #{tpu_custom_call.1} parent=11 // pred_fallthru
        _
      // Predicated region
      $region17: #{tpu_custom_call.1} parent=11 // pred_check
        %p363 = pneg %p88
      $region18: #{tpu_custom_call.1} parent=11 // pred_check_branch
        %365 = sbr.rel (%p363) target = $region20
      $region19: #{tpu_custom_call.1} parent=11 // pred_region
        _
      $region20: #{tpu_custom_call.1} parent=11 // pred_fallthru
        _
      // Predicated region
      $region21: #{tpu_custom_call.1} parent=11 // pred_check
        %p366 = pneg %p109
      $region22: #{tpu_custom_call.1} parent=11 // pred_check_branch
        %368 = sbr.rel (%p366) target = $region24
      $region23: #{tpu_custom_call.1} parent=11 // pred_region
        _
      $region24: #{tpu_custom_call.1} parent=11 // pred_fallthru
        _
      // Predicated region
      $region25: #{tpu_custom_call.1} parent=11 // pred_check
        %p369 = pneg %p130
      $region26: #{tpu_custom_call.1} parent=11 // pred_check_branch
        %371 = sbr.rel (%p369) target = $region28
      $region27: #{tpu_custom_call.1} parent=11 // pred_region
        _
      $region28: #{tpu_custom_call.1} parent=11 // pred_fallthru
        _
      // Predicated region
      $region29: #{tpu_custom_call.1} parent=11 // pred_check
        %p372 = pneg %p151
      $region30: #{tpu_custom_call.1} parent=11 // pred_check_branch
        %374 = sbr.rel (%p372) target = $region32
      $region31: #{tpu_custom_call.1} parent=11 // pred_region
        _
      $region32: #{tpu_custom_call.1} parent=11 // pred_fallthru
        _
      // Predicated region
      $region33: #{tpu_custom_call.1} parent=11 // pred_check
        %p375 = pneg %p172
      $region34: #{tpu_custom_call.1} parent=11 // pred_check_branch
        %377 = sbr.rel (%p375) target = $region36
      $region35: #{tpu_custom_call.1} parent=11 // pred_region
        _
      $region36: #{tpu_custom_call.1} parent=11 // pred_fallthru
        _
      // Predicated region
      $region37: #{tpu_custom_call.1} parent=11 // pred_check
        %p378 = pneg %p193
      $region38: #{tpu_custom_call.1} parent=11 // pred_check_branch
        %380 = sbr.rel (%p378) target = $region40
      $region39: #{tpu_custom_call.1} parent=11 // pred_region
        _
      $region40: #{tpu_custom_call.1} parent=11 // pred_fallthru
        _
      // Predicated region
      $region41: #{tpu_custom_call.1} parent=11 // pred_check
        %p381 = pneg %p214
      $region42: #{tpu_custom_call.1} parent=11 // pred_check_branch
        %383 = sbr.rel (%p381) target = $region44
      $region43: #{tpu_custom_call.1} parent=11 // pred_region
        _
      $region44: #{tpu_custom_call.1} parent=11 // pred_fallthru
        _
      // Predicated region
      $region45: #{tpu_custom_call.1} parent=11 // pred_check
        %p384 = pneg %p235
      $region46: #{tpu_custom_call.1} parent=11 // pred_check_branch
        %386 = sbr.rel (%p384) target = $region48
      $region47: #{tpu_custom_call.1} parent=11 // pred_region
        _
      $region48: #{tpu_custom_call.1} parent=11 // pred_fallthru
        _
      // Predicated region
      $region49: #{tpu_custom_call.1} parent=11 // pred_check
        %p387 = pneg %p256
      $region50: #{tpu_custom_call.1} parent=11 // pred_check_branch
        %389 = sbr.rel (%p387) target = $region52
      $region51: #{tpu_custom_call.1} parent=11 // pred_region
        _
      $region52: #{tpu_custom_call.1} parent=11 // pred_fallthru
        _
      // Predicated region
      $region53: #{tpu_custom_call.1} parent=11 // pred_check
        %p390 = pneg %p277
      $region54: #{tpu_custom_call.1} parent=11 // pred_check_branch
        %392 = sbr.rel (%p390) target = $region56
      $region55: #{tpu_custom_call.1} parent=11 // pred_region
        _
      $region56: #{tpu_custom_call.1} parent=11 // pred_fallthru
        _
      // Predicated region
      $region57: #{tpu_custom_call.1} parent=11 // pred_check
        %p393 = pneg %p298
      $region58: #{tpu_custom_call.1} parent=11 // pred_check_branch
        %395 = sbr.rel (%p393) target = $region60
      $region59: #{tpu_custom_call.1} parent=11 // pred_region
        _
      $region60: #{tpu_custom_call.1} parent=11 // pred_fallthru
        _
      // Predicated region
      $region61: #{tpu_custom_call.1} parent=11 // pred_check
        %p396 = pneg %p319
      $region62: #{tpu_custom_call.1} parent=11 // pred_check_branch
        %398 = sbr.rel (%p396) target = $region64
      $region63: #{tpu_custom_call.1} parent=11 // pred_region
        _
      $region64: #{tpu_custom_call.1} parent=11 // pred_fallthru
        _
    $region12: #{tpu_custom_call.1} parent=5 // pred_fallthru
      _
    %p399 = scmp.lt.s32.totalorder %s20, 2
    // Predicated region
    $region65: #{tpu_custom_call.1} parent=5 // pred_check
      %p400 = pneg %p399
    $region66: #{tpu_custom_call.1} parent=5 // pred_check_branch
      %402 = sbr.rel (%p400) target = $region68
    $region67: #{tpu_custom_call.1} parent=5 // pred_region
      // Predicated region
      $region69: #{tpu_custom_call.1} parent=67 // pred_check
        %p403 = pneg %p40
      $region70: #{tpu_custom_call.1} parent=67 // pred_check_branch
        %405 = sbr.rel (%p403) target = $region72
      $region71: #{tpu_custom_call.1} parent=67 // pred_region
        %p406 = scmp.lt.s32.totalorder %s20, 1
        %s407 = scalar_select %p406, %s20, 1
        %s408 = smul.addr %s407, 2
        %s409 = smul.addr %s408, 8
        %s410 = scalar_lea.vmem %s0, %s409
      $region72: #{tpu_custom_call.1} parent=67 // pred_fallthru
        _
    $region68: #{tpu_custom_call.1} parent=5 // pred_fallthru
      _
    %p411 = scmp.le.s32.totalorder 1, %s20
    %p412 = scmp.lt.s32.totalorder %s20, 3
    %p413 = pnand %p411, %p412
    %p414 = pneg %p413
    // Predicated region
    $region73: #{tpu_custom_call.1} parent=5 // pred_check
      _
    $region74: #{tpu_custom_call.1} parent=5 // pred_check_branch
      %416 = sbr.rel (%p413) target = $region76
    $region75: #{tpu_custom_call.1} parent=5 // pred_region
      %s417 = ssub.s32 %s20, 1
      %p418 = scmp.lt.s32.totalorder %s25, 1
      %s419 = scalar_select %p418, %s25, 1
      %s420 = smul.addr %s419, 2
      %s421 = smul.addr %s420, 8
      %s422 = scalar_lea.vmem %s0, %s421
      %p423 = pneg %p46
      %p424 = pneg %p43
      %p425 = pneg %p67
      %p426 = pneg %p64
      %p427 = pneg %p88
      %p428 = pneg %p85
      %p429 = pneg %p109
      %p430 = pneg %p106
      %p431 = pneg %p130
      %p432 = pneg %p127
      %p433 = pneg %p151
      %p434 = pneg %p148
      %p435 = pneg %p172
      %p436 = pneg %p169
      %p437 = pneg %p193
      %p438 = pneg %p190
      %p439 = pneg %p214
      %p440 = pneg %p211
      %p441 = pneg %p235
      %p442 = pneg %p232
      %p443 = pneg %p256
      %p444 = pneg %p253
      %p445 = pneg %p277
      %p446 = pneg %p274
      %p447 = pneg %p298
      %p448 = pneg %p295
      %p449 = pneg %p319
      %p450 = pneg %p316
      %p451 = pneg %p345
      %p452 = pneg %p342
      %p453 = scmp.lt.s32.totalorder %s25, 1
      %s454 = scalar_select %p453, %s25, 1
      %s455 = smul.addr %s454, 2
      %s456 = smul.addr %s455, 8
      %s457 = scalar_lea.vmem %s14, %s456
      %p458 = scmp.lt.s32.totalorder %s25, 1
      %s459 = scalar_select %p458, %s25, 1
      %s460 = smul.addr %s459, 2
      %s461 = smul.addr %s460, 8
      %s462 = scalar_lea.vmem %s0, %s461
      %p463 = scmp.lt.s32.totalorder %s25, 1
      %s464 = scalar_select %p463, %s25, 1
      %s465 = smul.addr %s464, 2
      %s466 = smul.addr %s465, 8
      %s467 = scalar_lea.vmem %s14, %s466
      %v468 = vld [vmem:[%s462] sm:$0xff]
      %v469 = vld [vmem:[%s462 + $0x8] sm:$0x1]
      %v470 = vld [vmem:[%s1] sm:$0x1]
      %v471 = vld [vmem:[%s2] sm:$0x1]
      %vm472 = vcmask 261120
      %v473 = vsel %vm472, %v468, 0.0
      %474 = vadd.xlane.f32.xlu0 %v473
      %v475 = vpop.xlane.xlu0 %474
      %vm476 = vcmask 253952
      %v477 = vsel %vm476, %v469, 0.0
      %478 = vadd.xlane.f32.xlu0 %v477
      %v479 = vpop.xlane.xlu0 %478
      %v480 = vrcp.pop 32.0
      %v481 = vmul.f32 32.0, %v480
      %v482 = vsub.f32 1.0, %v481
      %v483 = vmul.f32 %v480, %v482
      %v484 = vadd.f32 %v480, %v483
      %vm485 = vweird.f32 %v480
      %v486 = vsel %vm485, %v480, %v484
      %v487 = vmul.f32 %v475, %v486
      %v488 = vmul.f32 %v479, %v486
      %v489 = vsub.f32 %v468, %v487
      %v490 = vsub.f32 %v469, %v488
      %v491 = vmul.f32 %v489, %v489
      %v492 = vmul.f32 %v490, %v490
      %v493 = vsel %vm472, %v491, 0.0
      %494 = vadd.xlane.f32.xlu0 %v493
      %v495 = vpop.xlane.xlu0 %494
      %v496 = vsel %vm476, %v492, 0.0
      %497 = vadd.xlane.f32.xlu0 %v496
      %v498 = vpop.xlane.xlu0 %497
      %v499 = vmul.f32 %v495, %v486
      %v500 = vmul.f32 %v498, %v486
      %v501 = vadd.f32 %v499, 1e-05
      %v502 = vadd.f32 %v500, 1e-05
      %v503 = vrsqrt.pop %v501
      %v504 = vmul.f32 %v503, %v501
      %v505 = vmul.f32 %v504, %v503
      %v506 = vmul.f32 0.5, %v505
      %v507 = vsub.f32 1.5, %v506
      %v508 = vmul.f32 %v503, %v507
      %vm509 = vweird.f32 %v501
      %vm510 = vweird.f32 %v503
      %vm511 = vmor %vm509, %vm510
      %v512 = vsel %vm511, %v503, %v508
      %v513 = vrsqrt.pop %v502
      %v514 = vmul.f32 %v513, %v502
      %v515 = vmul.f32 %v514, %v513
      %v516 = vmul.f32 0.5, %v515
      %v517 = vsub.f32 1.5, %v516
      %v518 = vmul.f32 %v513, %v517
      %vm519 = vweird.f32 %v502
      %vm520 = vweird.f32 %v513
      %vm521 = vmor %vm519, %vm520
      %v522 = vsel %vm521, %v513, %v518
      %v523 = vmul.f32 %v489, %v512
      %v524 = vmul.f32 %v490, %v522
      %v526 = vperm.slane %v470, 0
      %v528 = vmul.f32 %v523, %v526
      %v529 = vmul.f32 %v524, %v526
      %v531 = vperm.slane %v471, 0
      %v533 = vadd.f32 %v528, %v531
      %v534 = vadd.f32 %v529, %v531
      %v535 = vld [vmem:[%s3] sm:$0xff]
      %v536 = vld [vmem:[%s3 + $0x8] sm:$0xff]
      %v537 = vld [vmem:[%s3 + $0x10] sm:$0xff]
      %v538 = vld [vmem:[%s3 + $0x18] sm:$0xff]
      %v539 = vld [vmem:[%s3 + $0x20] sm:$0xff]
      %v540 = vld [vmem:[%s3 + $0x28] sm:$0xff]
      %v541 = vld [vmem:[%s3 + $0x30] sm:$0xff]
      %v542 = vld [vmem:[%s3 + $0x38] sm:$0xff]
      %v543 = vld [vmem:[%s3 + $0x40] sm:$0xff]
      %v544 = vld [vmem:[%s3 + $0x48] sm:$0xff]
      %v545 = vld [vmem:[%s3 + $0x50] sm:$0xff]
      %v546 = vld [vmem:[%s3 + $0x58] sm:$0xff]
      %v547 = vld [vmem:[%s3 + $0x60] sm:$0xff]
      %v548 = vld [vmem:[%s3 + $0x68] sm:$0xff]
      %v549 = vld [vmem:[%s3 + $0x70] sm:$0xff]
      %v550 = vld [vmem:[%s3 + $0x78] sm:$0xff]
      %v552 = vsel %vm472, %v533, 0
      %v555 = vsel %vm472, %v534, 0
      %557 = vmatpush.msra.mxu0 0.0
      %558 = vmatpush.msra.mxu0 0.0
      %559 = vmatpush.msra.mxu0 0.0
      %560 = vmatpush.msra.mxu0 0.0
      %561 = vmatpush.msra.mxu0 0.0
      %562 = vmatpush.msra.mxu0 0.0
      %563 = vmatpush.msra.mxu0 0.0
      %564 = vmatpush.msra.mxu0 0.0
      %565 = vmatpush.msra.mxu0 0.0
      %566 = vmatpush.msra.mxu0 0.0
      %567 = vmatpush.msra.mxu0 0.0
      %568 = vmatpush.msra.mxu0 0.0
      %569 = vmatpush.msra.mxu0 %v538
      %570 = vmatpush.msra.mxu0 %v537
      %571 = vmatpush.msra.mxu0 %v536
      %572 = vmatpush.msra.mxu0 %v535
      %573 = vmatmul.f32.gmra.mxu0 %v552
      %v574 = vpop.f32.mrf.mxu0
      %v575 = vadd.f32 0.0, %v574
      %576 = vmatmul.f32.gmra.mxu0 %v555
      %v577 = vpop.f32.mrf.mxu0
      %v578 = vadd.f32 0.0, %v577
      %579 = vdwg.mxu0
      %580 = vmatpush.msra.mxu0 0.0
      %581 = vmatpush.msra.mxu0 0.0
      %582 = vmatpush.msra.mxu0 0.0
      %583 = vmatpush.msra.mxu0 0.0
      %584 = vmatpush.msra.mxu0 0.0
      %585 = vmatpush.msra.mxu0 0.0
      %586 = vmatpush.msra.mxu0 0.0
      %587 = vmatpush.msra.mxu0 0.0
      %588 = vmatpush.msra.mxu0 0.0
      %589 = vmatpush.msra.mxu0 0.0
      %590 = vmatpush.msra.mxu0 0.0
      %591 = vmatpush.msra.mxu0 0.0
      %592 = vmatpush.msra.mxu0 %v542
      %593 = vmatpush.msra.mxu0 %v541
      %594 = vmatpush.msra.mxu0 %v540
      %595 = vmatpush.msra.mxu0 %v539
      %596 = vmatmul.f32.gmra.mxu0 %v552
      %v597 = vpop.f32.mrf.mxu0
      %v598 = vadd.f32 0.0, %v597
      %599 = vmatmul.f32.gmra.mxu0 %v555
      %v600 = vpop.f32.mrf.mxu0
      %v601 = vadd.f32 0.0, %v600
      %602 = vdwg.mxu0
      %603 = vmatpush.msra.mxu0 0.0
      %604 = vmatpush.msra.mxu0 0.0
      %605 = vmatpush.msra.mxu0 0.0
      %606 = vmatpush.msra.mxu0 0.0
      %607 = vmatpush.msra.mxu0 0.0
      %608 = vmatpush.msra.mxu0 0.0
      %609 = vmatpush.msra.mxu0 0.0
      %610 = vmatpush.msra.mxu0 0.0
      %611 = vmatpush.msra.mxu0 0.0
      %612 = vmatpush.msra.mxu0 0.0
      %613 = vmatpush.msra.mxu0 0.0
      %614 = vmatpush.msra.mxu0 0.0
      %615 = vmatpush.msra.mxu0 %v546
      %616 = vmatpush.msra.mxu0 %v545
      %617 = vmatpush.msra.mxu0 %v544
      %618 = vmatpush.msra.mxu0 %v543
      %619 = vmatmul.f32.gmra.mxu0 %v552
      %v620 = vpop.f32.mrf.mxu0
      %v621 = vadd.f32 0.0, %v620
      %622 = vmatmul.f32.gmra.mxu0 %v555
      %v623 = vpop.f32.mrf.mxu0
      %v624 = vadd.f32 0.0, %v623
      %625 = vdwg.mxu0
      %626 = vmatpush.msra.mxu0 0.0
      %627 = vmatpush.msra.mxu0 0.0
      %628 = vmatpush.msra.mxu0 0.0
      %629 = vmatpush.msra.mxu0 0.0
      %630 = vmatpush.msra.mxu0 0.0
      %631 = vmatpush.msra.mxu0 0.0
      %632 = vmatpush.msra.mxu0 0.0
      %633 = vmatpush.msra.mxu0 0.0
      %634 = vmatpush.msra.mxu0 0.0
      %635 = vmatpush.msra.mxu0 0.0
      %636 = vmatpush.msra.mxu0 0.0
      %637 = vmatpush.msra.mxu0 0.0
      %638 = vmatpush.msra.mxu0 %v550
      %639 = vmatpush.msra.mxu0 %v549
      %640 = vmatpush.msra.mxu0 %v548
      %641 = vmatpush.msra.mxu0 %v547
      %642 = vmatmul.f32.gmra.mxu0 %v552
      %v643 = vpop.f32.mrf.mxu0
      %v644 = vadd.f32 0.0, %v643
      %645 = vmatmul.f32.gmra.mxu0 %v555
      %v646 = vpop.f32.mrf.mxu0
      %v647 = vadd.f32 0.0, %v646
      %648 = vdwg.mxu0
      %v649 = vld [vmem:[%s4] sm:$0xff]
      %v650 = vld [vmem:[%s4 + $0x8] sm:$0xff]
      %v651 = vld [vmem:[%s4 + $0x10] sm:$0xff]
      %v652 = vld [vmem:[%s4 + $0x18] sm:$0xff]
      %v653 = vld [vmem:[%s4 + $0x20] sm:$0xff]
      %v654 = vld [vmem:[%s4 + $0x28] sm:$0xff]
      %v655 = vld [vmem:[%s4 + $0x30] sm:$0xff]
      %v656 = vld [vmem:[%s4 + $0x38] sm:$0xff]
      %v657 = vld [vmem:[%s4 + $0x40] sm:$0xff]
      %v658 = vld [vmem:[%s4 + $0x48] sm:$0xff]
      %v659 = vld [vmem:[%s4 + $0x50] sm:$0xff]
      %v660 = vld [vmem:[%s4 + $0x58] sm:$0xff]
      %v661 = vld [vmem:[%s4 + $0x60] sm:$0xff]
      %v662 = vld [vmem:[%s4 + $0x68] sm:$0xff]
      %v663 = vld [vmem:[%s4 + $0x70] sm:$0xff]
      %v664 = vld [vmem:[%s4 + $0x78] sm:$0xff]
      %665 = vmatpush.msra.mxu0 0.0
      %666 = vmatpush.msra.mxu0 0.0
      %667 = vmatpush.msra.mxu0 0.0
      %668 = vmatpush.msra.mxu0 0.0
      %669 = vmatpush.msra.mxu0 0.0
      %670 = vmatpush.msra.mxu0 0.0
      %671 = vmatpush.msra.mxu0 0.0
      %672 = vmatpush.msra.mxu0 0.0
      %673 = vmatpush.msra.mxu0 0.0
      %674 = vmatpush.msra.mxu0 0.0
      %675 = vmatpush.msra.mxu0 0.0
      %676 = vmatpush.msra.mxu0 0.0
      %677 = vmatpush.msra.mxu0 %v652
      %678 = vmatpush.msra.mxu0 %v651
      %679 = vmatpush.msra.mxu0 %v650
      %680 = vmatpush.msra.mxu0 %v649
      %681 = vmatmul.f32.gmra.mxu0 %v552
      %v682 = vpop.f32.mrf.mxu0
      %v683 = vadd.f32 0.0, %v682
      %684 = vmatmul.f32.gmra.mxu0 %v555
      %v685 = vpop.f32.mrf.mxu0
      %v686 = vadd.f32 0.0, %v685
      %687 = vdwg.mxu0
      %688 = vmatpush.msra.mxu0 0.0
      %689 = vmatpush.msra.mxu0 0.0
      %690 = vmatpush.msra.mxu0 0.0
      %691 = vmatpush.msra.mxu0 0.0
      %692 = vmatpush.msra.mxu0 0.0
      %693 = vmatpush.msra.mxu0 0.0
      %694 = vmatpush.msra.mxu0 0.0
      %695 = vmatpush.msra.mxu0 0.0
      %696 = vmatpush.msra.mxu0 0.0
      %697 = vmatpush.msra.mxu0 0.0
      %698 = vmatpush.msra.mxu0 0.0
      %699 = vmatpush.msra.mxu0 0.0
      %700 = vmatpush.msra.mxu0 %v656
      %701 = vmatpush.msra.mxu0 %v655
      %702 = vmatpush.msra.mxu0 %v654
      %703 = vmatpush.msra.mxu0 %v653
      %704 = vmatmul.f32.gmra.mxu0 %v552
      %v705 = vpop.f32.mrf.mxu0
      %v706 = vadd.f32 0.0, %v705
      %707 = vmatmul.f32.gmra.mxu0 %v555
      %v708 = vpop.f32.mrf.mxu0
      %v709 = vadd.f32 0.0, %v708
      %710 = vdwg.mxu0
      %711 = vmatpush.msra.mxu0 0.0
      %712 = vmatpush.msra.mxu0 0.0
      %713 = vmatpush.msra.mxu0 0.0
      %714 = vmatpush.msra.mxu0 0.0
      %715 = vmatpush.msra.mxu0 0.0
      %716 = vmatpush.msra.mxu0 0.0
      %717 = vmatpush.msra.mxu0 0.0
      %718 = vmatpush.msra.mxu0 0.0
      %719 = vmatpush.msra.mxu0 0.0
      %720 = vmatpush.msra.mxu0 0.0
      %721 = vmatpush.msra.mxu0 0.0
      %722 = vmatpush.msra.mxu0 0.0
      %723 = vmatpush.msra.mxu0 %v660
      %724 = vmatpush.msra.mxu0 %v659
      %725 = vmatpush.msra.mxu0 %v658
      %726 = vmatpush.msra.mxu0 %v657
      %727 = vmatmul.f32.gmra.mxu0 %v552
      %v728 = vpop.f32.mrf.mxu0
      %v729 = vadd.f32 0.0, %v728
      %730 = vmatmul.f32.gmra.mxu0 %v555
      %v731 = vpop.f32.mrf.mxu0
      %v732 = vadd.f32 0.0, %v731
      %733 = vdwg.mxu0
      %734 = vmatpush.msra.mxu0 0.0
      %735 = vmatpush.msra.mxu0 0.0
      %736 = vmatpush.msra.mxu0 0.0
      %737 = vmatpush.msra.mxu0 0.0
      %738 = vmatpush.msra.mxu0 0.0
      %739 = vmatpush.msra.mxu0 0.0
      %740 = vmatpush.msra.mxu0 0.0
      %741 = vmatpush.msra.mxu0 0.0
      %742 = vmatpush.msra.mxu0 0.0
      %743 = vmatpush.msra.mxu0 0.0
      %744 = vmatpush.msra.mxu0 0.0
      %745 = vmatpush.msra.mxu0 0.0
      %746 = vmatpush.msra.mxu0 %v664
      %747 = vmatpush.msra.mxu0 %v663
      %748 = vmatpush.msra.mxu0 %v662
      %749 = vmatpush.msra.mxu0 %v661
      %750 = vmatmul.f32.gmra.mxu0 %v552
      %v751 = vpop.f32.mrf.mxu0
      %v752 = vadd.f32 0.0, %v751
      %753 = vmatmul.f32.gmra.mxu0 %v555
      %v754 = vpop.f32.mrf.mxu0
      %v755 = vadd.f32 0.0, %v754
      %756 = vdwg.mxu0
      %v757 = vld [vmem:[%s5] sm:$0xff]
      %v758 = vld [vmem:[%s5 + $0x8] sm:$0xff]
      %v759 = vld [vmem:[%s5 + $0x10] sm:$0xff]
      %v760 = vld [vmem:[%s5 + $0x18] sm:$0xff]
      %v761 = vld [vmem:[%s5 + $0x20] sm:$0xff]
      %v762 = vld [vmem:[%s5 + $0x28] sm:$0xff]
      %v763 = vld [vmem:[%s5 + $0x30] sm:$0xff]
      %v764 = vld [vmem:[%s5 + $0x38] sm:$0xff]
      %v765 = vld [vmem:[%s5 + $0x40] sm:$0xff]
      %v766 = vld [vmem:[%s5 + $0x48] sm:$0xff]
      %v767 = vld [vmem:[%s5 + $0x50] sm:$0xff]
      %v768 = vld [vmem:[%s5 + $0x58] sm:$0xff]
      %v769 = vld [vmem:[%s5 + $0x60] sm:$0xff]
      %v770 = vld [vmem:[%s5 + $0x68] sm:$0xff]
      %v771 = vld [vmem:[%s5 + $0x70] sm:$0xff]
      %v772 = vld [vmem:[%s5 + $0x78] sm:$0xff]
      %773 = vmatpush.msra.mxu0 0.0
      %774 = vmatpush.msra.mxu0 0.0
      %775 = vmatpush.msra.mxu0 0.0
      %776 = vmatpush.msra.mxu0 0.0
      %777 = vmatpush.msra.mxu0 0.0
      %778 = vmatpush.msra.mxu0 0.0
      %779 = vmatpush.msra.mxu0 0.0
      %780 = vmatpush.msra.mxu0 0.0
      %781 = vmatpush.msra.mxu0 0.0
      %782 = vmatpush.msra.mxu0 0.0
      %783 = vmatpush.msra.mxu0 0.0
      %784 = vmatpush.msra.mxu0 0.0
      %785 = vmatpush.msra.mxu0 %v760
      %786 = vmatpush.msra.mxu0 %v759
      %787 = vmatpush.msra.mxu0 %v758
      %788 = vmatpush.msra.mxu0 %v757
      %789 = vmatmul.f32.gmra.mxu0 %v552
      %v790 = vpop.f32.mrf.mxu0
      %v791 = vadd.f32 0.0, %v790
      %792 = vmatmul.f32.gmra.mxu0 %v555
      %v793 = vpop.f32.mrf.mxu0
      %v794 = vadd.f32 0.0, %v793
      %795 = vdwg.mxu0
      %796 = vmatpush.msra.mxu0 0.0
      %797 = vmatpush.msra.mxu0 0.0
      %798 = vmatpush.msra.mxu0 0.0
      %799 = vmatpush.msra.mxu0 0.0
      %800 = vmatpush.msra.mxu0 0.0
      %801 = vmatpush.msra.mxu0 0.0
      %802 = vmatpush.msra.mxu0 0.0
      %803 = vmatpush.msra.mxu0 0.0
      %804 = vmatpush.msra.mxu0 0.0
      %805 = vmatpush.msra.mxu0 0.0
      %806 = vmatpush.msra.mxu0 0.0
      %807 = vmatpush.msra.mxu0 0.0
      %808 = vmatpush.msra.mxu0 %v764
      %809 = vmatpush.msra.mxu0 %v763
      %810 = vmatpush.msra.mxu0 %v762
      %811 = vmatpush.msra.mxu0 %v761
      %812 = vmatmul.f32.gmra.mxu0 %v552
      %v813 = vpop.f32.mrf.mxu0
      %v814 = vadd.f32 0.0, %v813
      %815 = vmatmul.f32.gmra.mxu0 %v555
      %v816 = vpop.f32.mrf.mxu0
      %v817 = vadd.f32 0.0, %v816
      %818 = vdwg.mxu0
      %819 = vmatpush.msra.mxu0 0.0
      %820 = vmatpush.msra.mxu0 0.0
      %821 = vmatpush.msra.mxu0 0.0
      %822 = vmatpush.msra.mxu0 0.0
      %823 = vmatpush.msra.mxu0 0.0
      %824 = vmatpush.msra.mxu0 0.0
      %825 = vmatpush.msra.mxu0 0.0
      %826 = vmatpush.msra.mxu0 0.0
      %827 = vmatpush.msra.mxu0 0.0
      %828 = vmatpush.msra.mxu0 0.0
      %829 = vmatpush.msra.mxu0 0.0
      %830 = vmatpush.msra.mxu0 0.0
      %831 = vmatpush.msra.mxu0 %v768
      %832 = vmatpush.msra.mxu0 %v767
      %833 = vmatpush.msra.mxu0 %v766
      %834 = vmatpush.msra.mxu0 %v765
      %835 = vmatmul.f32.gmra.mxu0 %v552
      %v836 = vpop.f32.mrf.mxu0
      %v837 = vadd.f32 0.0, %v836
      %838 = vmatmul.f32.gmra.mxu0 %v555
      %v839 = vpop.f32.mrf.mxu0
      %v840 = vadd.f32 0.0, %v839
      %841 = vdwg.mxu0
      %842 = vmatpush.msra.mxu0 0.0
      %843 = vmatpush.msra.mxu0 0.0
      %844 = vmatpush.msra.mxu0 0.0
      %845 = vmatpush.msra.mxu0 0.0
      %846 = vmatpush.msra.mxu0 0.0
      %847 = vmatpush.msra.mxu0 0.0
      %848 = vmatpush.msra.mxu0 0.0
      %849 = vmatpush.msra.mxu0 0.0
      %850 = vmatpush.msra.mxu0 0.0
      %851 = vmatpush.msra.mxu0 0.0
      %852 = vmatpush.msra.mxu0 0.0
      %853 = vmatpush.msra.mxu0 0.0
      %854 = vmatpush.msra.mxu0 %v772
      %855 = vmatpush.msra.mxu0 %v771
      %856 = vmatpush.msra.mxu0 %v770
      %857 = vmatpush.msra.mxu0 %v769
      %858 = vmatmul.f32.gmra.mxu0 %v552
      %v859 = vpop.f32.mrf.mxu0
      %v860 = vadd.f32 0.0, %v859
      %861 = vmatmul.f32.gmra.mxu0 %v555
      %v862 = vpop.f32.mrf.mxu0
      %v863 = vadd.f32 0.0, %v862
      %864 = vdwg.mxu0
      %vm865 = vcmask 64512
      %v867 = vsel %vm865, %v575, 0
      %v870 = vsel %vm865, %v578, 0
      %v873 = vsel %vm865, %v683, 0
      %v876 = vsel %vm865, %v686, 0
      %878 = vmatpush.xpose.msra.mxu0 0.0
      %879 = vmatpush.xpose.msra.mxu0 0.0
      %880 = vmatpush.xpose.msra.mxu0 0.0
      %881 = vmatpush.xpose.msra.mxu0 0.0
      %882 = vmatpush.xpose.msra.mxu0 0.0
      %883 = vmatpush.xpose.msra.mxu0 0.0
      %884 = vmatpush.xpose.msra.mxu0 0.0
      %885 = vmatpush.xpose.msra.mxu0 0.0
      %886 = vmatpush.xpose.msra.mxu0 0.0
      %887 = vmatpush.xpose.msra.mxu0 0.0
      %888 = vmatpush.xpose.msra.mxu0 0.0
      %889 = vmatpush.xpose.msra.mxu0 0.0
      %890 = vmatpush.xpose.msra.mxu0 0.0
      %891 = vmatpush.xpose.msra.mxu0 0.0
      %892 = vmatpush.xpose.msra.mxu0 %v876
      %893 = vmatpush.xpose.msra.mxu0 %v873
      %894 = vmatmul.f32.gmra.mxu0 %v867
      %v895 = vpop.f32.mrf.mxu0
      %v896 = vadd.f32 0.0, %v895
      %897 = vmatmul.f32.gmra.mxu0 %v870
      %v898 = vpop.f32.mrf.mxu0
      %v899 = vadd.f32 0.0, %v898
      %900 = vdwg.mxu0
      %v902 = vsel %vm865, %v598, 0
      %v905 = vsel %vm865, %v601, 0
      %v908 = vsel %vm865, %v706, 0
      %v911 = vsel %vm865, %v709, 0
      %913 = vmatpush.xpose.msra.mxu0 0.0
      %914 = vmatpush.xpose.msra.mxu0 0.0
      %915 = vmatpush.xpose.msra.mxu0 0.0
      %916 = vmatpush.xpose.msra.mxu0 0.0
      %917 = vmatpush.xpose.msra.mxu0 0.0
      %918 = vmatpush.xpose.msra.mxu0 0.0
      %919 = vmatpush.xpose.msra.mxu0 0.0
      %920 = vmatpush.xpose.msra.mxu0 0.0
      %921 = vmatpush.xpose.msra.mxu0 0.0
      %922 = vmatpush.xpose.msra.mxu0 0.0
      %923 = vmatpush.xpose.msra.mxu0 0.0
      %924 = vmatpush.xpose.msra.mxu0 0.0
      %925 = vmatpush.xpose.msra.mxu0 0.0
      %926 = vmatpush.xpose.msra.mxu0 0.0
      %927 = vmatpush.xpose.msra.mxu0 %v911
      %928 = vmatpush.xpose.msra.mxu0 %v908
      %929 = vmatmul.f32.gmra.mxu0 %v902
      %v930 = vpop.f32.mrf.mxu0
      %v931 = vadd.f32 0.0, %v930
      %932 = vmatmul.f32.gmra.mxu0 %v905
      %v933 = vpop.f32.mrf.mxu0
      %v934 = vadd.f32 0.0, %v933
      %935 = vdwg.mxu0
      %v937 = vsel %vm865, %v621, 0
      %v940 = vsel %vm865, %v624, 0
      %v943 = vsel %vm865, %v729, 0
      %v946 = vsel %vm865, %v732, 0
      %948 = vmatpush.xpose.msra.mxu0 0.0
      %949 = vmatpush.xpose.msra.mxu0 0.0
      %950 = vmatpush.xpose.msra.mxu0 0.0
      %951 = vmatpush.xpose.msra.mxu0 0.0
      %952 = vmatpush.xpose.msra.mxu0 0.0
      %953 = vmatpush.xpose.msra.mxu0 0.0
      %954 = vmatpush.xpose.msra.mxu0 0.0
      %955 = vmatpush.xpose.msra.mxu0 0.0
      %956 = vmatpush.xpose.msra.mxu0 0.0
      %957 = vmatpush.xpose.msra.mxu0 0.0
      %958 = vmatpush.xpose.msra.mxu0 0.0
      %959 = vmatpush.xpose.msra.mxu0 0.0
      %960 = vmatpush.xpose.msra.mxu0 0.0
      %961 = vmatpush.xpose.msra.mxu0 0.0
      %962 = vmatpush.xpose.msra.mxu0 %v946
      %963 = vmatpush.xpose.msra.mxu0 %v943
      %964 = vmatmul.f32.gmra.mxu0 %v937
      %v965 = vpop.f32.mrf.mxu0
      %v966 = vadd.f32 0.0, %v965
      %967 = vmatmul.f32.gmra.mxu0 %v940
      %v968 = vpop.f32.mrf.mxu0
      %v969 = vadd.f32 0.0, %v968
      %970 = vdwg.mxu0
      %v972 = vsel %vm865, %v644, 0
      %v975 = vsel %vm865, %v647, 0
      %v978 = vsel %vm865, %v752, 0
      %v981 = vsel %vm865, %v755, 0
      %983 = vmatpush.xpose.msra.mxu0 0.0
      %984 = vmatpush.xpose.msra.mxu0 0.0
      %985 = vmatpush.xpose.msra.mxu0 0.0
      %986 = vmatpush.xpose.msra.mxu0 0.0
      %987 = vmatpush.xpose.msra.mxu0 0.0
      %988 = vmatpush.xpose.msra.mxu0 0.0
      %989 = vmatpush.xpose.msra.mxu0 0.0
      %990 = vmatpush.xpose.msra.mxu0 0.0
      %991 = vmatpush.xpose.msra.mxu0 0.0
      %992 = vmatpush.xpose.msra.mxu0 0.0
      %993 = vmatpush.xpose.msra.mxu0 0.0
      %994 = vmatpush.xpose.msra.mxu0 0.0
      %995 = vmatpush.xpose.msra.mxu0 0.0
      %996 = vmatpush.xpose.msra.mxu0 0.0
      %997 = vmatpush.xpose.msra.mxu0 %v981
      %998 = vmatpush.xpose.msra.mxu0 %v978
      %999 = vmatmul.f32.gmra.mxu0 %v972
      %v1000 = vpop.f32.mrf.mxu0
      %v1001 = vadd.f32 0.0, %v1000
      %1002 = vmatmul.f32.gmra.mxu0 %v975
      %v1003 = vpop.f32.mrf.mxu0
      %v1004 = vadd.f32 0.0, %v1003
      %1005 = vdwg.mxu0
      %vm1006 = vcmask 72704
      %v1007 = vsel %vm1006, %v896, -inf
      %1008 = vmax.xlane.f32.xlu0 %v1007
      %v1009 = vpop.xlane.xlu0 %1008
      %vm1010 = vcmask 65536
      %v1011 = vsel %vm1010, %v899, -inf
      %1012 = vmax.xlane.f32.xlu0 %v1011
      %v1013 = vpop.xlane.xlu0 %1012
      %v1014 = vsel %vm1006, %v931, -inf
      %1015 = vmax.xlane.f32.xlu0 %v1014
      %v1016 = vpop.xlane.xlu0 %1015
      %v1017 = vsel %vm1010, %v934, -inf
      %1018 = vmax.xlane.f32.xlu0 %v1017
      %v1019 = vpop.xlane.xlu0 %1018
      %v1020 = vsel %vm1006, %v966, -inf
      %1021 = vmax.xlane.f32.xlu0 %v1020
      %v1022 = vpop.xlane.xlu0 %1021
      %v1023 = vsel %vm1010, %v969, -inf
      %1024 = vmax.xlane.f32.xlu0 %v1023
      %v1025 = vpop.xlane.xlu0 %1024
      %v1026 = vsel %vm1006, %v1001, -inf
      %1027 = vmax.xlane.f32.xlu0 %v1026
      %v1028 = vpop.xlane.xlu0 %1027
      %v1029 = vsel %vm1010, %v1004, -inf
      %1030 = vmax.xlane.f32.xlu0 %v1029
      %v1031 = vpop.xlane.xlu0 %1030
      %v1032 = vsub.f32 %v896, %v1009
      %v1033 = vsub.f32 %v899, %v1013
      %v1034 = vsub.f32 %v931, %v1016
      %v1035 = vsub.f32 %v934, %v1019
      %v1036 = vsub.f32 %v966, %v1022
      %v1037 = vsub.f32 %v969, %v1025
      %v1038 = vsub.f32 %v1001, %v1028
      %v1039 = vsub.f32 %v1004, %v1031
      %v1040 = vmul.f32 %v1032, 1.442695
      %v1041 = vpow.pop %v1040
      %v1042 = vmul.f32 %v1033, 1.442695
      %v1043 = vpow.pop %v1042
      %v1044 = vmul.f32 %v1034, 1.442695
      %v1045 = vpow.pop %v1044
      %v1046 = vmul.f32 %v1035, 1.442695
      %v1047 = vpow.pop %v1046
      %v1048 = vmul.f32 %v1036, 1.442695
      %v1049 = vpow.pop %v1048
      %v1050 = vmul.f32 %v1037, 1.442695
      %v1051 = vpow.pop %v1050
      %v1052 = vmul.f32 %v1038, 1.442695
      %v1053 = vpow.pop %v1052
      %v1054 = vmul.f32 %v1039, 1.442695
      %v1055 = vpow.pop %v1054
      %v1056 = vsel %vm1006, %v1041, 0.0
      %1057 = vadd.xlane.f32.xlu0 %v1056
      %v1058 = vpop.xlane.xlu0 %1057
      %v1059 = vsel %vm1010, %v1043, 0.0
      %1060 = vadd.xlane.f32.xlu0 %v1059
      %v1061 = vpop.xlane.xlu0 %1060
      %v1062 = vsel %vm1006, %v1045, 0.0
      %1063 = vadd.xlane.f32.xlu0 %v1062
      %v1064 = vpop.xlane.xlu0 %1063
      %v1065 = vsel %vm1010, %v1047, 0.0
      %1066 = vadd.xlane.f32.xlu0 %v1065
      %v1067 = vpop.xlane.xlu0 %1066
      %v1068 = vsel %vm1006, %v1049, 0.0
      %1069 = vadd.xlane.f32.xlu0 %v1068
      %v1070 = vpop.xlane.xlu0 %1069
      %v1071 = vsel %vm1010, %v1051, 0.0
      %1072 = vadd.xlane.f32.xlu0 %v1071
      %v1073 = vpop.xlane.xlu0 %1072
      %v1074 = vsel %vm1006, %v1053, 0.0
      %1075 = vadd.xlane.f32.xlu0 %v1074
      %v1076 = vpop.xlane.xlu0 %1075
      %v1077 = vsel %vm1010, %v1055, 0.0
      %1078 = vadd.xlane.f32.xlu0 %v1077
      %v1079 = vpop.xlane.xlu0 %1078
      %v1080 = vrcp.pop %v1058
      %v1081 = vrcp.pop %v1061
      %v1082 = vrcp.pop %v1064
      %v1083 = vrcp.pop %v1067
      %v1084 = vrcp.pop %v1070
      %v1085 = vrcp.pop %v1073
      %v1086 = vrcp.pop %v1076
      %v1087 = vrcp.pop %v1079
      %v1088 = vmul.f32 %v1041, %v1080
      %v1089 = vmul.f32 %v1043, %v1081
      %v1090 = vmul.f32 %v1045, %v1082
      %v1091 = vmul.f32 %v1047, %v1083
      %v1092 = vmul.f32 %v1049, %v1084
      %v1093 = vmul.f32 %v1051, %v1085
      %v1094 = vmul.f32 %v1053, %v1086
      %v1095 = vmul.f32 %v1055, %v1087
      %v1097 = vsel %vm1006, %v1088, 0
      %v1100 = vsel %vm1006, %v1089, 0
      %vm1102 = vcmask 1040384
      %v1104 = vsel %vm1102, %v794, 0
      %1106 = vmatpush.msra.mxu0 0.0
      %1107 = vmatpush.msra.mxu0 0.0
      %1108 = vmatpush.msra.mxu0 0.0
      %1109 = vmatpush.msra.mxu0 0.0
      %1110 = vmatpush.msra.mxu0 0.0
      %1111 = vmatpush.msra.mxu0 0.0
      %1112 = vmatpush.msra.mxu0 0.0
      %1113 = vmatpush.msra.mxu0 0.0
      %1114 = vmatpush.msra.mxu0 0.0
      %1115 = vmatpush.msra.mxu0 0.0
      %1116 = vmatpush.msra.mxu0 0.0
      %1117 = vmatpush.msra.mxu0 0.0
      %1118 = vmatpush.msra.mxu0 0.0
      %1119 = vmatpush.msra.mxu0 0.0
      %1120 = vmatpush.msra.mxu0 %v1104
      %1121 = vmatpush.msra.mxu0 %v791
      %1122 = vmatmul.f32.gmra.mxu0 %v1097
      %v1123 = vpop.f32.mrf.mxu0
      %v1124 = vadd.f32 0.0, %v1123
      %1125 = vmatmul.f32.gmra.mxu0 %v1100
      %v1126 = vpop.f32.mrf.mxu0
      %v1127 = vadd.f32 0.0, %v1126
      %1128 = vdwg.mxu0
      %v1130 = vsel %vm1006, %v1090, 0
      %v1133 = vsel %vm1006, %v1091, 0
      %v1136 = vsel %vm1102, %v817, 0
      %1138 = vmatpush.msra.mxu0 0.0
      %1139 = vmatpush.msra.mxu0 0.0
      %1140 = vmatpush.msra.mxu0 0.0
      %1141 = vmatpush.msra.mxu0 0.0
      %1142 = vmatpush.msra.mxu0 0.0
      %1143 = vmatpush.msra.mxu0 0.0
      %1144 = vmatpush.msra.mxu0 0.0
      %1145 = vmatpush.msra.mxu0 0.0
      %1146 = vmatpush.msra.mxu0 0.0
      %1147 = vmatpush.msra.mxu0 0.0
      %1148 = vmatpush.msra.mxu0 0.0
      %1149 = vmatpush.msra.mxu0 0.0
      %1150 = vmatpush.msra.mxu0 0.0
      %1151 = vmatpush.msra.mxu0 0.0
      %1152 = vmatpush.msra.mxu0 %v1136
      %1153 = vmatpush.msra.mxu0 %v814
      %1154 = vmatmul.f32.gmra.mxu0 %v1130
      %v1155 = vpop.f32.mrf.mxu0
      %v1156 = vadd.f32 0.0, %v1155
      %1157 = vmatmul.f32.gmra.mxu0 %v1133
      %v1158 = vpop.f32.mrf.mxu0
      %v1159 = vadd.f32 0.0, %v1158
      %1160 = vdwg.mxu0
      %v1162 = vsel %vm1006, %v1092, 0
      %v1165 = vsel %vm1006, %v1093, 0
      %v1168 = vsel %vm1102, %v840, 0
      %1170 = vmatpush.msra.mxu0 0.0
      %1171 = vmatpush.msra.mxu0 0.0
      %1172 = vmatpush.msra.mxu0 0.0
      %1173 = vmatpush.msra.mxu0 0.0
      %1174 = vmatpush.msra.mxu0 0.0
      %1175 = vmatpush.msra.mxu0 0.0
      %1176 = vmatpush.msra.mxu0 0.0
      %1177 = vmatpush.msra.mxu0 0.0
      %1178 = vmatpush.msra.mxu0 0.0
      %1179 = vmatpush.msra.mxu0 0.0
      %1180 = vmatpush.msra.mxu0 0.0
      %1181 = vmatpush.msra.mxu0 0.0
      %1182 = vmatpush.msra.mxu0 0.0
      %1183 = vmatpush.msra.mxu0 0.0
      %1184 = vmatpush.msra.mxu0 %v1168
      %1185 = vmatpush.msra.mxu0 %v837
      %1186 = vmatmul.f32.gmra.mxu0 %v1162
      %v1187 = vpop.f32.mrf.mxu0
      %v1188 = vadd.f32 0.0, %v1187
      %1189 = vmatmul.f32.gmra.mxu0 %v1165
      %v1190 = vpop.f32.mrf.mxu0
      %v1191 = vadd.f32 0.0, %v1190
      %1192 = vdwg.mxu0
      %v1194 = vsel %vm1006, %v1094, 0
      %v1197 = vsel %vm1006, %v1095, 0
      %v1200 = vsel %vm1102, %v863, 0
      %1202 = vmatpush.msra.mxu0 0.0
      %1203 = vmatpush.msra.mxu0 0.0
      %1204 = vmatpush.msra.mxu0 0.0
      %1205 = vmatpush.msra.mxu0 0.0
      %1206 = vmatpush.msra.mxu0 0.0
      %1207 = vmatpush.msra.mxu0 0.0
      %1208 = vmatpush.msra.mxu0 0.0
      %1209 = vmatpush.msra.mxu0 0.0
      %1210 = vmatpush.msra.mxu0 0.0
      %1211 = vmatpush.msra.mxu0 0.0
      %1212 = vmatpush.msra.mxu0 0.0
      %1213 = vmatpush.msra.mxu0 0.0
      %1214 = vmatpush.msra.mxu0 0.0
      %1215 = vmatpush.msra.mxu0 0.0
      %1216 = vmatpush.msra.mxu0 %v1200
      %1217 = vmatpush.msra.mxu0 %v860
      %1218 = vmatmul.f32.gmra.mxu0 %v1194
      %v1219 = vpop.f32.mrf.mxu0
      %v1220 = vadd.f32 0.0, %v1219
      %1221 = vmatmul.f32.gmra.mxu0 %v1197
      %v1222 = vpop.f32.mrf.mxu0
      %v1223 = vadd.f32 0.0, %v1222
      %1224 = vdwg.mxu0
      %v1225 = vld [vmem:[%s6] sm:$0xff]
      %v1226 = vld [vmem:[%s6 + $0x8] sm:$0xff]
      %v1227 = vld [vmem:[%s6 + $0x10] sm:$0xff]
      %v1228 = vld [vmem:[%s6 + $0x18] sm:$0xff]
      %v1230 = vsel %vm865, %v1124, 0
      %v1233 = vsel %vm865, %v1127, 0
      %1235 = vmatpush.msra.mxu0 0.0
      %1236 = vmatpush.msra.mxu0 0.0
      %1237 = vmatpush.msra.mxu0 0.0
      %1238 = vmatpush.msra.mxu0 0.0
      %1239 = vmatpush.msra.mxu0 0.0
      %1240 = vmatpush.msra.mxu0 0.0
      %1241 = vmatpush.msra.mxu0 0.0
      %1242 = vmatpush.msra.mxu0 0.0
      %1243 = vmatpush.msra.mxu0 0.0
      %1244 = vmatpush.msra.mxu0 0.0
      %1245 = vmatpush.msra.mxu0 0.0
      %1246 = vmatpush.msra.mxu0 0.0
      %1247 = vmatpush.msra.mxu0 0.0
      %1248 = vmatpush.msra.mxu0 0.0
      %1249 = vmatpush.msra.mxu0 0.0
      %1250 = vmatpush.msra.mxu0 %v1225
      %1251 = vmatmul.f32.gmra.mxu0 %v1230
      %v1252 = vpop.f32.mrf.mxu0
      %v1253 = vadd.f32 0.0, %v1252
      %1254 = vmatmul.f32.gmra.mxu0 %v1233
      %v1255 = vpop.f32.mrf.mxu0
      %v1256 = vadd.f32 0.0, %v1255
      %1257 = vdwg.mxu0
      %v1259 = vsel %vm865, %v1156, 0
      %v1262 = vsel %vm865, %v1159, 0
      %1264 = vmatpush.msra.mxu0 0.0
      %1265 = vmatpush.msra.mxu0 0.0
      %1266 = vmatpush.msra.mxu0 0.0
      %1267 = vmatpush.msra.mxu0 0.0
      %1268 = vmatpush.msra.mxu0 0.0
      %1269 = vmatpush.msra.mxu0 0.0
      %1270 = vmatpush.msra.mxu0 0.0
      %1271 = vmatpush.msra.mxu0 0.0
      %1272 = vmatpush.msra.mxu0 0.0
      %1273 = vmatpush.msra.mxu0 0.0
      %1274 = vmatpush.msra.mxu0 0.0
      %1275 = vmatpush.msra.mxu0 0.0
      %1276 = vmatpush.msra.mxu0 0.0
      %1277 = vmatpush.msra.mxu0 0.0
      %1278 = vmatpush.msra.mxu0 0.0
      %1279 = vmatpush.msra.mxu0 %v1226
      %1280 = vmatmul.f32.gmra.mxu0 %v1259
      %v1281 = vpop.f32.mrf.mxu0
      %v1282 = vadd.f32 0.0, %v1281
      %1283 = vmatmul.f32.gmra.mxu0 %v1262
      %v1284 = vpop.f32.mrf.mxu0
      %v1285 = vadd.f32 0.0, %v1284
      %1286 = vdwg.mxu0
      %v1288 = vsel %vm865, %v1188, 0
      %v1291 = vsel %vm865, %v1191, 0
      %1293 = vmatpush.msra.mxu0 0.0
      %1294 = vmatpush.msra.mxu0 0.0
      %1295 = vmatpush.msra.mxu0 0.0
      %1296 = vmatpush.msra.mxu0 0.0
      %1297 = vmatpush.msra.mxu0 0.0
      %1298 = vmatpush.msra.mxu0 0.0
      %1299 = vmatpush.msra.mxu0 0.0
      %1300 = vmatpush.msra.mxu0 0.0
      %1301 = vmatpush.msra.mxu0 0.0
      %1302 = vmatpush.msra.mxu0 0.0
      %1303 = vmatpush.msra.mxu0 0.0
      %1304 = vmatpush.msra.mxu0 0.0
      %1305 = vmatpush.msra.mxu0 0.0
      %1306 = vmatpush.msra.mxu0 0.0
      %1307 = vmatpush.msra.mxu0 0.0
      %1308 = vmatpush.msra.mxu0 %v1227
      %1309 = vmatmul.f32.gmra.mxu0 %v1288
      %v1310 = vpop.f32.mrf.mxu0
      %v1311 = vadd.f32 0.0, %v1310
      %1312 = vmatmul.f32.gmra.mxu0 %v1291
      %v1313 = vpop.f32.mrf.mxu0
      %v1314 = vadd.f32 0.0, %v1313
      %1315 = vdwg.mxu0
      %v1317 = vsel %vm865, %v1220, 0
      %v1320 = vsel %vm865, %v1223, 0
      %1322 = vmatpush.msra.mxu0 0.0
      %1323 = vmatpush.msra.mxu0 0.0
      %1324 = vmatpush.msra.mxu0 0.0
      %1325 = vmatpush.msra.mxu0 0.0
      %1326 = vmatpush.msra.mxu0 0.0
      %1327 = vmatpush.msra.mxu0 0.0
      %1328 = vmatpush.msra.mxu0 0.0
      %1329 = vmatpush.msra.mxu0 0.0
      %1330 = vmatpush.msra.mxu0 0.0
      %1331 = vmatpush.msra.mxu0 0.0
      %1332 = vmatpush.msra.mxu0 0.0
      %1333 = vmatpush.msra.mxu0 0.0
      %1334 = vmatpush.msra.mxu0 0.0
      %1335 = vmatpush.msra.mxu0 0.0
      %1336 = vmatpush.msra.mxu0 0.0
      %1337 = vmatpush.msra.mxu0 %v1228
      %1338 = vmatmul.f32.gmra.mxu0 %v1317
      %v1339 = vpop.f32.mrf.mxu0
      %v1340 = vadd.f32 0.0, %v1339
      %1341 = vmatmul.f32.gmra.mxu0 %v1320
      %v1342 = vpop.f32.mrf.mxu0
      %v1343 = vadd.f32 0.0, %v1342
      %1344 = vdwg.mxu0
      %v1345 = vsel %vm472, %v1253, 0.0
      %v1346 = vsel %vm472, %v1282, 0.0
      %v1347 = vadd.f32 %v1345, %v1346
      %v1348 = vsel %vm472, %v1311, 0.0
      %v1349 = vadd.f32 %v1347, %v1348
      %v1350 = vsel %vm472, %v1340, 0.0
      %v1351 = vadd.f32 %v1349, %v1350
      %v1352 = vsel %vm476, %v1256, 0.0
      %v1353 = vsel %vm476, %v1285, 0.0
      %v1354 = vadd.f32 %v1352, %v1353
      %v1355 = vsel %vm476, %v1314, 0.0
      %v1356 = vadd.f32 %v1354, %v1355
      %v1357 = vsel %vm476, %v1343, 0.0
      %v1358 = vadd.f32 %v1356, %v1357
      %v1359 = vld [vmem:[%s7] sm:$0x1]
      %v1361 = vperm.slane %v1359, 0
      %v1363 = vadd.f32 %v1351, %v1361
      %v1364 = vadd.f32 %v1358, %v1361
      %v1365 = vadd.f32 %v1363, %v468
      %v1366 = vadd.f32 %v1364, %v469
      %v1367 = vld [vmem:[%s8] sm:$0x1]
      %v1368 = vld [vmem:[%s9] sm:$0x1]
      %v1369 = vsel %vm472, %v1365, 0.0
      %1370 = vadd.xlane.f32.xlu0 %v1369
      %v1371 = vpop.xlane.xlu0 %1370
      %v1372 = vsel %vm476, %v1366, 0.0
      %1373 = vadd.xlane.f32.xlu0 %v1372
      %v1374 = vpop.xlane.xlu0 %1373
      %v1375 = vmul.f32 %v1371, %v486
      %v1376 = vmul.f32 %v1374, %v486
      %v1377 = vsub.f32 %v1365, %v1375
      %v1378 = vsub.f32 %v1366, %v1376
      %v1379 = vmul.f32 %v1377, %v1377
      %v1380 = vmul.f32 %v1378, %v1378
      %v1381 = vsel %vm472, %v1379, 0.0
      %1382 = vadd.xlane.f32.xlu0 %v1381
      %v1383 = vpop.xlane.xlu0 %1382
      %v1384 = vsel %vm476, %v1380, 0.0
      %1385 = vadd.xlane.f32.xlu0 %v1384
      %v1386 = vpop.xlane.xlu0 %1385
      %v1387 = vmul.f32 %v1383, %v486
      %v1388 = vmul.f32 %v1386, %v486
      %v1389 = vadd.f32 %v1387, 1e-05
      %v1390 = vadd.f32 %v1388, 1e-05
      %v1391 = vrsqrt.pop %v1389
      %v1392 = vmul.f32 %v1391, %v1389
      %v1393 = vmul.f32 %v1392, %v1391
      %v1394 = vmul.f32 0.5, %v1393
      %v1395 = vsub.f32 1.5, %v1394
      %v1396 = vmul.f32 %v1391, %v1395
      %vm1397 = vweird.f32 %v1389
      %vm1398 = vweird.f32 %v1391
      %vm1399 = vmor %vm1397, %vm1398
      %v1400 = vsel %vm1399, %v1391, %v1396
      %v1401 = vrsqrt.pop %v1390
      %v1402 = vmul.f32 %v1401, %v1390
      %v1403 = vmul.f32 %v1402, %v1401
      %v1404 = vmul.f32 0.5, %v1403
      %v1405 = vsub.f32 1.5, %v1404
      %v1406 = vmul.f32 %v1401, %v1405
      %vm1407 = vweird.f32 %v1390
      %vm1408 = vweird.f32 %v1401
      %vm1409 = vmor %vm1407, %vm1408
      %v1410 = vsel %vm1409, %v1401, %v1406
      %v1411 = vmul.f32 %v1377, %v1400
      %v1412 = vmul.f32 %v1378, %v1410
      %v1414 = vperm.slane %v1367, 0
      %v1416 = vmul.f32 %v1411, %v1414
      %v1417 = vmul.f32 %v1412, %v1414
      %v1419 = vperm.slane %v1368, 0
      %v1421 = vadd.f32 %v1416, %v1419
      %v1422 = vadd.f32 %v1417, %v1419
      %v1423 = vld [vmem:[%s10] sm:$0xff]
      %v1424 = vld [vmem:[%s10 + $0x8] sm:$0xff]
      %v1425 = vld [vmem:[%s10 + $0x10] sm:$0xff]
      %v1426 = vld [vmem:[%s10 + $0x18] sm:$0xff]
      %v1427 = vld [vmem:[%s11] sm:$0x1]
      %v1429 = vperm.slane %v1427, 0
      %v1432 = vsel %vm472, %v1421, 0
      %v1435 = vsel %vm472, %v1422, 0
      %1437 = vmatpush.msra.mxu0 0.0
      %1438 = vmatpush.msra.mxu0 0.0
      %1439 = vmatpush.msra.mxu0 0.0
      %1440 = vmatpush.msra.mxu0 0.0
      %1441 = vmatpush.msra.mxu0 0.0
      %1442 = vmatpush.msra.mxu0 0.0
      %1443 = vmatpush.msra.mxu0 0.0
      %1444 = vmatpush.msra.mxu0 0.0
      %1445 = vmatpush.msra.mxu0 0.0
      %1446 = vmatpush.msra.mxu0 0.0
      %1447 = vmatpush.msra.mxu0 0.0
      %1448 = vmatpush.msra.mxu0 0.0
      %1449 = vmatpush.msra.mxu0 %v1426
      %1450 = vmatpush.msra.mxu0 %v1425
      %1451 = vmatpush.msra.mxu0 %v1424
      %1452 = vmatpush.msra.mxu0 %v1423
      %1453 = vmatmul.f32.gmra.mxu0 %v1432
      %v1454 = vpop.f32.mrf.mxu0
      %v1455 = vadd.f32 %v1429, %v1454
      %1456 = vmatmul.f32.gmra.mxu0 %v1435
      %v1457 = vpop.f32.mrf.mxu0
      %v1458 = vadd.f32 %v1429, %v1457
      %1459 = vdwg.mxu0
      %v1460 = vmul.f32 %v1455, 0.5
      %v1461 = vmul.f32 %v1458, 0.5
      %v1462 = vmul.f32 %v1455, 0.70710677
      %v1463 = vmul.f32 %v1458, 0.70710677
      %v1464 = vmul.f32 %v1462, %v1462
      %v1465 = vmin.f32 16.0, %v1464
      %v1466 = vmul.f32 %v1465, 2.1237322e-06
      %v1467 = vadd.f32 %v1466, 0.00028619796
      %v1468 = vmul.f32 %v1465, %v1467
      %v1469 = vadd.f32 %v1468, 0.0036580483
      %v1470 = vmul.f32 %v1465, %v1469
      %v1471 = vadd.f32 %v1470, 0.05243302
      %v1472 = vmul.f32 %v1465, %v1471
      %v1473 = vadd.f32 %v1472, 0.18741608
      %v1474 = vmul.f32 %v1465, %v1473
      %v1475 = vadd.f32 %v1474, 1.1283791
      %v1476 = vmul.f32 %v1462, %v1475
      %v1477 = vmul.f32 %v1465, 3.8918573e-05
      %v1478 = vadd.f32 %v1477, 0.001143296
      %v1479 = vmul.f32 %v1465, %v1478
      %v1480 = vadd.f32 %v1479, 0.014752088
      %v1481 = vmul.f32 %v1465, %v1480
      %v1482 = vadd.f32 %v1481, 0.112945676
      %v1483 = vmul.f32 %v1465, %v1482
      %v1484 = vadd.f32 %v1483, 0.4994258
      %v1485 = vmul.f32 %v1465, %v1484
      %v1486 = vadd.f32 %v1485, 1.0
      %v1487 = vrcp.pop %v1486
      %v1488 = vmul.f32 %v1486, %v1487
      %v1489 = vsub.f32 1.0, %v1488
      %v1490 = vmul.f32 %v1487, %v1489
      %v1491 = vadd.f32 %v1487, %v1490
      %vm1492 = vweird.f32 %v1486
      %vm1493 = vweird.f32 %v1487
      %vm1494 = vmor %vm1492, %vm1493
      %v1495 = vsel %vm1494, %v1487, %v1491
      %v1496 = vand.u32 2147483647, %v1486
      %vm1497 = vcmp.eq.f32.partialorder %v1496, 8.507059e+37
      %v1498 = vand.u32 %v1486, 2147483648
      %v1499 = vor.u32 1.1754944e-38, %v1498
      %v1500 = vsel %vm1497, %v1499, %v1495
      %v1501 = vmul.f32 %v1476, %v1500
      %v1502 = vmin.f32 %v1501, 1.0
      %v1503 = vmax.f32 %v1502, -1.0
      %v1504 = vmul.f32 %v1463, %v1463
      %v1505 = vmin.f32 16.0, %v1504
      %v1506 = vmul.f32 %v1505, 2.1237322e-06
      %v1507 = vadd.f32 %v1506, 0.00028619796
      %v1508 = vmul.f32 %v1505, %v1507
      %v1509 = vadd.f32 %v1508, 0.0036580483
      %v1510 = vmul.f32 %v1505, %v1509
      %v1511 = vadd.f32 %v1510, 0.05243302
      %v1512 = vmul.f32 %v1505, %v1511
      %v1513 = vadd.f32 %v1512, 0.18741608
      %v1514 = vmul.f32 %v1505, %v1513
      %v1515 = vadd.f32 %v1514, 1.1283791
      %v1516 = vmul.f32 %v1463, %v1515
      %v1517 = vmul.f32 %v1505, 3.8918573e-05
      %v1518 = vadd.f32 %v1517, 0.001143296
      %v1519 = vmul.f32 %v1505, %v1518
      %v1520 = vadd.f32 %v1519, 0.014752088
      %v1521 = vmul.f32 %v1505, %v1520
      %v1522 = vadd.f32 %v1521, 0.112945676
      %v1523 = vmul.f32 %v1505, %v1522
      %v1524 = vadd.f32 %v1523, 0.4994258
      %v1525 = vmul.f32 %v1505, %v1524
      %v1526 = vadd.f32 %v1525, 1.0
      %v1527 = vrcp.pop %v1526
      %v1528 = vmul.f32 %v1526, %v1527
      %v1529 = vsub.f32 1.0, %v1528
      %v1530 = vmul.f32 %v1527, %v1529
      %v1531 = vadd.f32 %v1527, %v1530
      %vm1532 = vweird.f32 %v1526
      %vm1533 = vweird.f32 %v1527
      %vm1534 = vmor %vm1532, %vm1533
      %v1535 = vsel %vm1534, %v1527, %v1531
      %v1536 = vand.u32 2147483647, %v1526
      %vm1537 = vcmp.eq.f32.partialorder %v1536, 8.507059e+37
      %v1538 = vand.u32 %v1526, 2147483648
      %v1539 = vor.u32 1.1754944e-38, %v1538
      %v1540 = vsel %vm1537, %v1539, %v1535
      %v1541 = vmul.f32 %v1516, %v1540
      %v1542 = vmin.f32 %v1541, 1.0
      %v1543 = vmax.f32 %v1542, -1.0
      %v1544 = vadd.f32 %v1503, 1.0
      %v1545 = vadd.f32 %v1543, 1.0
      %v1546 = vmul.f32 %v1460, %v1544
      %v1547 = vmul.f32 %v1461, %v1545
      %v1548 = vld [vmem:[%s12] sm:$0xff]
      %v1549 = vld [vmem:[%s12 + $0x8] sm:$0xff]
      %v1550 = vld [vmem:[%s12 + $0x10] sm:$0xff]
      %v1551 = vld [vmem:[%s12 + $0x18] sm:$0xff]
      %v1552 = vld [vmem:[%s12 + $0x20] sm:$0xff]
      %v1553 = vld [vmem:[%s12 + $0x28] sm:$0xff]
      %v1554 = vld [vmem:[%s12 + $0x30] sm:$0xff]
      %v1555 = vld [vmem:[%s12 + $0x38] sm:$0xff]
      %v1556 = vld [vmem:[%s13] sm:$0x1]
      %v1558 = vperm.slane %v1556, 0
      %vm1560 = vcmask 523264
      %v1562 = vsel %vm1560, %v1546, 0
      %v1565 = vsel %vm1560, %v1547, 0
      %1567 = vmatpush.msra.mxu0 0.0
      %1568 = vmatpush.msra.mxu0 0.0
      %1569 = vmatpush.msra.mxu0 0.0
      %1570 = vmatpush.msra.mxu0 0.0
      %1571 = vmatpush.msra.mxu0 0.0
      %1572 = vmatpush.msra.mxu0 0.0
      %1573 = vmatpush.msra.mxu0 0.0
      %1574 = vmatpush.msra.mxu0 0.0
      %1575 = vmatpush.msra.mxu0 %v1555
      %1576 = vmatpush.msra.mxu0 %v1554
      %1577 = vmatpush.msra.mxu0 %v1553
      %1578 = vmatpush.msra.mxu0 %v1552
      %1579 = vmatpush.msra.mxu0 %v1551
      %1580 = vmatpush.msra.mxu0 %v1550
      %1581 = vmatpush.msra.mxu0 %v1549
      %1582 = vmatpush.msra.mxu0 %v1548
      %1583 = vmatmul.f32.gmra.mxu0 %v1562
      %v1584 = vpop.f32.mrf.mxu0
      %v1585 = vadd.f32 %v1558, %v1584
      %1586 = vmatmul.f32.gmra.mxu0 %v1565
      %v1587 = vpop.f32.mrf.mxu0
      %v1588 = vadd.f32 %v1558, %v1587
      %1589 = vdwg.mxu0
      %v1590 = vadd.f32 %v1585, %v1365
      %v1591 = vadd.f32 %v1588, %v1366
      %s1592 = scalar_lea.vmem %s1, 1
      %v1593 = vld [vmem:[%s1592] sm:$0x1]
      %s1594 = scalar_lea.vmem %s2, 1
      %v1595 = vld [vmem:[%s1594] sm:$0x1]
      %v1596 = vsel %vm472, %v1590, 0.0
      %1597 = vadd.xlane.f32.xlu0 %v1596
      %v1598 = vpop.xlane.xlu0 %1597
      %v1599 = vsel %vm476, %v1591, 0.0
      %1600 = vadd.xlane.f32.xlu0 %v1599
      %v1601 = vpop.xlane.xlu0 %1600
      %v1602 = vmul.f32 %v1598, %v486
      %v1603 = vmul.f32 %v1601, %v486
      %v1604 = vsub.f32 %v1590, %v1602
      %v1605 = vsub.f32 %v1591, %v1603
      %v1606 = vmul.f32 %v1604, %v1604
      %v1607 = vmul.f32 %v1605, %v1605
      %v1608 = vsel %vm472, %v1606, 0.0
      %1609 = vadd.xlane.f32.xlu0 %v1608
      %v1610 = vpop.xlane.xlu0 %1609
      %v1611 = vsel %vm476, %v1607, 0.0
      %1612 = vadd.xlane.f32.xlu0 %v1611
      %v1613 = vpop.xlane.xlu0 %1612
      %v1614 = vmul.f32 %v1610, %v486
      %v1615 = vmul.f32 %v1613, %v486
      %v1616 = vadd.f32 %v1614, 1e-05
      %v1617 = vadd.f32 %v1615, 1e-05
      %v1618 = vrsqrt.pop %v1616
      %v1619 = vmul.f32 %v1618, %v1616
      %v1620 = vmul.f32 %v1619, %v1618
      %v1621 = vmul.f32 0.5, %v1620
      %v1622 = vsub.f32 1.5, %v1621
      %v1623 = vmul.f32 %v1618, %v1622
      %vm1624 = vweird.f32 %v1616
      %vm1625 = vweird.f32 %v1618
      %vm1626 = vmor %vm1624, %vm1625
      %v1627 = vsel %vm1626, %v1618, %v1623
      %v1628 = vrsqrt.pop %v1617
      %v1629 = vmul.f32 %v1628, %v1617
      %v1630 = vmul.f32 %v1629, %v1628
      %v1631 = vmul.f32 0.5, %v1630
      %v1632 = vsub.f32 1.5, %v1631
      %v1633 = vmul.f32 %v1628, %v1632
      %vm1634 = vweird.f32 %v1617
      %vm1635 = vweird.f32 %v1628
      %vm1636 = vmor %vm1634, %vm1635
      %v1637 = vsel %vm1636, %v1628, %v1633
      %v1638 = vmul.f32 %v1604, %v1627
      %v1639 = vmul.f32 %v1605, %v1637
      %v1641 = vperm.slane %v1593, 0
      %v1643 = vmul.f32 %v1638, %v1641
      %v1644 = vmul.f32 %v1639, %v1641
      %v1646 = vperm.slane %v1595, 0
      %v1648 = vadd.f32 %v1643, %v1646
      %v1649 = vadd.f32 %v1644, %v1646
      %s1650 = scalar_lea.vmem %s3, 128
      %v1651 = vld [vmem:[%s1650] sm:$0xff]
      %v1652 = vld [vmem:[%s1650 + $0x8] sm:$0xff]
      %v1653 = vld [vmem:[%s1650 + $0x10] sm:$0xff]
      %v1654 = vld [vmem:[%s1650 + $0x18] sm:$0xff]
      %v1655 = vld [vmem:[%s1650 + $0x20] sm:$0xff]
      %v1656 = vld [vmem:[%s1650 + $0x28] sm:$0xff]
      %v1657 = vld [vmem:[%s1650 + $0x30] sm:$0xff]
      %v1658 = vld [vmem:[%s1650 + $0x38] sm:$0xff]
      %v1659 = vld [vmem:[%s1650 + $0x40] sm:$0xff]
      %v1660 = vld [vmem:[%s1650 + $0x48] sm:$0xff]
      %v1661 = vld [vmem:[%s1650 + $0x50] sm:$0xff]
      %v1662 = vld [vmem:[%s1650 + $0x58] sm:$0xff]
      %v1663 = vld [vmem:[%s1650 + $0x60] sm:$0xff]
      %v1664 = vld [vmem:[%s1650 + $0x68] sm:$0xff]
      %v1665 = vld [vmem:[%s1650 + $0x70] sm:$0xff]
      %v1666 = vld [vmem:[%s1650 + $0x78] sm:$0xff]
      %v1668 = vsel %vm472, %v1648, 0
      %v1671 = vsel %vm472, %v1649, 0
      %1673 = vmatpush.msra.mxu0 0.0
      %1674 = vmatpush.msra.mxu0 0.0
      %1675 = vmatpush.msra.mxu0 0.0
      %1676 = vmatpush.msra.mxu0 0.0
      %1677 = vmatpush.msra.mxu0 0.0
      %1678 = vmatpush.msra.mxu0 0.0
      %1679 = vmatpush.msra.mxu0 0.0
      %1680 = vmatpush.msra.mxu0 0.0
      %1681 = vmatpush.msra.mxu0 0.0
      %1682 = vmatpush.msra.mxu0 0.0
      %1683 = vmatpush.msra.mxu0 0.0
      %1684 = vmatpush.msra.mxu0 0.0
      %1685 = vmatpush.msra.mxu0 %v1654
      %1686 = vmatpush.msra.mxu0 %v1653
      %1687 = vmatpush.msra.mxu0 %v1652
      %1688 = vmatpush.msra.mxu0 %v1651
      %1689 = vmatmul.f32.gmra.mxu0 %v1668
      %v1690 = vpop.f32.mrf.mxu0
      %v1691 = vadd.f32 0.0, %v1690
      %1692 = vmatmul.f32.gmra.mxu0 %v1671
      %v1693 = vpop.f32.mrf.mxu0
      %v1694 = vadd.f32 0.0, %v1693
      %1695 = vdwg.mxu0
      %1696 = vmatpush.msra.mxu0 0.0
      %1697 = vmatpush.msra.mxu0 0.0
      %1698 = vmatpush.msra.mxu0 0.0
      %1699 = vmatpush.msra.mxu0 0.0
      %1700 = vmatpush.msra.mxu0 0.0
      %1701 = vmatpush.msra.mxu0 0.0
      %1702 = vmatpush.msra.mxu0 0.0
      %1703 = vmatpush.msra.mxu0 0.0
      %1704 = vmatpush.msra.mxu0 0.0
      %1705 = vmatpush.msra.mxu0 0.0
      %1706 = vmatpush.msra.mxu0 0.0
      %1707 = vmatpush.msra.mxu0 0.0
      %1708 = vmatpush.msra.mxu0 %v1658
      %1709 = vmatpush.msra.mxu0 %v1657
      %1710 = vmatpush.msra.mxu0 %v1656
      %1711 = vmatpush.msra.mxu0 %v1655
      %1712 = vmatmul.f32.gmra.mxu0 %v1668
      %v1713 = vpop.f32.mrf.mxu0
      %v1714 = vadd.f32 0.0, %v1713
      %1715 = vmatmul.f32.gmra.mxu0 %v1671
      %v1716 = vpop.f32.mrf.mxu0
      %v1717 = vadd.f32 0.0, %v1716
      %1718 = vdwg.mxu0
      %1719 = vmatpush.msra.mxu0 0.0
      %1720 = vmatpush.msra.mxu0 0.0
      %1721 = vmatpush.msra.mxu0 0.0
      %1722 = vmatpush.msra.mxu0 0.0
      %1723 = vmatpush.msra.mxu0 0.0
      %1724 = vmatpush.msra.mxu0 0.0
      %1725 = vmatpush.msra.mxu0 0.0
      %1726 = vmatpush.msra.mxu0 0.0
      %1727 = vmatpush.msra.mxu0 0.0
      %1728 = vmatpush.msra.mxu0 0.0
      %1729 = vmatpush.msra.mxu0 0.0
      %1730 = vmatpush.msra.mxu0 0.0
      %1731 = vmatpush.msra.mxu0 %v1662
      %1732 = vmatpush.msra.mxu0 %v1661
      %1733 = vmatpush.msra.mxu0 %v1660
      %1734 = vmatpush.msra.mxu0 %v1659
      %1735 = vmatmul.f32.gmra.mxu0 %v1668
      %v1736 = vpop.f32.mrf.mxu0
      %v1737 = vadd.f32 0.0, %v1736
      %1738 = vmatmul.f32.gmra.mxu0 %v1671
      %v1739 = vpop.f32.mrf.mxu0
      %v1740 = vadd.f32 0.0, %v1739
      %1741 = vdwg.mxu0
      %1742 = vmatpush.msra.mxu0 0.0
      %1743 = vmatpush.msra.mxu0 0.0
      %1744 = vmatpush.msra.mxu0 0.0
      %1745 = vmatpush.msra.mxu0 0.0
      %1746 = vmatpush.msra.mxu0 0.0
      %1747 = vmatpush.msra.mxu0 0.0
      %1748 = vmatpush.msra.mxu0 0.0
      %1749 = vmatpush.msra.mxu0 0.0
      %1750 = vmatpush.msra.mxu0 0.0
      %1751 = vmatpush.msra.mxu0 0.0
      %1752 = vmatpush.msra.mxu0 0.0
      %1753 = vmatpush.msra.mxu0 0.0
      %1754 = vmatpush.msra.mxu0 %v1666
      %1755 = vmatpush.msra.mxu0 %v1665
      %1756 = vmatpush.msra.mxu0 %v1664
      %1757 = vmatpush.msra.mxu0 %v1663
      %1758 = vmatmul.f32.gmra.mxu0 %v1668
      %v1759 = vpop.f32.mrf.mxu0
      %v1760 = vadd.f32 0.0, %v1759
      %1761 = vmatmul.f32.gmra.mxu0 %v1671
      %v1762 = vpop.f32.mrf.mxu0
      %v1763 = vadd.f32 0.0, %v1762
      %1764 = vdwg.mxu0
      %s1765 = scalar_lea.vmem %s4, 128
      %v1766 = vld [vmem:[%s1765] sm:$0xff]
      %v1767 = vld [vmem:[%s1765 + $0x8] sm:$0xff]
      %v1768 = vld [vmem:[%s1765 + $0x10] sm:$0xff]
      %v1769 = vld [vmem:[%s1765 + $0x18] sm:$0xff]
      %v1770 = vld [vmem:[%s1765 + $0x20] sm:$0xff]
      %v1771 = vld [vmem:[%s1765 + $0x28] sm:$0xff]
      %v1772 = vld [vmem:[%s1765 + $0x30] sm:$0xff]
      %v1773 = vld [vmem:[%s1765 + $0x38] sm:$0xff]
      %v1774 = vld [vmem:[%s1765 + $0x40] sm:$0xff]
      %v1775 = vld [vmem:[%s1765 + $0x48] sm:$0xff]
      %v1776 = vld [vmem:[%s1765 + $0x50] sm:$0xff]
      %v1777 = vld [vmem:[%s1765 + $0x58] sm:$0xff]
      %v1778 = vld [vmem:[%s1765 + $0x60] sm:$0xff]
      %v1779 = vld [vmem:[%s1765 + $0x68] sm:$0xff]
      %v1780 = vld [vmem:[%s1765 + $0x70] sm:$0xff]
      %v1781 = vld [vmem:[%s1765 + $0x78] sm:$0xff]
      %1782 = vmatpush.msra.mxu0 0.0
      %1783 = vmatpush.msra.mxu0 0.0
      %1784 = vmatpush.msra.mxu0 0.0
      %1785 = vmatpush.msra.mxu0 0.0
      %1786 = vmatpush.msra.mxu0 0.0
      %1787 = vmatpush.msra.mxu0 0.0
      %1788 = vmatpush.msra.mxu0 0.0
      %1789 = vmatpush.msra.mxu0 0.0
      %1790 = vmatpush.msra.mxu0 0.0
      %1791 = vmatpush.msra.mxu0 0.0
      %1792 = vmatpush.msra.mxu0 0.0
      %1793 = vmatpush.msra.mxu0 0.0
      %1794 = vmatpush.msra.mxu0 %v1769
      %1795 = vmatpush.msra.mxu0 %v1768
      %1796 = vmatpush.msra.mxu0 %v1767
      %1797 = vmatpush.msra.mxu0 %v1766
      %1798 = vmatmul.f32.gmra.mxu0 %v1668
      %v1799 = vpop.f32.mrf.mxu0
      %v1800 = vadd.f32 0.0, %v1799
      %1801 = vmatmul.f32.gmra.mxu0 %v1671
      %v1802 = vpop.f32.mrf.mxu0
      %v1803 = vadd.f32 0.0, %v1802
      %1804 = vdwg.mxu0
      %1805 = vmatpush.msra.mxu0 0.0
      %1806 = vmatpush.msra.mxu0 0.0
      %1807 = vmatpush.msra.mxu0 0.0
      %1808 = vmatpush.msra.mxu0 0.0
      %1809 = vmatpush.msra.mxu0 0.0
      %1810 = vmatpush.msra.mxu0 0.0
      %1811 = vmatpush.msra.mxu0 0.0
      %1812 = vmatpush.msra.mxu0 0.0
      %1813 = vmatpush.msra.mxu0 0.0
      %1814 = vmatpush.msra.mxu0 0.0
      %1815 = vmatpush.msra.mxu0 0.0
      %1816 = vmatpush.msra.mxu0 0.0
      %1817 = vmatpush.msra.mxu0 %v1773
      %1818 = vmatpush.msra.mxu0 %v1772
      %1819 = vmatpush.msra.mxu0 %v1771
      %1820 = vmatpush.msra.mxu0 %v1770
      %1821 = vmatmul.f32.gmra.mxu0 %v1668
      %v1822 = vpop.f32.mrf.mxu0
      %v1823 = vadd.f32 0.0, %v1822
      %1824 = vmatmul.f32.gmra.mxu0 %v1671
      %v1825 = vpop.f32.mrf.mxu0
      %v1826 = vadd.f32 0.0, %v1825
      %1827 = vdwg.mxu0
      %1828 = vmatpush.msra.mxu0 0.0
      %1829 = vmatpush.msra.mxu0 0.0
      %1830 = vmatpush.msra.mxu0 0.0
      %1831 = vmatpush.msra.mxu0 0.0
      %1832 = vmatpush.msra.mxu0 0.0
      %1833 = vmatpush.msra.mxu0 0.0
      %1834 = vmatpush.msra.mxu0 0.0
      %1835 = vmatpush.msra.mxu0 0.0
      %1836 = vmatpush.msra.mxu0 0.0
      %1837 = vmatpush.msra.mxu0 0.0
      %1838 = vmatpush.msra.mxu0 0.0
      %1839 = vmatpush.msra.mxu0 0.0
      %1840 = vmatpush.msra.mxu0 %v1777
      %1841 = vmatpush.msra.mxu0 %v1776
      %1842 = vmatpush.msra.mxu0 %v1775
      %1843 = vmatpush.msra.mxu0 %v1774
      %1844 = vmatmul.f32.gmra.mxu0 %v1668
      %v1845 = vpop.f32.mrf.mxu0
      %v1846 = vadd.f32 0.0, %v1845
      %1847 = vmatmul.f32.gmra.mxu0 %v1671
      %v1848 = vpop.f32.mrf.mxu0
      %v1849 = vadd.f32 0.0, %v1848
      %1850 = vdwg.mxu0
      %1851 = vmatpush.msra.mxu0 0.0
      %1852 = vmatpush.msra.mxu0 0.0
      %1853 = vmatpush.msra.mxu0 0.0
      %1854 = vmatpush.msra.mxu0 0.0
      %1855 = vmatpush.msra.mxu0 0.0
      %1856 = vmatpush.msra.mxu0 0.0
      %1857 = vmatpush.msra.mxu0 0.0
      %1858 = vmatpush.msra.mxu0 0.0
      %1859 = vmatpush.msra.mxu0 0.0
      %1860 = vmatpush.msra.mxu0 0.0
      %1861 = vmatpush.msra.mxu0 0.0
      %1862 = vmatpush.msra.mxu0 0.0
      %1863 = vmatpush.msra.mxu0 %v1781
      %1864 = vmatpush.msra.mxu0 %v1780
      %1865 = vmatpush.msra.mxu0 %v1779
      %1866 = vmatpush.msra.mxu0 %v1778
      %1867 = vmatmul.f32.gmra.mxu0 %v1668
      %v1868 = vpop.f32.mrf.mxu0
      %v1869 = vadd.f32 0.0, %v1868
      %1870 = vmatmul.f32.gmra.mxu0 %v1671
      %v1871 = vpop.f32.mrf.mxu0
      %v1872 = vadd.f32 0.0, %v1871
      %1873 = vdwg.mxu0
      %s1874 = scalar_lea.vmem %s5, 128
      %v1875 = vld [vmem:[%s1874] sm:$0xff]
      %v1876 = vld [vmem:[%s1874 + $0x8] sm:$0xff]
      %v1877 = vld [vmem:[%s1874 + $0x10] sm:$0xff]
      %v1878 = vld [vmem:[%s1874 + $0x18] sm:$0xff]
      %v1879 = vld [vmem:[%s1874 + $0x20] sm:$0xff]
      %v1880 = vld [vmem:[%s1874 + $0x28] sm:$0xff]
      %v1881 = vld [vmem:[%s1874 + $0x30] sm:$0xff]
      %v1882 = vld [vmem:[%s1874 + $0x38] sm:$0xff]
      %v1883 = vld [vmem:[%s1874 + $0x40] sm:$0xff]
      %v1884 = vld [vmem:[%s1874 + $0x48] sm:$0xff]
      %v1885 = vld [vmem:[%s1874 + $0x50] sm:$0xff]
      %v1886 = vld [vmem:[%s1874 + $0x58] sm:$0xff]
      %v1887 = vld [vmem:[%s1874 + $0x60] sm:$0xff]
      %v1888 = vld [vmem:[%s1874 + $0x68] sm:$0xff]
      %v1889 = vld [vmem:[%s1874 + $0x70] sm:$0xff]
      %v1890 = vld [vmem:[%s1874 + $0x78] sm:$0xff]
      %1891 = vmatpush.msra.mxu0 0.0
      %1892 = vmatpush.msra.mxu0 0.0
      %1893 = vmatpush.msra.mxu0 0.0
      %1894 = vmatpush.msra.mxu0 0.0
      %1895 = vmatpush.msra.mxu0 0.0
      %1896 = vmatpush.msra.mxu0 0.0
      %1897 = vmatpush.msra.mxu0 0.0
      %1898 = vmatpush.msra.mxu0 0.0
      %1899 = vmatpush.msra.mxu0 0.0
      %1900 = vmatpush.msra.mxu0 0.0
      %1901 = vmatpush.msra.mxu0 0.0
      %1902 = vmatpush.msra.mxu0 0.0
      %1903 = vmatpush.msra.mxu0 %v1878
      %1904 = vmatpush.msra.mxu0 %v1877
      %1905 = vmatpush.msra.mxu0 %v1876
      %1906 = vmatpush.msra.mxu0 %v1875
      %1907 = vmatmul.f32.gmra.mxu0 %v1668
      %v1908 = vpop.f32.mrf.mxu0
      %v1909 = vadd.f32 0.0, %v1908
      %1910 = vmatmul.f32.gmra.mxu0 %v1671
      %v1911 = vpop.f32.mrf.mxu0
      %v1912 = vadd.f32 0.0, %v1911
      %1913 = vdwg.mxu0
      %1914 = vmatpush.msra.mxu0 0.0
      %1915 = vmatpush.msra.mxu0 0.0
      %1916 = vmatpush.msra.mxu0 0.0
      %1917 = vmatpush.msra.mxu0 0.0
      %1918 = vmatpush.msra.mxu0 0.0
      %1919 = vmatpush.msra.mxu0 0.0
      %1920 = vmatpush.msra.mxu0 0.0
      %1921 = vmatpush.msra.mxu0 0.0
      %1922 = vmatpush.msra.mxu0 0.0
      %1923 = vmatpush.msra.mxu0 0.0
      %1924 = vmatpush.msra.mxu0 0.0
      %1925 = vmatpush.msra.mxu0 0.0
      %1926 = vmatpush.msra.mxu0 %v1882
      %1927 = vmatpush.msra.mxu0 %v1881
      %1928 = vmatpush.msra.mxu0 %v1880
      %1929 = vmatpush.msra.mxu0 %v1879
      %1930 = vmatmul.f32.gmra.mxu0 %v1668
      %v1931 = vpop.f32.mrf.mxu0
      %v1932 = vadd.f32 0.0, %v1931
      %1933 = vmatmul.f32.gmra.mxu0 %v1671
      %v1934 = vpop.f32.mrf.mxu0
      %v1935 = vadd.f32 0.0, %v1934
      %1936 = vdwg.mxu0
      %1937 = vmatpush.msra.mxu0 0.0
      %1938 = vmatpush.msra.mxu0 0.0
      %1939 = vmatpush.msra.mxu0 0.0
      %1940 = vmatpush.msra.mxu0 0.0
      %1941 = vmatpush.msra.mxu0 0.0
      %1942 = vmatpush.msra.mxu0 0.0
      %1943 = vmatpush.msra.mxu0 0.0
      %1944 = vmatpush.msra.mxu0 0.0
      %1945 = vmatpush.msra.mxu0 0.0
      %1946 = vmatpush.msra.mxu0 0.0
      %1947 = vmatpush.msra.mxu0 0.0
      %1948 = vmatpush.msra.mxu0 0.0
      %1949 = vmatpush.msra.mxu0 %v1886
      %1950 = vmatpush.msra.mxu0 %v1885
      %1951 = vmatpush.msra.mxu0 %v1884
      %1952 = vmatpush.msra.mxu0 %v1883
      %1953 = vmatmul.f32.gmra.mxu0 %v1668
      %v1954 = vpop.f32.mrf.mxu0
      %v1955 = vadd.f32 0.0, %v1954
      %1956 = vmatmul.f32.gmra.mxu0 %v1671
      %v1957 = vpop.f32.mrf.mxu0
      %v1958 = vadd.f32 0.0, %v1957
      %1959 = vdwg.mxu0
      %1960 = vmatpush.msra.mxu0 0.0
      %1961 = vmatpush.msra.mxu0 0.0
      %1962 = vmatpush.msra.mxu0 0.0
      %1963 = vmatpush.msra.mxu0 0.0
      %1964 = vmatpush.msra.mxu0 0.0
      %1965 = vmatpush.msra.mxu0 0.0
      %1966 = vmatpush.msra.mxu0 0.0
      %1967 = vmatpush.msra.mxu0 0.0
      %1968 = vmatpush.msra.mxu0 0.0
      %1969 = vmatpush.msra.mxu0 0.0
      %1970 = vmatpush.msra.mxu0 0.0
      %1971 = vmatpush.msra.mxu0 0.0
      %1972 = vmatpush.msra.mxu0 %v1890
      %1973 = vmatpush.msra.mxu0 %v1889
      %1974 = vmatpush.msra.mxu0 %v1888
      %1975 = vmatpush.msra.mxu0 %v1887
      %1976 = vmatmul.f32.gmra.mxu0 %v1668
      %v1977 = vpop.f32.mrf.mxu0
      %v1978 = vadd.f32 0.0, %v1977
      %1979 = vmatmul.f32.gmra.mxu0 %v1671
      %v1980 = vpop.f32.mrf.mxu0
      %v1981 = vadd.f32 0.0, %v1980
      %1982 = vdwg.mxu0
      %v1984 = vsel %vm865, %v1691, 0
      %v1987 = vsel %vm865, %v1694, 0
      %v1990 = vsel %vm865, %v1800, 0
      %v1993 = vsel %vm865, %v1803, 0
      %1995 = vmatpush.xpose.msra.mxu0 0.0
      %1996 = vmatpush.xpose.msra.mxu0 0.0
      %1997 = vmatpush.xpose.msra.mxu0 0.0
      %1998 = vmatpush.xpose.msra.mxu0 0.0
      %1999 = vmatpush.xpose.msra.mxu0 0.0
      %2000 = vmatpush.xpose.msra.mxu0 0.0
      %2001 = vmatpush.xpose.msra.mxu0 0.0
      %2002 = vmatpush.xpose.msra.mxu0 0.0
      %2003 = vmatpush.xpose.msra.mxu0 0.0
      %2004 = vmatpush.xpose.msra.mxu0 0.0
      %2005 = vmatpush.xpose.msra.mxu0 0.0
      %2006 = vmatpush.xpose.msra.mxu0 0.0
      %2007 = vmatpush.xpose.msra.mxu0 0.0
      %2008 = vmatpush.xpose.msra.mxu0 0.0
      %2009 = vmatpush.xpose.msra.mxu0 %v1993
      %2010 = vmatpush.xpose.msra.mxu0 %v1990
      %2011 = vmatmul.f32.gmra.mxu0 %v1984
      %v2012 = vpop.f32.mrf.mxu0
      %v2013 = vadd.f32 0.0, %v2012
      %2014 = vmatmul.f32.gmra.mxu0 %v1987
      %v2015 = vpop.f32.mrf.mxu0
      %v2016 = vadd.f32 0.0, %v2015
      %2017 = vdwg.mxu0
      %v2019 = vsel %vm865, %v1714, 0
      %v2022 = vsel %vm865, %v1717, 0
      %v2025 = vsel %vm865, %v1823, 0
      %v2028 = vsel %vm865, %v1826, 0
      %2030 = vmatpush.xpose.msra.mxu0 0.0
      %2031 = vmatpush.xpose.msra.mxu0 0.0
      %2032 = vmatpush.xpose.msra.mxu0 0.0
      %2033 = vmatpush.xpose.msra.mxu0 0.0
      %2034 = vmatpush.xpose.msra.mxu0 0.0
      %2035 = vmatpush.xpose.msra.mxu0 0.0
      %2036 = vmatpush.xpose.msra.mxu0 0.0
      %2037 = vmatpush.xpose.msra.mxu0 0.0
      %2038 = vmatpush.xpose.msra.mxu0 0.0
      %2039 = vmatpush.xpose.msra.mxu0 0.0
      %2040 = vmatpush.xpose.msra.mxu0 0.0
      %2041 = vmatpush.xpose.msra.mxu0 0.0
      %2042 = vmatpush.xpose.msra.mxu0 0.0
      %2043 = vmatpush.xpose.msra.mxu0 0.0
      %2044 = vmatpush.xpose.msra.mxu0 %v2028
      %2045 = vmatpush.xpose.msra.mxu0 %v2025
      %2046 = vmatmul.f32.gmra.mxu0 %v2019
      %v2047 = vpop.f32.mrf.mxu0
      %v2048 = vadd.f32 0.0, %v2047
      %2049 = vmatmul.f32.gmra.mxu0 %v2022
      %v2050 = vpop.f32.mrf.mxu0
      %v2051 = vadd.f32 0.0, %v2050
      %2052 = vdwg.mxu0
      %v2054 = vsel %vm865, %v1737, 0
      %v2057 = vsel %vm865, %v1740, 0
      %v2060 = vsel %vm865, %v1846, 0
      %v2063 = vsel %vm865, %v1849, 0
      %2065 = vmatpush.xpose.msra.mxu0 0.0
      %2066 = vmatpush.xpose.msra.mxu0 0.0
      %2067 = vmatpush.xpose.msra.mxu0 0.0
      %2068 = vmatpush.xpose.msra.mxu0 0.0
      %2069 = vmatpush.xpose.msra.mxu0 0.0
      %2070 = vmatpush.xpose.msra.mxu0 0.0
      %2071 = vmatpush.xpose.msra.mxu0 0.0
      %2072 = vmatpush.xpose.msra.mxu0 0.0
      %2073 = vmatpush.xpose.msra.mxu0 0.0
      %2074 = vmatpush.xpose.msra.mxu0 0.0
      %2075 = vmatpush.xpose.msra.mxu0 0.0
      %2076 = vmatpush.xpose.msra.mxu0 0.0
      %2077 = vmatpush.xpose.msra.mxu0 0.0
      %2078 = vmatpush.xpose.msra.mxu0 0.0
      %2079 = vmatpush.xpose.msra.mxu0 %v2063
      %2080 = vmatpush.xpose.msra.mxu0 %v2060
      %2081 = vmatmul.f32.gmra.mxu0 %v2054
      %v2082 = vpop.f32.mrf.mxu0
      %v2083 = vadd.f32 0.0, %v2082
      %2084 = vmatmul.f32.gmra.mxu0 %v2057
      %v2085 = vpop.f32.mrf.mxu0
      %v2086 = vadd.f32 0.0, %v2085
      %2087 = vdwg.mxu0
      %v2089 = vsel %vm865, %v1760, 0
      %v2092 = vsel %vm865, %v1763, 0
      %v2095 = vsel %vm865, %v1869, 0
      %v2098 = vsel %vm865, %v1872, 0
      %2100 = vmatpush.xpose.msra.mxu0 0.0
      %2101 = vmatpush.xpose.msra.mxu0 0.0
      %2102 = vmatpush.xpose.msra.mxu0 0.0
      %2103 = vmatpush.xpose.msra.mxu0 0.0
      %2104 = vmatpush.xpose.msra.mxu0 0.0
      %2105 = vmatpush.xpose.msra.mxu0 0.0
      %2106 = vmatpush.xpose.msra.mxu0 0.0
      %2107 = vmatpush.xpose.msra.mxu0 0.0
      %2108 = vmatpush.xpose.msra.mxu0 0.0
      %2109 = vmatpush.xpose.msra.mxu0 0.0
      %2110 = vmatpush.xpose.msra.mxu0 0.0
      %2111 = vmatpush.xpose.msra.mxu0 0.0
      %2112 = vmatpush.xpose.msra.mxu0 0.0
      %2113 = vmatpush.xpose.msra.mxu0 0.0
      %2114 = vmatpush.xpose.msra.mxu0 %v2098
      %2115 = vmatpush.xpose.msra.mxu0 %v2095
      %2116 = vmatmul.f32.gmra.mxu0 %v2089
      %v2117 = vpop.f32.mrf.mxu0
      %v2118 = vadd.f32 0.0, %v2117
      %2119 = vmatmul.f32.gmra.mxu0 %v2092
      %v2120 = vpop.f32.mrf.mxu0
      %v2121 = vadd.f32 0.0, %v2120
      %2122 = vdwg.mxu0
      %v2123 = vsel %vm1006, %v2013, -inf
      %2124 = vmax.xlane.f32.xlu0 %v2123
      %v2125 = vpop.xlane.xlu0 %2124
      %v2126 = vsel %vm1010, %v2016, -inf
      %2127 = vmax.xlane.f32.xlu0 %v2126
      %v2128 = vpop.xlane.xlu0 %2127
      %v2129 = vsel %vm1006, %v2048, -inf
      %2130 = vmax.xlane.f32.xlu0 %v2129
      %v2131 = vpop.xlane.xlu0 %2130
      %v2132 = vsel %vm1010, %v2051, -inf
      %2133 = vmax.xlane.f32.xlu0 %v2132
      %v2134 = vpop.xlane.xlu0 %2133
      %v2135 = vsel %vm1006, %v2083, -inf
      %2136 = vmax.xlane.f32.xlu0 %v2135
      %v2137 = vpop.xlane.xlu0 %2136
      %v2138 = vsel %vm1010, %v2086, -inf
      %2139 = vmax.xlane.f32.xlu0 %v2138
      %v2140 = vpop.xlane.xlu0 %2139
      %v2141 = vsel %vm1006, %v2118, -inf
      %2142 = vmax.xlane.f32.xlu0 %v2141
      %v2143 = vpop.xlane.xlu0 %2142
      %v2144 = vsel %vm1010, %v2121, -inf
      %2145 = vmax.xlane.f32.xlu0 %v2144
      %v2146 = vpop.xlane.xlu0 %2145
      %v2147 = vsub.f32 %v2013, %v2125
      %v2148 = vsub.f32 %v2016, %v2128
      %v2149 = vsub.f32 %v2048, %v2131
      %v2150 = vsub.f32 %v2051, %v2134
      %v2151 = vsub.f32 %v2083, %v2137
      %v2152 = vsub.f32 %v2086, %v2140
      %v2153 = vsub.f32 %v2118, %v2143
      %v2154 = vsub.f32 %v2121, %v2146
      %v2155 = vmul.f32 %v2147, 1.442695
      %v2156 = vpow.pop %v2155
      %v2157 = vmul.f32 %v2148, 1.442695
      %v2158 = vpow.pop %v2157
      %v2159 = vmul.f32 %v2149, 1.442695
      %v2160 = vpow.pop %v2159
      %v2161 = vmul.f32 %v2150, 1.442695
      %v2162 = vpow.pop %v2161
      %v2163 = vmul.f32 %v2151, 1.442695
      %v2164 = vpow.pop %v2163
      %v2165 = vmul.f32 %v2152, 1.442695
      %v2166 = vpow.pop %v2165
      %v2167 = vmul.f32 %v2153, 1.442695
      %v2168 = vpow.pop %v2167
      %v2169 = vmul.f32 %v2154, 1.442695
      %v2170 = vpow.pop %v2169
      %v2171 = vsel %vm1006, %v2156, 0.0
      %2172 = vadd.xlane.f32.xlu0 %v2171
      %v2173 = vpop.xlane.xlu0 %2172
      %v2174 = vsel %vm1010, %v2158, 0.0
      %2175 = vadd.xlane.f32.xlu0 %v2174
      %v2176 = vpop.xlane.xlu0 %2175
      %v2177 = vsel %vm1006, %v2160, 0.0
      %2178 = vadd.xlane.f32.xlu0 %v2177
      %v2179 = vpop.xlane.xlu0 %2178
      %v2180 = vsel %vm1010, %v2162, 0.0
      %2181 = vadd.xlane.f32.xlu0 %v2180
      %v2182 = vpop.xlane.xlu0 %2181
      %v2183 = vsel %vm1006, %v2164, 0.0
      %2184 = vadd.xlane.f32.xlu0 %v2183
      %v2185 = vpop.xlane.xlu0 %2184
      %v2186 = vsel %vm1010, %v2166, 0.0
      %2187 = vadd.xlane.f32.xlu0 %v2186
      %v2188 = vpop.xlane.xlu0 %2187
      %v2189 = vsel %vm1006, %v2168, 0.0
      %2190 = vadd.xlane.f32.xlu0 %v2189
      %v2191 = vpop.xlane.xlu0 %2190
      %v2192 = vsel %vm1010, %v2170, 0.0
      %2193 = vadd.xlane.f32.xlu0 %v2192
      %v2194 = vpop.xlane.xlu0 %2193
      %v2195 = vrcp.pop %v2173
      %v2196 = vrcp.pop %v2176
      %v2197 = vrcp.pop %v2179
      %v2198 = vrcp.pop %v2182
      %v2199 = vrcp.pop %v2185
      %v2200 = vrcp.pop %v2188
      %v2201 = vrcp.pop %v2191
      %v2202 = vrcp.pop %v2194
      %v2203 = vmul.f32 %v2156, %v2195
      %v2204 = vmul.f32 %v2158, %v2196
      %v2205 = vmul.f32 %v2160, %v2197
      %v2206 = vmul.f32 %v2162, %v2198
      %v2207 = vmul.f32 %v2164, %v2199
      %v2208 = vmul.f32 %v2166, %v2200
      %v2209 = vmul.f32 %v2168, %v2201
      %v2210 = vmul.f32 %v2170, %v2202
      %v2212 = vsel %vm1006, %v2203, 0
      %v2215 = vsel %vm1006, %v2204, 0
      %v2218 = vsel %vm1102, %v1912, 0
      %2220 = vmatpush.msra.mxu0 0.0
      %2221 = vmatpush.msra.mxu0 0.0
      %2222 = vmatpush.msra.mxu0 0.0
      %2223 = vmatpush.msra.mxu0 0.0
      %2224 = vmatpush.msra.mxu0 0.0
      %2225 = vmatpush.msra.mxu0 0.0
      %2226 = vmatpush.msra.mxu0 0.0
      %2227 = vmatpush.msra.mxu0 0.0
      %2228 = vmatpush.msra.mxu0 0.0
      %2229 = vmatpush.msra.mxu0 0.0
      %2230 = vmatpush.msra.mxu0 0.0
      %2231 = vmatpush.msra.mxu0 0.0
      %2232 = vmatpush.msra.mxu0 0.0
      %2233 = vmatpush.msra.mxu0 0.0
      %2234 = vmatpush.msra.mxu0 %v2218
      %2235 = vmatpush.msra.mxu0 %v1909
      %2236 = vmatmul.f32.gmra.mxu0 %v2212
      %v2237 = vpop.f32.mrf.mxu0
      %v2238 = vadd.f32 0.0, %v2237
      %2239 = vmatmul.f32.gmra.mxu0 %v2215
      %v2240 = vpop.f32.mrf.mxu0
      %v2241 = vadd.f32 0.0, %v2240
      %2242 = vdwg.mxu0
      %v2244 = vsel %vm1006, %v2205, 0
      %v2247 = vsel %vm1006, %v2206, 0
      %v2250 = vsel %vm1102, %v1935, 0
      %2252 = vmatpush.msra.mxu0 0.0
      %2253 = vmatpush.msra.mxu0 0.0
      %2254 = vmatpush.msra.mxu0 0.0
      %2255 = vmatpush.msra.mxu0 0.0
      %2256 = vmatpush.msra.mxu0 0.0
      %2257 = vmatpush.msra.mxu0 0.0
      %2258 = vmatpush.msra.mxu0 0.0
      %2259 = vmatpush.msra.mxu0 0.0
      %2260 = vmatpush.msra.mxu0 0.0
      %2261 = vmatpush.msra.mxu0 0.0
      %2262 = vmatpush.msra.mxu0 0.0
      %2263 = vmatpush.msra.mxu0 0.0
      %2264 = vmatpush.msra.mxu0 0.0
      %2265 = vmatpush.msra.mxu0 0.0
      %2266 = vmatpush.msra.mxu0 %v2250
      %2267 = vmatpush.msra.mxu0 %v1932
      %2268 = vmatmul.f32.gmra.mxu0 %v2244
      %v2269 = vpop.f32.mrf.mxu0
      %v2270 = vadd.f32 0.0, %v2269
      %2271 = vmatmul.f32.gmra.mxu0 %v2247
      %v2272 = vpop.f32.mrf.mxu0
      %v2273 = vadd.f32 0.0, %v2272
      %2274 = vdwg.mxu0
      %v2276 = vsel %vm1006, %v2207, 0
      %v2279 = vsel %vm1006, %v2208, 0
      %v2282 = vsel %vm1102, %v1958, 0
      %2284 = vmatpush.msra.mxu0 0.0
      %2285 = vmatpush.msra.mxu0 0.0
      %2286 = vmatpush.msra.mxu0 0.0
      %2287 = vmatpush.msra.mxu0 0.0
      %2288 = vmatpush.msra.mxu0 0.0
      %2289 = vmatpush.msra.mxu0 0.0
      %2290 = vmatpush.msra.mxu0 0.0
      %2291 = vmatpush.msra.mxu0 0.0
      %2292 = vmatpush.msra.mxu0 0.0
      %2293 = vmatpush.msra.mxu0 0.0
      %2294 = vmatpush.msra.mxu0 0.0
      %2295 = vmatpush.msra.mxu0 0.0
      %2296 = vmatpush.msra.mxu0 0.0
      %2297 = vmatpush.msra.mxu0 0.0
      %2298 = vmatpush.msra.mxu0 %v2282
      %2299 = vmatpush.msra.mxu0 %v1955
      %2300 = vmatmul.f32.gmra.mxu0 %v2276
      %v2301 = vpop.f32.mrf.mxu0
      %v2302 = vadd.f32 0.0, %v2301
      %2303 = vmatmul.f32.gmra.mxu0 %v2279
      %v2304 = vpop.f32.mrf.mxu0
      %v2305 = vadd.f32 0.0, %v2304
      %2306 = vdwg.mxu0
      %v2308 = vsel %vm1006, %v2209, 0
      %v2311 = vsel %vm1006, %v2210, 0
      %v2314 = vsel %vm1102, %v1981, 0
      %2316 = vmatpush.msra.mxu0 0.0
      %2317 = vmatpush.msra.mxu0 0.0
      %2318 = vmatpush.msra.mxu0 0.0
      %2319 = vmatpush.msra.mxu0 0.0
      %2320 = vmatpush.msra.mxu0 0.0
      %2321 = vmatpush.msra.mxu0 0.0
      %2322 = vmatpush.msra.mxu0 0.0
      %2323 = vmatpush.msra.mxu0 0.0
      %2324 = vmatpush.msra.mxu0 0.0
      %2325 = vmatpush.msra.mxu0 0.0
      %2326 = vmatpush.msra.mxu0 0.0
      %2327 = vmatpush.msra.mxu0 0.0
      %2328 = vmatpush.msra.mxu0 0.0
      %2329 = vmatpush.msra.mxu0 0.0
      %2330 = vmatpush.msra.mxu0 %v2314
      %2331 = vmatpush.msra.mxu0 %v1978
      %2332 = vmatmul.f32.gmra.mxu0 %v2308
      %v2333 = vpop.f32.mrf.mxu0
      %v2334 = vadd.f32 0.0, %v2333
      %2335 = vmatmul.f32.gmra.mxu0 %v2311
      %v2336 = vpop.f32.mrf.mxu0
      %v2337 = vadd.f32 0.0, %v2336
      %2338 = vdwg.mxu0
      %s2339 = scalar_lea.vmem %s6, 32
      %v2340 = vld [vmem:[%s2339] sm:$0xff]
      %v2341 = vld [vmem:[%s2339 + $0x8] sm:$0xff]
      %v2342 = vld [vmem:[%s2339 + $0x10] sm:$0xff]
      %v2343 = vld [vmem:[%s2339 + $0x18] sm:$0xff]
      %v2345 = vsel %vm865, %v2238, 0
      %v2348 = vsel %vm865, %v2241, 0
      %2350 = vmatpush.msra.mxu0 0.0
      %2351 = vmatpush.msra.mxu0 0.0
      %2352 = vmatpush.msra.mxu0 0.0
      %2353 = vmatpush.msra.mxu0 0.0
      %2354 = vmatpush.msra.mxu0 0.0
      %2355 = vmatpush.msra.mxu0 0.0
      %2356 = vmatpush.msra.mxu0 0.0
      %2357 = vmatpush.msra.mxu0 0.0
      %2358 = vmatpush.msra.mxu0 0.0
      %2359 = vmatpush.msra.mxu0 0.0
      %2360 = vmatpush.msra.mxu0 0.0
      %2361 = vmatpush.msra.mxu0 0.0
      %2362 = vmatpush.msra.mxu0 0.0
      %2363 = vmatpush.msra.mxu0 0.0
      %2364 = vmatpush.msra.mxu0 0.0
      %2365 = vmatpush.msra.mxu0 %v2340
      %2366 = vmatmul.f32.gmra.mxu0 %v2345
      %v2367 = vpop.f32.mrf.mxu0
      %v2368 = vadd.f32 0.0, %v2367
      %2369 = vmatmul.f32.gmra.mxu0 %v2348
      %v2370 = vpop.f32.mrf.mxu0
      %v2371 = vadd.f32 0.0, %v2370
      %2372 = vdwg.mxu0
      %v2374 = vsel %vm865, %v2270, 0
      %v2377 = vsel %vm865, %v2273, 0
      %2379 = vmatpush.msra.mxu0 0.0
      %2380 = vmatpush.msra.mxu0 0.0
      %2381 = vmatpush.msra.mxu0 0.0
      %2382 = vmatpush.msra.mxu0 0.0
      %2383 = vmatpush.msra.mxu0 0.0
      %2384 = vmatpush.msra.mxu0 0.0
      %2385 = vmatpush.msra.mxu0 0.0
      %2386 = vmatpush.msra.mxu0 0.0
      %2387 = vmatpush.msra.mxu0 0.0
      %2388 = vmatpush.msra.mxu0 0.0
      %2389 = vmatpush.msra.mxu0 0.0
      %2390 = vmatpush.msra.mxu0 0.0
      %2391 = vmatpush.msra.mxu0 0.0
      %2392 = vmatpush.msra.mxu0 0.0
      %2393 = vmatpush.msra.mxu0 0.0
      %2394 = vmatpush.msra.mxu0 %v2341
      %2395 = vmatmul.f32.gmra.mxu0 %v2374
      %v2396 = vpop.f32.mrf.mxu0
      %v2397 = vadd.f32 0.0, %v2396
      %2398 = vmatmul.f32.gmra.mxu0 %v2377
      %v2399 = vpop.f32.mrf.mxu0
      %v2400 = vadd.f32 0.0, %v2399
      %2401 = vdwg.mxu0
      %v2403 = vsel %vm865, %v2302, 0
      %v2406 = vsel %vm865, %v2305, 0
      %2408 = vmatpush.msra.mxu0 0.0
      %2409 = vmatpush.msra.mxu0 0.0
      %2410 = vmatpush.msra.mxu0 0.0
      %2411 = vmatpush.msra.mxu0 0.0
      %2412 = vmatpush.msra.mxu0 0.0
      %2413 = vmatpush.msra.mxu0 0.0
      %2414 = vmatpush.msra.mxu0 0.0
      %2415 = vmatpush.msra.mxu0 0.0
      %2416 = vmatpush.msra.mxu0 0.0
      %2417 = vmatpush.msra.mxu0 0.0
      %2418 = vmatpush.msra.mxu0 0.0
      %2419 = vmatpush.msra.mxu0 0.0
      %2420 = vmatpush.msra.mxu0 0.0
      %2421 = vmatpush.msra.mxu0 0.0
      %2422 = vmatpush.msra.mxu0 0.0
      %2423 = vmatpush.msra.mxu0 %v2342
      %2424 = vmatmul.f32.gmra.mxu0 %v2403
      %v2425 = vpop.f32.mrf.mxu0
      %v2426 = vadd.f32 0.0, %v2425
      %2427 = vmatmul.f32.gmra.mxu0 %v2406
      %v2428 = vpop.f32.mrf.mxu0
      %v2429 = vadd.f32 0.0, %v2428
      %2430 = vdwg.mxu0
      %v2432 = vsel %vm865, %v2334, 0
      %v2435 = vsel %vm865, %v2337, 0
      %2437 = vmatpush.msra.mxu0 0.0
      %2438 = vmatpush.msra.mxu0 0.0
      %2439 = vmatpush.msra.mxu0 0.0
      %2440 = vmatpush.msra.mxu0 0.0
      %2441 = vmatpush.msra.mxu0 0.0
      %2442 = vmatpush.msra.mxu0 0.0
      %2443 = vmatpush.msra.mxu0 0.0
      %2444 = vmatpush.msra.mxu0 0.0
      %2445 = vmatpush.msra.mxu0 0.0
      %2446 = vmatpush.msra.mxu0 0.0
      %2447 = vmatpush.msra.mxu0 0.0
      %2448 = vmatpush.msra.mxu0 0.0
      %2449 = vmatpush.msra.mxu0 0.0
      %2450 = vmatpush.msra.mxu0 0.0
      %2451 = vmatpush.msra.mxu0 0.0
      %2452 = vmatpush.msra.mxu0 %v2343
      %2453 = vmatmul.f32.gmra.mxu0 %v2432
      %v2454 = vpop.f32.mrf.mxu0
      %v2455 = vadd.f32 0.0, %v2454
      %2456 = vmatmul.f32.gmra.mxu0 %v2435
      %v2457 = vpop.f32.mrf.mxu0
      %v2458 = vadd.f32 0.0, %v2457
      %2459 = vdwg.mxu0
      %v2460 = vsel %vm472, %v2368, 0.0
      %v2461 = vsel %vm472, %v2397, 0.0
      %v2462 = vadd.f32 %v2460, %v2461
      %v2463 = vsel %vm472, %v2426, 0.0
      %v2464 = vadd.f32 %v2462, %v2463
      %v2465 = vsel %vm472, %v2455, 0.0
      %v2466 = vadd.f32 %v2464, %v2465
      %v2467 = vsel %vm476, %v2371, 0.0
      %v2468 = vsel %vm476, %v2400, 0.0
      %v2469 = vadd.f32 %v2467, %v2468
      %v2470 = vsel %vm476, %v2429, 0.0
      %v2471 = vadd.f32 %v2469, %v2470
      %v2472 = vsel %vm476, %v2458, 0.0
      %v2473 = vadd.f32 %v2471, %v2472
      %s2474 = scalar_lea.vmem %s7, 1
      %v2475 = vld [vmem:[%s2474] sm:$0x1]
      %v2477 = vperm.slane %v2475, 0
      %v2479 = vadd.f32 %v2466, %v2477
      %v2480 = vadd.f32 %v2473, %v2477
      %v2481 = vadd.f32 %v2479, %v1590
      %v2482 = vadd.f32 %v2480, %v1591
      %s2483 = scalar_lea.vmem %s8, 1
      %v2484 = vld [vmem:[%s2483] sm:$0x1]
      %s2485 = scalar_lea.vmem %s9, 1
      %v2486 = vld [vmem:[%s2485] sm:$0x1]
      %v2487 = vsel %vm472, %v2481, 0.0
      %2488 = vadd.xlane.f32.xlu0 %v2487
      %v2489 = vpop.xlane.xlu0 %2488
      %v2490 = vsel %vm476, %v2482, 0.0
      %2491 = vadd.xlane.f32.xlu0 %v2490
      %v2492 = vpop.xlane.xlu0 %2491
      %v2493 = vmul.f32 %v2489, %v486
      %v2494 = vmul.f32 %v2492, %v486
      %v2495 = vsub.f32 %v2481, %v2493
      %v2496 = vsub.f32 %v2482, %v2494
      %v2497 = vmul.f32 %v2495, %v2495
      %v2498 = vmul.f32 %v2496, %v2496
      %v2499 = vsel %vm472, %v2497, 0.0
      %2500 = vadd.xlane.f32.xlu0 %v2499
      %v2501 = vpop.xlane.xlu0 %2500
      %v2502 = vsel %vm476, %v2498, 0.0
      %2503 = vadd.xlane.f32.xlu0 %v2502
      %v2504 = vpop.xlane.xlu0 %2503
      %v2505 = vmul.f32 %v2501, %v486
      %v2506 = vmul.f32 %v2504, %v486
      %v2507 = vadd.f32 %v2505, 1e-05
      %v2508 = vadd.f32 %v2506, 1e-05
      %v2509 = vrsqrt.pop %v2507
      %v2510 = vmul.f32 %v2509, %v2507
      %v2511 = vmul.f32 %v2510, %v2509
      %v2512 = vmul.f32 0.5, %v2511
      %v2513 = vsub.f32 1.5, %v2512
      %v2514 = vmul.f32 %v2509, %v2513
      %vm2515 = vweird.f32 %v2507
      %vm2516 = vweird.f32 %v2509
      %vm2517 = vmor %vm2515, %vm2516
      %v2518 = vsel %vm2517, %v2509, %v2514
      %v2519 = vrsqrt.pop %v2508
      %v2520 = vmul.f32 %v2519, %v2508
      %v2521 = vmul.f32 %v2520, %v2519
      %v2522 = vmul.f32 0.5, %v2521
      %v2523 = vsub.f32 1.5, %v2522
      %v2524 = vmul.f32 %v2519, %v2523
      %vm2525 = vweird.f32 %v2508
      %vm2526 = vweird.f32 %v2519
      %vm2527 = vmor %vm2525, %vm2526
      %v2528 = vsel %vm2527, %v2519, %v2524
      %v2529 = vmul.f32 %v2495, %v2518
      %v2530 = vmul.f32 %v2496, %v2528
      %v2532 = vperm.slane %v2484, 0
      %v2534 = vmul.f32 %v2529, %v2532
      %v2535 = vmul.f32 %v2530, %v2532
      %v2537 = vperm.slane %v2486, 0
      %v2539 = vadd.f32 %v2534, %v2537
      %v2540 = vadd.f32 %v2535, %v2537
      %s2541 = scalar_lea.vmem %s10, 32
      %v2542 = vld [vmem:[%s2541] sm:$0xff]
      %v2543 = vld [vmem:[%s2541 + $0x8] sm:$0xff]
      %v2544 = vld [vmem:[%s2541 + $0x10] sm:$0xff]
      %v2545 = vld [vmem:[%s2541 + $0x18] sm:$0xff]
      %s2546 = scalar_lea.vmem %s11, 1
      %v2547 = vld [vmem:[%s2546] sm:$0x1]
      %v2549 = vperm.slane %v2547, 0
      %v2552 = vsel %vm472, %v2539, 0
      %v2555 = vsel %vm472, %v2540, 0
      %2557 = vmatpush.msra.mxu0 0.0
      %2558 = vmatpush.msra.mxu0 0.0
      %2559 = vmatpush.msra.mxu0 0.0
      %2560 = vmatpush.msra.mxu0 0.0
      %2561 = vmatpush.msra.mxu0 0.0
      %2562 = vmatpush.msra.mxu0 0.0
      %2563 = vmatpush.msra.mxu0 0.0
      %2564 = vmatpush.msra.mxu0 0.0
      %2565 = vmatpush.msra.mxu0 0.0
      %2566 = vmatpush.msra.mxu0 0.0
      %2567 = vmatpush.msra.mxu0 0.0
      %2568 = vmatpush.msra.mxu0 0.0
      %2569 = vmatpush.msra.mxu0 %v2545
      %2570 = vmatpush.msra.mxu0 %v2544
      %2571 = vmatpush.msra.mxu0 %v2543
      %2572 = vmatpush.msra.mxu0 %v2542
      %2573 = vmatmul.f32.gmra.mxu0 %v2552
      %v2574 = vpop.f32.mrf.mxu0
      %v2575 = vadd.f32 %v2549, %v2574
      %2576 = vmatmul.f32.gmra.mxu0 %v2555
      %v2577 = vpop.f32.mrf.mxu0
      %v2578 = vadd.f32 %v2549, %v2577
      %2579 = vdwg.mxu0
      %v2580 = vmul.f32 %v2575, 0.5
      %v2581 = vmul.f32 %v2578, 0.5
      %v2582 = vmul.f32 %v2575, 0.70710677
      %v2583 = vmul.f32 %v2578, 0.70710677
      %v2584 = vmul.f32 %v2582, %v2582
      %v2585 = vmin.f32 16.0, %v2584
      %v2586 = vmul.f32 %v2585, 2.1237322e-06
      %v2587 = vadd.f32 %v2586, 0.00028619796
      %v2588 = vmul.f32 %v2585, %v2587
      %v2589 = vadd.f32 %v2588, 0.0036580483
      %v2590 = vmul.f32 %v2585, %v2589
      %v2591 = vadd.f32 %v2590, 0.05243302
      %v2592 = vmul.f32 %v2585, %v2591
      %v2593 = vadd.f32 %v2592, 0.18741608
      %v2594 = vmul.f32 %v2585, %v2593
      %v2595 = vadd.f32 %v2594, 1.1283791
      %v2596 = vmul.f32 %v2582, %v2595
      %v2597 = vmul.f32 %v2585, 3.8918573e-05
      %v2598 = vadd.f32 %v2597, 0.001143296
      %v2599 = vmul.f32 %v2585, %v2598
      %v2600 = vadd.f32 %v2599, 0.014752088
      %v2601 = vmul.f32 %v2585, %v2600
      %v2602 = vadd.f32 %v2601, 0.112945676
      %v2603 = vmul.f32 %v2585, %v2602
      %v2604 = vadd.f32 %v2603, 0.4994258
      %v2605 = vmul.f32 %v2585, %v2604
      %v2606 = vadd.f32 %v2605, 1.0
      %v2607 = vrcp.pop %v2606
      %v2608 = vmul.f32 %v2606, %v2607
      %v2609 = vsub.f32 1.0, %v2608
      %v2610 = vmul.f32 %v2607, %v2609
      %v2611 = vadd.f32 %v2607, %v2610
      %vm2612 = vweird.f32 %v2606
      %vm2613 = vweird.f32 %v2607
      %vm2614 = vmor %vm2612, %vm2613
      %v2615 = vsel %vm2614, %v2607, %v2611
      %v2616 = vand.u32 2147483647, %v2606
      %vm2617 = vcmp.eq.f32.partialorder %v2616, 8.507059e+37
      %v2618 = vand.u32 %v2606, 2147483648
      %v2619 = vor.u32 1.1754944e-38, %v2618
      %v2620 = vsel %vm2617, %v2619, %v2615
      %v2621 = vmul.f32 %v2596, %v2620
      %v2622 = vmin.f32 %v2621, 1.0
      %v2623 = vmax.f32 %v2622, -1.0
      %v2624 = vmul.f32 %v2583, %v2583
      %v2625 = vmin.f32 16.0, %v2624
      %v2626 = vmul.f32 %v2625, 2.1237322e-06
      %v2627 = vadd.f32 %v2626, 0.00028619796
      %v2628 = vmul.f32 %v2625, %v2627
      %v2629 = vadd.f32 %v2628, 0.0036580483
      %v2630 = vmul.f32 %v2625, %v2629
      %v2631 = vadd.f32 %v2630, 0.05243302
      %v2632 = vmul.f32 %v2625, %v2631
      %v2633 = vadd.f32 %v2632, 0.18741608
      %v2634 = vmul.f32 %v2625, %v2633
      %v2635 = vadd.f32 %v2634, 1.1283791
      %v2636 = vmul.f32 %v2583, %v2635
      %v2637 = vmul.f32 %v2625, 3.8918573e-05
      %v2638 = vadd.f32 %v2637, 0.001143296
      %v2639 = vmul.f32 %v2625, %v2638
      %v2640 = vadd.f32 %v2639, 0.014752088
      %v2641 = vmul.f32 %v2625, %v2640
      %v2642 = vadd.f32 %v2641, 0.112945676
      %v2643 = vmul.f32 %v2625, %v2642
      %v2644 = vadd.f32 %v2643, 0.4994258
      %v2645 = vmul.f32 %v2625, %v2644
      %v2646 = vadd.f32 %v2645, 1.0
      %v2647 = vrcp.pop %v2646
      %v2648 = vmul.f32 %v2646, %v2647
      %v2649 = vsub.f32 1.0, %v2648
      %v2650 = vmul.f32 %v2647, %v2649
      %v2651 = vadd.f32 %v2647, %v2650
      %vm2652 = vweird.f32 %v2646
      %vm2653 = vweird.f32 %v2647
      %vm2654 = vmor %vm2652, %vm2653
      %v2655 = vsel %vm2654, %v2647, %v2651
      %v2656 = vand.u32 2147483647, %v2646
      %vm2657 = vcmp.eq.f32.partialorder %v2656, 8.507059e+37
      %v2658 = vand.u32 %v2646, 2147483648
      %v2659 = vor.u32 1.1754944e-38, %v2658
      %v2660 = vsel %vm2657, %v2659, %v2655
      %v2661 = vmul.f32 %v2636, %v2660
      %v2662 = vmin.f32 %v2661, 1.0
      %v2663 = vmax.f32 %v2662, -1.0
      %v2664 = vadd.f32 %v2623, 1.0
      %v2665 = vadd.f32 %v2663, 1.0
      %v2666 = vmul.f32 %v2580, %v2664
      %v2667 = vmul.f32 %v2581, %v2665
      %s2668 = scalar_lea.vmem %s12, 64
      %v2669 = vld [vmem:[%s2668] sm:$0xff]
      %v2670 = vld [vmem:[%s2668 + $0x8] sm:$0xff]
      %v2671 = vld [vmem:[%s2668 + $0x10] sm:$0xff]
      %v2672 = vld [vmem:[%s2668 + $0x18] sm:$0xff]
      %v2673 = vld [vmem:[%s2668 + $0x20] sm:$0xff]
      %v2674 = vld [vmem:[%s2668 + $0x28] sm:$0xff]
      %v2675 = vld [vmem:[%s2668 + $0x30] sm:$0xff]
      %v2676 = vld [vmem:[%s2668 + $0x38] sm:$0xff]
      %s2677 = scalar_lea.vmem %s13, 1
      %v2678 = vld [vmem:[%s2677] sm:$0x1]
      %v2680 = vperm.slane %v2678, 0
      %v2683 = vsel %vm1560, %v2666, 0
      %v2686 = vsel %vm1560, %v2667, 0
      %2688 = vmatpush.msra.mxu0 0.0
      %2689 = vmatpush.msra.mxu0 0.0
      %2690 = vmatpush.msra.mxu0 0.0
      %2691 = vmatpush.msra.mxu0 0.0
      %2692 = vmatpush.msra.mxu0 0.0
      %2693 = vmatpush.msra.mxu0 0.0
      %2694 = vmatpush.msra.mxu0 0.0
      %2695 = vmatpush.msra.mxu0 0.0
      %2696 = vmatpush.msra.mxu0 %v2676
      %2697 = vmatpush.msra.mxu0 %v2675
      %2698 = vmatpush.msra.mxu0 %v2674
      %2699 = vmatpush.msra.mxu0 %v2673
      %2700 = vmatpush.msra.mxu0 %v2672
      %2701 = vmatpush.msra.mxu0 %v2671
      %2702 = vmatpush.msra.mxu0 %v2670
      %2703 = vmatpush.msra.mxu0 %v2669
      %2704 = vmatmul.f32.gmra.mxu0 %v2683
      %v2705 = vpop.f32.mrf.mxu0
      %v2706 = vadd.f32 %v2680, %v2705
      %2707 = vmatmul.f32.gmra.mxu0 %v2686
      %v2708 = vpop.f32.mrf.mxu0
      %v2709 = vadd.f32 %v2680, %v2708
      %2710 = vdwg.mxu0
      %v2711 = vadd.f32 %v2706, %v2481
      %v2712 = vadd.f32 %v2709, %v2482
      %s2713 = scalar_lea.vmem %s1, 2
      %v2714 = vld [vmem:[%s2713] sm:$0x1]
      %s2715 = scalar_lea.vmem %s2, 2
      %v2716 = vld [vmem:[%s2715] sm:$0x1]
      %v2717 = vsel %vm472, %v2711, 0.0
      %2718 = vadd.xlane.f32.xlu0 %v2717
      %v2719 = vpop.xlane.xlu0 %2718
      %v2720 = vsel %vm476, %v2712, 0.0
      %2721 = vadd.xlane.f32.xlu0 %v2720
      %v2722 = vpop.xlane.xlu0 %2721
      %v2723 = vmul.f32 %v2719, %v486
      %v2724 = vmul.f32 %v2722, %v486
      %v2725 = vsub.f32 %v2711, %v2723
      %v2726 = vsub.f32 %v2712, %v2724
      %v2727 = vmul.f32 %v2725, %v2725
      %v2728 = vmul.f32 %v2726, %v2726
      %v2729 = vsel %vm472, %v2727, 0.0
      %2730 = vadd.xlane.f32.xlu0 %v2729
      %v2731 = vpop.xlane.xlu0 %2730
      %v2732 = vsel %vm476, %v2728, 0.0
      %2733 = vadd.xlane.f32.xlu0 %v2732
      %v2734 = vpop.xlane.xlu0 %2733
      %v2735 = vmul.f32 %v2731, %v486
      %v2736 = vmul.f32 %v2734, %v486
      %v2737 = vadd.f32 %v2735, 1e-05
      %v2738 = vadd.f32 %v2736, 1e-05
      %v2739 = vrsqrt.pop %v2737
      %v2740 = vmul.f32 %v2739, %v2737
      %v2741 = vmul.f32 %v2740, %v2739
      %v2742 = vmul.f32 0.5, %v2741
      %v2743 = vsub.f32 1.5, %v2742
      %v2744 = vmul.f32 %v2739, %v2743
      %vm2745 = vweird.f32 %v2737
      %vm2746 = vweird.f32 %v2739
      %vm2747 = vmor %vm2745, %vm2746
      %v2748 = vsel %vm2747, %v2739, %v2744
      %v2749 = vrsqrt.pop %v2738
      %v2750 = vmul.f32 %v2749, %v2738
      %v2751 = vmul.f32 %v2750, %v2749
      %v2752 = vmul.f32 0.5, %v2751
      %v2753 = vsub.f32 1.5, %v2752
      %v2754 = vmul.f32 %v2749, %v2753
      %vm2755 = vweird.f32 %v2738
      %vm2756 = vweird.f32 %v2749
      %vm2757 = vmor %vm2755, %vm2756
      %v2758 = vsel %vm2757, %v2749, %v2754
      %v2759 = vmul.f32 %v2725, %v2748
      %v2760 = vmul.f32 %v2726, %v2758
      %v2762 = vperm.slane %v2714, 0
      %v2764 = vmul.f32 %v2759, %v2762
      %v2765 = vmul.f32 %v2760, %v2762
      %v2767 = vperm.slane %v2716, 0
      %v2769 = vadd.f32 %v2764, %v2767
      %v2770 = vadd.f32 %v2765, %v2767
      %s2771 = scalar_lea.vmem %s3, 256
      %v2772 = vld [vmem:[%s2771] sm:$0xff]
      %v2773 = vld [vmem:[%s2771 + $0x8] sm:$0xff]
      %v2774 = vld [vmem:[%s2771 + $0x10] sm:$0xff]
      %v2775 = vld [vmem:[%s2771 + $0x18] sm:$0xff]
      %v2776 = vld [vmem:[%s2771 + $0x20] sm:$0xff]
      %v2777 = vld [vmem:[%s2771 + $0x28] sm:$0xff]
      %v2778 = vld [vmem:[%s2771 + $0x30] sm:$0xff]
      %v2779 = vld [vmem:[%s2771 + $0x38] sm:$0xff]
      %v2780 = vld [vmem:[%s2771 + $0x40] sm:$0xff]
      %v2781 = vld [vmem:[%s2771 + $0x48] sm:$0xff]
      %v2782 = vld [vmem:[%s2771 + $0x50] sm:$0xff]
      %v2783 = vld [vmem:[%s2771 + $0x58] sm:$0xff]
      %v2784 = vld [vmem:[%s2771 + $0x60] sm:$0xff]
      %v2785 = vld [vmem:[%s2771 + $0x68] sm:$0xff]
      %v2786 = vld [vmem:[%s2771 + $0x70] sm:$0xff]
      %v2787 = vld [vmem:[%s2771 + $0x78] sm:$0xff]
      %v2789 = vsel %vm472, %v2769, 0
      %v2792 = vsel %vm472, %v2770, 0
      %2794 = vmatpush.msra.mxu0 0.0
      %2795 = vmatpush.msra.mxu0 0.0
      %2796 = vmatpush.msra.mxu0 0.0
      %2797 = vmatpush.msra.mxu0 0.0
      %2798 = vmatpush.msra.mxu0 0.0
      %2799 = vmatpush.msra.mxu0 0.0
      %2800 = vmatpush.msra.mxu0 0.0
      %2801 = vmatpush.msra.mxu0 0.0
      %2802 = vmatpush.msra.mxu0 0.0
      %2803 = vmatpush.msra.mxu0 0.0
      %2804 = vmatpush.msra.mxu0 0.0
      %2805 = vmatpush.msra.mxu0 0.0
      %2806 = vmatpush.msra.mxu0 %v2775
      %2807 = vmatpush.msra.mxu0 %v2774
      %2808 = vmatpush.msra.mxu0 %v2773
      %2809 = vmatpush.msra.mxu0 %v2772
      %2810 = vmatmul.f32.gmra.mxu0 %v2789
      %v2811 = vpop.f32.mrf.mxu0
      %v2812 = vadd.f32 0.0, %v2811
      %2813 = vmatmul.f32.gmra.mxu0 %v2792
      %v2814 = vpop.f32.mrf.mxu0
      %v2815 = vadd.f32 0.0, %v2814
      %2816 = vdwg.mxu0
      %2817 = vmatpush.msra.mxu0 0.0
      %2818 = vmatpush.msra.mxu0 0.0
      %2819 = vmatpush.msra.mxu0 0.0
      %2820 = vmatpush.msra.mxu0 0.0
      %2821 = vmatpush.msra.mxu0 0.0
      %2822 = vmatpush.msra.mxu0 0.0
      %2823 = vmatpush.msra.mxu0 0.0
      %2824 = vmatpush.msra.mxu0 0.0
      %2825 = vmatpush.msra.mxu0 0.0
      %2826 = vmatpush.msra.mxu0 0.0
      %2827 = vmatpush.msra.mxu0 0.0
      %2828 = vmatpush.msra.mxu0 0.0
      %2829 = vmatpush.msra.mxu0 %v2779
      %2830 = vmatpush.msra.mxu0 %v2778
      %2831 = vmatpush.msra.mxu0 %v2777
      %2832 = vmatpush.msra.mxu0 %v2776
      %2833 = vmatmul.f32.gmra.mxu0 %v2789
      %v2834 = vpop.f32.mrf.mxu0
      %v2835 = vadd.f32 0.0, %v2834
      %2836 = vmatmul.f32.gmra.mxu0 %v2792
      %v2837 = vpop.f32.mrf.mxu0
      %v2838 = vadd.f32 0.0, %v2837
      %2839 = vdwg.mxu0
      %2840 = vmatpush.msra.mxu0 0.0
      %2841 = vmatpush.msra.mxu0 0.0
      %2842 = vmatpush.msra.mxu0 0.0
      %2843 = vmatpush.msra.mxu0 0.0
      %2844 = vmatpush.msra.mxu0 0.0
      %2845 = vmatpush.msra.mxu0 0.0
      %2846 = vmatpush.msra.mxu0 0.0
      %2847 = vmatpush.msra.mxu0 0.0
      %2848 = vmatpush.msra.mxu0 0.0
      %2849 = vmatpush.msra.mxu0 0.0
      %2850 = vmatpush.msra.mxu0 0.0
      %2851 = vmatpush.msra.mxu0 0.0
      %2852 = vmatpush.msra.mxu0 %v2783
      %2853 = vmatpush.msra.mxu0 %v2782
      %2854 = vmatpush.msra.mxu0 %v2781
      %2855 = vmatpush.msra.mxu0 %v2780
      %2856 = vmatmul.f32.gmra.mxu0 %v2789
      %v2857 = vpop.f32.mrf.mxu0
      %v2858 = vadd.f32 0.0, %v2857
      %2859 = vmatmul.f32.gmra.mxu0 %v2792
      %v2860 = vpop.f32.mrf.mxu0
      %v2861 = vadd.f32 0.0, %v2860
      %2862 = vdwg.mxu0
      %2863 = vmatpush.msra.mxu0 0.0
      %2864 = vmatpush.msra.mxu0 0.0
      %2865 = vmatpush.msra.mxu0 0.0
      %2866 = vmatpush.msra.mxu0 0.0
      %2867 = vmatpush.msra.mxu0 0.0
      %2868 = vmatpush.msra.mxu0 0.0
      %2869 = vmatpush.msra.mxu0 0.0
      %2870 = vmatpush.msra.mxu0 0.0
      %2871 = vmatpush.msra.mxu0 0.0
      %2872 = vmatpush.msra.mxu0 0.0
      %2873 = vmatpush.msra.mxu0 0.0
      %2874 = vmatpush.msra.mxu0 0.0
      %2875 = vmatpush.msra.mxu0 %v2787
      %2876 = vmatpush.msra.mxu0 %v2786
      %2877 = vmatpush.msra.mxu0 %v2785
      %2878 = vmatpush.msra.mxu0 %v2784
      %2879 = vmatmul.f32.gmra.mxu0 %v2789
      %v2880 = vpop.f32.mrf.mxu0
      %v2881 = vadd.f32 0.0, %v2880
      %2882 = vmatmul.f32.gmra.mxu0 %v2792
      %v2883 = vpop.f32.mrf.mxu0
      %v2884 = vadd.f32 0.0, %v2883
      %2885 = vdwg.mxu0
      %s2886 = scalar_lea.vmem %s4, 256
      %v2887 = vld [vmem:[%s2886] sm:$0xff]
      %v2888 = vld [vmem:[%s2886 + $0x8] sm:$0xff]
      %v2889 = vld [vmem:[%s2886 + $0x10] sm:$0xff]
      %v2890 = vld [vmem:[%s2886 + $0x18] sm:$0xff]
      %v2891 = vld [vmem:[%s2886 + $0x20] sm:$0xff]
      %v2892 = vld [vmem:[%s2886 + $0x28] sm:$0xff]
      %v2893 = vld [vmem:[%s2886 + $0x30] sm:$0xff]
      %v2894 = vld [vmem:[%s2886 + $0x38] sm:$0xff]
      %v2895 = vld [vmem:[%s2886 + $0x40] sm:$0xff]
      %v2896 = vld [vmem:[%s2886 + $0x48] sm:$0xff]
      %v2897 = vld [vmem:[%s2886 + $0x50] sm:$0xff]
      %v2898 = vld [vmem:[%s2886 + $0x58] sm:$0xff]
      %v2899 = vld [vmem:[%s2886 + $0x60] sm:$0xff]
      %v2900 = vld [vmem:[%s2886 + $0x68] sm:$0xff]
      %v2901 = vld [vmem:[%s2886 + $0x70] sm:$0xff]
      %v2902 = vld [vmem:[%s2886 + $0x78] sm:$0xff]
      %2903 = vmatpush.msra.mxu0 0.0
      %2904 = vmatpush.msra.mxu0 0.0
      %2905 = vmatpush.msra.mxu0 0.0
      %2906 = vmatpush.msra.mxu0 0.0
      %2907 = vmatpush.msra.mxu0 0.0
      %2908 = vmatpush.msra.mxu0 0.0
      %2909 = vmatpush.msra.mxu0 0.0
      %2910 = vmatpush.msra.mxu0 0.0
      %2911 = vmatpush.msra.mxu0 0.0
      %2912 = vmatpush.msra.mxu0 0.0
      %2913 = vmatpush.msra.mxu0 0.0
      %2914 = vmatpush.msra.mxu0 0.0
      %2915 = vmatpush.msra.mxu0 %v2890
      %2916 = vmatpush.msra.mxu0 %v2889
      %2917 = vmatpush.msra.mxu0 %v2888
      %2918 = vmatpush.msra.mxu0 %v2887
      %2919 = vmatmul.f32.gmra.mxu0 %v2789
      %v2920 = vpop.f32.mrf.mxu0
      %v2921 = vadd.f32 0.0, %v2920
      %2922 = vmatmul.f32.gmra.mxu0 %v2792
      %v2923 = vpop.f32.mrf.mxu0
      %v2924 = vadd.f32 0.0, %v2923
      %2925 = vdwg.mxu0
      %2926 = vmatpush.msra.mxu0 0.0
      %2927 = vmatpush.msra.mxu0 0.0
      %2928 = vmatpush.msra.mxu0 0.0
      %2929 = vmatpush.msra.mxu0 0.0
      %2930 = vmatpush.msra.mxu0 0.0
      %2931 = vmatpush.msra.mxu0 0.0
      %2932 = vmatpush.msra.mxu0 0.0
      %2933 = vmatpush.msra.mxu0 0.0
      %2934 = vmatpush.msra.mxu0 0.0
      %2935 = vmatpush.msra.mxu0 0.0
      %2936 = vmatpush.msra.mxu0 0.0
      %2937 = vmatpush.msra.mxu0 0.0
      %2938 = vmatpush.msra.mxu0 %v2894
      %2939 = vmatpush.msra.mxu0 %v2893
      %2940 = vmatpush.msra.mxu0 %v2892
      %2941 = vmatpush.msra.mxu0 %v2891
      %2942 = vmatmul.f32.gmra.mxu0 %v2789
      %v2943 = vpop.f32.mrf.mxu0
      %v2944 = vadd.f32 0.0, %v2943
      %2945 = vmatmul.f32.gmra.mxu0 %v2792
      %v2946 = vpop.f32.mrf.mxu0
      %v2947 = vadd.f32 0.0, %v2946
      %2948 = vdwg.mxu0
      %2949 = vmatpush.msra.mxu0 0.0
      %2950 = vmatpush.msra.mxu0 0.0
      %2951 = vmatpush.msra.mxu0 0.0
      %2952 = vmatpush.msra.mxu0 0.0
      %2953 = vmatpush.msra.mxu0 0.0
      %2954 = vmatpush.msra.mxu0 0.0
      %2955 = vmatpush.msra.mxu0 0.0
      %2956 = vmatpush.msra.mxu0 0.0
      %2957 = vmatpush.msra.mxu0 0.0
      %2958 = vmatpush.msra.mxu0 0.0
      %2959 = vmatpush.msra.mxu0 0.0
      %2960 = vmatpush.msra.mxu0 0.0
      %2961 = vmatpush.msra.mxu0 %v2898
      %2962 = vmatpush.msra.mxu0 %v2897
      %2963 = vmatpush.msra.mxu0 %v2896
      %2964 = vmatpush.msra.mxu0 %v2895
      %2965 = vmatmul.f32.gmra.mxu0 %v2789
      %v2966 = vpop.f32.mrf.mxu0
      %v2967 = vadd.f32 0.0, %v2966
      %2968 = vmatmul.f32.gmra.mxu0 %v2792
      %v2969 = vpop.f32.mrf.mxu0
      %v2970 = vadd.f32 0.0, %v2969
      %2971 = vdwg.mxu0
      %2972 = vmatpush.msra.mxu0 0.0
      %2973 = vmatpush.msra.mxu0 0.0
      %2974 = vmatpush.msra.mxu0 0.0
      %2975 = vmatpush.msra.mxu0 0.0
      %2976 = vmatpush.msra.mxu0 0.0
      %2977 = vmatpush.msra.mxu0 0.0
      %2978 = vmatpush.msra.mxu0 0.0
      %2979 = vmatpush.msra.mxu0 0.0
      %2980 = vmatpush.msra.mxu0 0.0
      %2981 = vmatpush.msra.mxu0 0.0
      %2982 = vmatpush.msra.mxu0 0.0
      %2983 = vmatpush.msra.mxu0 0.0
      %2984 = vmatpush.msra.mxu0 %v2902
      %2985 = vmatpush.msra.mxu0 %v2901
      %2986 = vmatpush.msra.mxu0 %v2900
      %2987 = vmatpush.msra.mxu0 %v2899
      %2988 = vmatmul.f32.gmra.mxu0 %v2789
      %v2989 = vpop.f32.mrf.mxu0
      %v2990 = vadd.f32 0.0, %v2989
      %2991 = vmatmul.f32.gmra.mxu0 %v2792
      %v2992 = vpop.f32.mrf.mxu0
      %v2993 = vadd.f32 0.0, %v2992
      %2994 = vdwg.mxu0
      %s2995 = scalar_lea.vmem %s5, 256
      %v2996 = vld [vmem:[%s2995] sm:$0xff]
      %v2997 = vld [vmem:[%s2995 + $0x8] sm:$0xff]
      %v2998 = vld [vmem:[%s2995 + $0x10] sm:$0xff]
      %v2999 = vld [vmem:[%s2995 + $0x18] sm:$0xff]
      %v3000 = vld [vmem:[%s2995 + $0x20] sm:$0xff]
      %v3001 = vld [vmem:[%s2995 + $0x28] sm:$0xff]
      %v3002 = vld [vmem:[%s2995 + $0x30] sm:$0xff]
      %v3003 = vld [vmem:[%s2995 + $0x38] sm:$0xff]
      %v3004 = vld [vmem:[%s2995 + $0x40] sm:$0xff]
      %v3005 = vld [vmem:[%s2995 + $0x48] sm:$0xff]
      %v3006 = vld [vmem:[%s2995 + $0x50] sm:$0xff]
      %v3007 = vld [vmem:[%s2995 + $0x58] sm:$0xff]
      %v3008 = vld [vmem:[%s2995 + $0x60] sm:$0xff]
      %v3009 = vld [vmem:[%s2995 + $0x68] sm:$0xff]
      %v3010 = vld [vmem:[%s2995 + $0x70] sm:$0xff]
      %v3011 = vld [vmem:[%s2995 + $0x78] sm:$0xff]
      %3012 = vmatpush.msra.mxu0 0.0
      %3013 = vmatpush.msra.mxu0 0.0
      %3014 = vmatpush.msra.mxu0 0.0
      %3015 = vmatpush.msra.mxu0 0.0
      %3016 = vmatpush.msra.mxu0 0.0
      %3017 = vmatpush.msra.mxu0 0.0
      %3018 = vmatpush.msra.mxu0 0.0
      %3019 = vmatpush.msra.mxu0 0.0
      %3020 = vmatpush.msra.mxu0 0.0
      %3021 = vmatpush.msra.mxu0 0.0
      %3022 = vmatpush.msra.mxu0 0.0
      %3023 = vmatpush.msra.mxu0 0.0
      %3024 = vmatpush.msra.mxu0 %v2999
      %3025 = vmatpush.msra.mxu0 %v2998
      %3026 = vmatpush.msra.mxu0 %v2997
      %3027 = vmatpush.msra.mxu0 %v2996
      %3028 = vmatmul.f32.gmra.mxu0 %v2789
      %v3029 = vpop.f32.mrf.mxu0
      %v3030 = vadd.f32 0.0, %v3029
      %3031 = vmatmul.f32.gmra.mxu0 %v2792
      %v3032 = vpop.f32.mrf.mxu0
      %v3033 = vadd.f32 0.0, %v3032
      %3034 = vdwg.mxu0
      %3035 = vmatpush.msra.mxu0 0.0
      %3036 = vmatpush.msra.mxu0 0.0
      %3037 = vmatpush.msra.mxu0 0.0
      %3038 = vmatpush.msra.mxu0 0.0
      %3039 = vmatpush.msra.mxu0 0.0
      %3040 = vmatpush.msra.mxu0 0.0
      %3041 = vmatpush.msra.mxu0 0.0
      %3042 = vmatpush.msra.mxu0 0.0
      %3043 = vmatpush.msra.mxu0 0.0
      %3044 = vmatpush.msra.mxu0 0.0
      %3045 = vmatpush.msra.mxu0 0.0
      %3046 = vmatpush.msra.mxu0 0.0
      %3047 = vmatpush.msra.mxu0 %v3003
      %3048 = vmatpush.msra.mxu0 %v3002
      %3049 = vmatpush.msra.mxu0 %v3001
      %3050 = vmatpush.msra.mxu0 %v3000
      %3051 = vmatmul.f32.gmra.mxu0 %v2789
      %v3052 = vpop.f32.mrf.mxu0
      %v3053 = vadd.f32 0.0, %v3052
      %3054 = vmatmul.f32.gmra.mxu0 %v2792
      %v3055 = vpop.f32.mrf.mxu0
      %v3056 = vadd.f32 0.0, %v3055
      %3057 = vdwg.mxu0
      %3058 = vmatpush.msra.mxu0 0.0
      %3059 = vmatpush.msra.mxu0 0.0
      %3060 = vmatpush.msra.mxu0 0.0
      %3061 = vmatpush.msra.mxu0 0.0
      %3062 = vmatpush.msra.mxu0 0.0
      %3063 = vmatpush.msra.mxu0 0.0
      %3064 = vmatpush.msra.mxu0 0.0
      %3065 = vmatpush.msra.mxu0 0.0
      %3066 = vmatpush.msra.mxu0 0.0
      %3067 = vmatpush.msra.mxu0 0.0
      %3068 = vmatpush.msra.mxu0 0.0
      %3069 = vmatpush.msra.mxu0 0.0
      %3070 = vmatpush.msra.mxu0 %v3007
      %3071 = vmatpush.msra.mxu0 %v3006
      %3072 = vmatpush.msra.mxu0 %v3005
      %3073 = vmatpush.msra.mxu0 %v3004
      %3074 = vmatmul.f32.gmra.mxu0 %v2789
      %v3075 = vpop.f32.mrf.mxu0
      %v3076 = vadd.f32 0.0, %v3075
      %3077 = vmatmul.f32.gmra.mxu0 %v2792
      %v3078 = vpop.f32.mrf.mxu0
      %v3079 = vadd.f32 0.0, %v3078
      %3080 = vdwg.mxu0
      %3081 = vmatpush.msra.mxu0 0.0
      %3082 = vmatpush.msra.mxu0 0.0
      %3083 = vmatpush.msra.mxu0 0.0
      %3084 = vmatpush.msra.mxu0 0.0
      %3085 = vmatpush.msra.mxu0 0.0
      %3086 = vmatpush.msra.mxu0 0.0
      %3087 = vmatpush.msra.mxu0 0.0
      %3088 = vmatpush.msra.mxu0 0.0
      %3089 = vmatpush.msra.mxu0 0.0
      %3090 = vmatpush.msra.mxu0 0.0
      %3091 = vmatpush.msra.mxu0 0.0
      %3092 = vmatpush.msra.mxu0 0.0
      %3093 = vmatpush.msra.mxu0 %v3011
      %3094 = vmatpush.msra.mxu0 %v3010
      %3095 = vmatpush.msra.mxu0 %v3009
      %3096 = vmatpush.msra.mxu0 %v3008
      %3097 = vmatmul.f32.gmra.mxu0 %v2789
      %v3098 = vpop.f32.mrf.mxu0
      %v3099 = vadd.f32 0.0, %v3098
      %3100 = vmatmul.f32.gmra.mxu0 %v2792
      %v3101 = vpop.f32.mrf.mxu0
      %v3102 = vadd.f32 0.0, %v3101
      %3103 = vdwg.mxu0
      %v3105 = vsel %vm865, %v2812, 0
      %v3108 = vsel %vm865, %v2815, 0
      %v3111 = vsel %vm865, %v2921, 0
      %v3114 = vsel %vm865, %v2924, 0
      %3116 = vmatpush.xpose.msra.mxu0 0.0
      %3117 = vmatpush.xpose.msra.mxu0 0.0
      %3118 = vmatpush.xpose.msra.mxu0 0.0
      %3119 = vmatpush.xpose.msra.mxu0 0.0
      %3120 = vmatpush.xpose.msra.mxu0 0.0
      %3121 = vmatpush.xpose.msra.mxu0 0.0
      %3122 = vmatpush.xpose.msra.mxu0 0.0
      %3123 = vmatpush.xpose.msra.mxu0 0.0
      %3124 = vmatpush.xpose.msra.mxu0 0.0
      %3125 = vmatpush.xpose.msra.mxu0 0.0
      %3126 = vmatpush.xpose.msra.mxu0 0.0
      %3127 = vmatpush.xpose.msra.mxu0 0.0
      %3128 = vmatpush.xpose.msra.mxu0 0.0
      %3129 = vmatpush.xpose.msra.mxu0 0.0
      %3130 = vmatpush.xpose.msra.mxu0 %v3114
      %3131 = vmatpush.xpose.msra.mxu0 %v3111
      %3132 = vmatmul.f32.gmra.mxu0 %v3105
      %v3133 = vpop.f32.mrf.mxu0
      %v3134 = vadd.f32 0.0, %v3133
      %3135 = vmatmul.f32.gmra.mxu0 %v3108
      %v3136 = vpop.f32.mrf.mxu0
      %v3137 = vadd.f32 0.0, %v3136
      %3138 = vdwg.mxu0
      %v3140 = vsel %vm865, %v2835, 0
      %v3143 = vsel %vm865, %v2838, 0
      %v3146 = vsel %vm865, %v2944, 0
      %v3149 = vsel %vm865, %v2947, 0
      %3151 = vmatpush.xpose.msra.mxu0 0.0
      %3152 = vmatpush.xpose.msra.mxu0 0.0
      %3153 = vmatpush.xpose.msra.mxu0 0.0
      %3154 = vmatpush.xpose.msra.mxu0 0.0
      %3155 = vmatpush.xpose.msra.mxu0 0.0
      %3156 = vmatpush.xpose.msra.mxu0 0.0
      %3157 = vmatpush.xpose.msra.mxu0 0.0
      %3158 = vmatpush.xpose.msra.mxu0 0.0
      %3159 = vmatpush.xpose.msra.mxu0 0.0
      %3160 = vmatpush.xpose.msra.mxu0 0.0
      %3161 = vmatpush.xpose.msra.mxu0 0.0
      %3162 = vmatpush.xpose.msra.mxu0 0.0
      %3163 = vmatpush.xpose.msra.mxu0 0.0
      %3164 = vmatpush.xpose.msra.mxu0 0.0
      %3165 = vmatpush.xpose.msra.mxu0 %v3149
      %3166 = vmatpush.xpose.msra.mxu0 %v3146
      %3167 = vmatmul.f32.gmra.mxu0 %v3140
      %v3168 = vpop.f32.mrf.mxu0
      %v3169 = vadd.f32 0.0, %v3168
      %3170 = vmatmul.f32.gmra.mxu0 %v3143
      %v3171 = vpop.f32.mrf.mxu0
      %v3172 = vadd.f32 0.0, %v3171
      %3173 = vdwg.mxu0
      %v3175 = vsel %vm865, %v2858, 0
      %v3178 = vsel %vm865, %v2861, 0
      %v3181 = vsel %vm865, %v2967, 0
      %v3184 = vsel %vm865, %v2970, 0
      %3186 = vmatpush.xpose.msra.mxu0 0.0
      %3187 = vmatpush.xpose.msra.mxu0 0.0
      %3188 = vmatpush.xpose.msra.mxu0 0.0
      %3189 = vmatpush.xpose.msra.mxu0 0.0
      %3190 = vmatpush.xpose.msra.mxu0 0.0
      %3191 = vmatpush.xpose.msra.mxu0 0.0
      %3192 = vmatpush.xpose.msra.mxu0 0.0
      %3193 = vmatpush.xpose.msra.mxu0 0.0
      %3194 = vmatpush.xpose.msra.mxu0 0.0
      %3195 = vmatpush.xpose.msra.mxu0 0.0
      %3196 = vmatpush.xpose.msra.mxu0 0.0
      %3197 = vmatpush.xpose.msra.mxu0 0.0
      %3198 = vmatpush.xpose.msra.mxu0 0.0
      %3199 = vmatpush.xpose.msra.mxu0 0.0
      %3200 = vmatpush.xpose.msra.mxu0 %v3184
      %3201 = vmatpush.xpose.msra.mxu0 %v3181
      %3202 = vmatmul.f32.gmra.mxu0 %v3175
      %v3203 = vpop.f32.mrf.mxu0
      %v3204 = vadd.f32 0.0, %v3203
      %3205 = vmatmul.f32.gmra.mxu0 %v3178
      %v3206 = vpop.f32.mrf.mxu0
      %v3207 = vadd.f32 0.0, %v3206
      %3208 = vdwg.mxu0
      %v3210 = vsel %vm865, %v2881, 0
      %v3213 = vsel %vm865, %v2884, 0
      %v3216 = vsel %vm865, %v2990, 0
      %v3219 = vsel %vm865, %v2993, 0
      %3221 = vmatpush.xpose.msra.mxu0 0.0
      %3222 = vmatpush.xpose.msra.mxu0 0.0
      %3223 = vmatpush.xpose.msra.mxu0 0.0
      %3224 = vmatpush.xpose.msra.mxu0 0.0
      %3225 = vmatpush.xpose.msra.mxu0 0.0
      %3226 = vmatpush.xpose.msra.mxu0 0.0
      %3227 = vmatpush.xpose.msra.mxu0 0.0
      %3228 = vmatpush.xpose.msra.mxu0 0.0
      %3229 = vmatpush.xpose.msra.mxu0 0.0
      %3230 = vmatpush.xpose.msra.mxu0 0.0
      %3231 = vmatpush.xpose.msra.mxu0 0.0
      %3232 = vmatpush.xpose.msra.mxu0 0.0
      %3233 = vmatpush.xpose.msra.mxu0 0.0
      %3234 = vmatpush.xpose.msra.mxu0 0.0
      %3235 = vmatpush.xpose.msra.mxu0 %v3219
      %3236 = vmatpush.xpose.msra.mxu0 %v3216
      %3237 = vmatmul.f32.gmra.mxu0 %v3210
      %v3238 = vpop.f32.mrf.mxu0
      %v3239 = vadd.f32 0.0, %v3238
      %3240 = vmatmul.f32.gmra.mxu0 %v3213
      %v3241 = vpop.f32.mrf.mxu0
      %v3242 = vadd.f32 0.0, %v3241
      %3243 = vdwg.mxu0
      %v3244 = vsel %vm1006, %v3134, -inf
      %3245 = vmax.xlane.f32.xlu0 %v3244
      %v3246 = vpop.xlane.xlu0 %3245
      %v3247 = vsel %vm1010, %v3137, -inf
      %3248 = vmax.xlane.f32.xlu0 %v3247
      %v3249 = vpop.xlane.xlu0 %3248
      %v3250 = vsel %vm1006, %v3169, -inf
      %3251 = vmax.xlane.f32.xlu0 %v3250
      %v3252 = vpop.xlane.xlu0 %3251
      %v3253 = vsel %vm1010, %v3172, -inf
      %3254 = vmax.xlane.f32.xlu0 %v3253
      %v3255 = vpop.xlane.xlu0 %3254
      %v3256 = vsel %vm1006, %v3204, -inf
      %3257 = vmax.xlane.f32.xlu0 %v3256
      %v3258 = vpop.xlane.xlu0 %3257
      %v3259 = vsel %vm1010, %v3207, -inf
      %3260 = vmax.xlane.f32.xlu0 %v3259
      %v3261 = vpop.xlane.xlu0 %3260
      %v3262 = vsel %vm1006, %v3239, -inf
      %3263 = vmax.xlane.f32.xlu0 %v3262
      %v3264 = vpop.xlane.xlu0 %3263
      %v3265 = vsel %vm1010, %v3242, -inf
      %3266 = vmax.xlane.f32.xlu0 %v3265
      %v3267 = vpop.xlane.xlu0 %3266
      %v3268 = vsub.f32 %v3134, %v3246
      %v3269 = vsub.f32 %v3137, %v3249
      %v3270 = vsub.f32 %v3169, %v3252
      %v3271 = vsub.f32 %v3172, %v3255
      %v3272 = vsub.f32 %v3204, %v3258
      %v3273 = vsub.f32 %v3207, %v3261
      %v3274 = vsub.f32 %v3239, %v3264
      %v3275 = vsub.f32 %v3242, %v3267
      %v3276 = vmul.f32 %v3268, 1.442695
      %v3277 = vpow.pop %v3276
      %v3278 = vmul.f32 %v3269, 1.442695
      %v3279 = vpow.pop %v3278
      %v3280 = vmul.f32 %v3270, 1.442695
      %v3281 = vpow.pop %v3280
      %v3282 = vmul.f32 %v3271, 1.442695
      %v3283 = vpow.pop %v3282
      %v3284 = vmul.f32 %v3272, 1.442695
      %v3285 = vpow.pop %v3284
      %v3286 = vmul.f32 %v3273, 1.442695
      %v3287 = vpow.pop %v3286
      %v3288 = vmul.f32 %v3274, 1.442695
      %v3289 = vpow.pop %v3288
      %v3290 = vmul.f32 %v3275, 1.442695
      %v3291 = vpow.pop %v3290
      %v3292 = vsel %vm1006, %v3277, 0.0
      %3293 = vadd.xlane.f32.xlu0 %v3292
      %v3294 = vpop.xlane.xlu0 %3293
      %v3295 = vsel %vm1010, %v3279, 0.0
      %3296 = vadd.xlane.f32.xlu0 %v3295
      %v3297 = vpop.xlane.xlu0 %3296
      %v3298 = vsel %vm1006, %v3281, 0.0
      %3299 = vadd.xlane.f32.xlu0 %v3298
      %v3300 = vpop.xlane.xlu0 %3299
      %v3301 = vsel %vm1010, %v3283, 0.0
      %3302 = vadd.xlane.f32.xlu0 %v3301
      %v3303 = vpop.xlane.xlu0 %3302
      %v3304 = vsel %vm1006, %v3285, 0.0
      %3305 = vadd.xlane.f32.xlu0 %v3304
      %v3306 = vpop.xlane.xlu0 %3305
      %v3307 = vsel %vm1010, %v3287, 0.0
      %3308 = vadd.xlane.f32.xlu0 %v3307
      %v3309 = vpop.xlane.xlu0 %3308
      %v3310 = vsel %vm1006, %v3289, 0.0
      %3311 = vadd.xlane.f32.xlu0 %v3310
      %v3312 = vpop.xlane.xlu0 %3311
      %v3313 = vsel %vm1010, %v3291, 0.0
      %3314 = vadd.xlane.f32.xlu0 %v3313
      %v3315 = vpop.xlane.xlu0 %3314
      %v3316 = vrcp.pop %v3294
      %v3317 = vrcp.pop %v3297
      %v3318 = vrcp.pop %v3300
      %v3319 = vrcp.pop %v3303
      %v3320 = vrcp.pop %v3306
      %v3321 = vrcp.pop %v3309
      %v3322 = vrcp.pop %v3312
      %v3323 = vrcp.pop %v3315
      %v3324 = vmul.f32 %v3277, %v3316
      %v3325 = vmul.f32 %v3279, %v3317
      %v3326 = vmul.f32 %v3281, %v3318
      %v3327 = vmul.f32 %v3283, %v3319
      %v3328 = vmul.f32 %v3285, %v3320
      %v3329 = vmul.f32 %v3287, %v3321
      %v3330 = vmul.f32 %v3289, %v3322
      %v3331 = vmul.f32 %v3291, %v3323
      %v3333 = vsel %vm1006, %v3324, 0
      %v3336 = vsel %vm1006, %v3325, 0
      %v3339 = vsel %vm1102, %v3033, 0
      %3341 = vmatpush.msra.mxu0 0.0
      %3342 = vmatpush.msra.mxu0 0.0
      %3343 = vmatpush.msra.mxu0 0.0
      %3344 = vmatpush.msra.mxu0 0.0
      %3345 = vmatpush.msra.mxu0 0.0
      %3346 = vmatpush.msra.mxu0 0.0
      %3347 = vmatpush.msra.mxu0 0.0
      %3348 = vmatpush.msra.mxu0 0.0
      %3349 = vmatpush.msra.mxu0 0.0
      %3350 = vmatpush.msra.mxu0 0.0
      %3351 = vmatpush.msra.mxu0 0.0
      %3352 = vmatpush.msra.mxu0 0.0
      %3353 = vmatpush.msra.mxu0 0.0
      %3354 = vmatpush.msra.mxu0 0.0
      %3355 = vmatpush.msra.mxu0 %v3339
      %3356 = vmatpush.msra.mxu0 %v3030
      %3357 = vmatmul.f32.gmra.mxu0 %v3333
      %v3358 = vpop.f32.mrf.mxu0
      %v3359 = vadd.f32 0.0, %v3358
      %3360 = vmatmul.f32.gmra.mxu0 %v3336
      %v3361 = vpop.f32.mrf.mxu0
      %v3362 = vadd.f32 0.0, %v3361
      %3363 = vdwg.mxu0
      %v3365 = vsel %vm1006, %v3326, 0
      %v3368 = vsel %vm1006, %v3327, 0
      %v3371 = vsel %vm1102, %v3056, 0
      %3373 = vmatpush.msra.mxu0 0.0
      %3374 = vmatpush.msra.mxu0 0.0
      %3375 = vmatpush.msra.mxu0 0.0
      %3376 = vmatpush.msra.mxu0 0.0
      %3377 = vmatpush.msra.mxu0 0.0
      %3378 = vmatpush.msra.mxu0 0.0
      %3379 = vmatpush.msra.mxu0 0.0
      %3380 = vmatpush.msra.mxu0 0.0
      %3381 = vmatpush.msra.mxu0 0.0
      %3382 = vmatpush.msra.mxu0 0.0
      %3383 = vmatpush.msra.mxu0 0.0
      %3384 = vmatpush.msra.mxu0 0.0
      %3385 = vmatpush.msra.mxu0 0.0
      %3386 = vmatpush.msra.mxu0 0.0
      %3387 = vmatpush.msra.mxu0 %v3371
      %3388 = vmatpush.msra.mxu0 %v3053
      %3389 = vmatmul.f32.gmra.mxu0 %v3365
      %v3390 = vpop.f32.mrf.mxu0
      %v3391 = vadd.f32 0.0, %v3390
      %3392 = vmatmul.f32.gmra.mxu0 %v3368
      %v3393 = vpop.f32.mrf.mxu0
      %v3394 = vadd.f32 0.0, %v3393
      %3395 = vdwg.mxu0
      %v3397 = vsel %vm1006, %v3328, 0
      %v3400 = vsel %vm1006, %v3329, 0
      %v3403 = vsel %vm1102, %v3079, 0
      %3405 = vmatpush.msra.mxu0 0.0
      %3406 = vmatpush.msra.mxu0 0.0
      %3407 = vmatpush.msra.mxu0 0.0
      %3408 = vmatpush.msra.mxu0 0.0
      %3409 = vmatpush.msra.mxu0 0.0
      %3410 = vmatpush.msra.mxu0 0.0
      %3411 = vmatpush.msra.mxu0 0.0
      %3412 = vmatpush.msra.mxu0 0.0
      %3413 = vmatpush.msra.mxu0 0.0
      %3414 = vmatpush.msra.mxu0 0.0
      %3415 = vmatpush.msra.mxu0 0.0
      %3416 = vmatpush.msra.mxu0 0.0
      %3417 = vmatpush.msra.mxu0 0.0
      %3418 = vmatpush.msra.mxu0 0.0
      %3419 = vmatpush.msra.mxu0 %v3403
      %3420 = vmatpush.msra.mxu0 %v3076
      %3421 = vmatmul.f32.gmra.mxu0 %v3397
      %v3422 = vpop.f32.mrf.mxu0
      %v3423 = vadd.f32 0.0, %v3422
      %3424 = vmatmul.f32.gmra.mxu0 %v3400
      %v3425 = vpop.f32.mrf.mxu0
      %v3426 = vadd.f32 0.0, %v3425
      %3427 = vdwg.mxu0
      %v3429 = vsel %vm1006, %v3330, 0
      %v3432 = vsel %vm1006, %v3331, 0
      %v3435 = vsel %vm1102, %v3102, 0
      %3437 = vmatpush.msra.mxu0 0.0
      %3438 = vmatpush.msra.mxu0 0.0
      %3439 = vmatpush.msra.mxu0 0.0
      %3440 = vmatpush.msra.mxu0 0.0
      %3441 = vmatpush.msra.mxu0 0.0
      %3442 = vmatpush.msra.mxu0 0.0
      %3443 = vmatpush.msra.mxu0 0.0
      %3444 = vmatpush.msra.mxu0 0.0
      %3445 = vmatpush.msra.mxu0 0.0
      %3446 = vmatpush.msra.mxu0 0.0
      %3447 = vmatpush.msra.mxu0 0.0
      %3448 = vmatpush.msra.mxu0 0.0
      %3449 = vmatpush.msra.mxu0 0.0
      %3450 = vmatpush.msra.mxu0 0.0
      %3451 = vmatpush.msra.mxu0 %v3435
      %3452 = vmatpush.msra.mxu0 %v3099
      %3453 = vmatmul.f32.gmra.mxu0 %v3429
      %v3454 = vpop.f32.mrf.mxu0
      %v3455 = vadd.f32 0.0, %v3454
      %3456 = vmatmul.f32.gmra.mxu0 %v3432
      %v3457 = vpop.f32.mrf.mxu0
      %v3458 = vadd.f32 0.0, %v3457
      %3459 = vdwg.mxu0
      %s3460 = scalar_lea.vmem %s6, 64
      %v3461 = vld [vmem:[%s3460] sm:$0xff]
      %v3462 = vld [vmem:[%s3460 + $0x8] sm:$0xff]
      %v3463 = vld [vmem:[%s3460 + $0x10] sm:$0xff]
      %v3464 = vld [vmem:[%s3460 + $0x18] sm:$0xff]
      %v3466 = vsel %vm865, %v3359, 0
      %v3469 = vsel %vm865, %v3362, 0
      %3471 = vmatpush.msra.mxu0 0.0
      %3472 = vmatpush.msra.mxu0 0.0
      %3473 = vmatpush.msra.mxu0 0.0
      %3474 = vmatpush.msra.mxu0 0.0
      %3475 = vmatpush.msra.mxu0 0.0
      %3476 = vmatpush.msra.mxu0 0.0
      %3477 = vmatpush.msra.mxu0 0.0
      %3478 = vmatpush.msra.mxu0 0.0
      %3479 = vmatpush.msra.mxu0 0.0
      %3480 = vmatpush.msra.mxu0 0.0
      %3481 = vmatpush.msra.mxu0 0.0
      %3482 = vmatpush.msra.mxu0 0.0
      %3483 = vmatpush.msra.mxu0 0.0
      %3484 = vmatpush.msra.mxu0 0.0
      %3485 = vmatpush.msra.mxu0 0.0
      %3486 = vmatpush.msra.mxu0 %v3461
      %3487 = vmatmul.f32.gmra.mxu0 %v3466
      %v3488 = vpop.f32.mrf.mxu0
      %v3489 = vadd.f32 0.0, %v3488
      %3490 = vmatmul.f32.gmra.mxu0 %v3469
      %v3491 = vpop.f32.mrf.mxu0
      %v3492 = vadd.f32 0.0, %v3491
      %3493 = vdwg.mxu0
      %v3495 = vsel %vm865, %v3391, 0
      %v3498 = vsel %vm865, %v3394, 0
      %3500 = vmatpush.msra.mxu0 0.0
      %3501 = vmatpush.msra.mxu0 0.0
      %3502 = vmatpush.msra.mxu0 0.0
      %3503 = vmatpush.msra.mxu0 0.0
      %3504 = vmatpush.msra.mxu0 0.0
      %3505 = vmatpush.msra.mxu0 0.0
      %3506 = vmatpush.msra.mxu0 0.0
      %3507 = vmatpush.msra.mxu0 0.0
      %3508 = vmatpush.msra.mxu0 0.0
      %3509 = vmatpush.msra.mxu0 0.0
      %3510 = vmatpush.msra.mxu0 0.0
      %3511 = vmatpush.msra.mxu0 0.0
      %3512 = vmatpush.msra.mxu0 0.0
      %3513 = vmatpush.msra.mxu0 0.0
      %3514 = vmatpush.msra.mxu0 0.0
      %3515 = vmatpush.msra.mxu0 %v3462
      %3516 = vmatmul.f32.gmra.mxu0 %v3495
      %v3517 = vpop.f32.mrf.mxu0
      %v3518 = vadd.f32 0.0, %v3517
      %3519 = vmatmul.f32.gmra.mxu0 %v3498
      %v3520 = vpop.f32.mrf.mxu0
      %v3521 = vadd.f32 0.0, %v3520
      %3522 = vdwg.mxu0
      %v3524 = vsel %vm865, %v3423, 0
      %v3527 = vsel %vm865, %v3426, 0
      %3529 = vmatpush.msra.mxu0 0.0
      %3530 = vmatpush.msra.mxu0 0.0
      %3531 = vmatpush.msra.mxu0 0.0
      %3532 = vmatpush.msra.mxu0 0.0
      %3533 = vmatpush.msra.mxu0 0.0
      %3534 = vmatpush.msra.mxu0 0.0
      %3535 = vmatpush.msra.mxu0 0.0
      %3536 = vmatpush.msra.mxu0 0.0
      %3537 = vmatpush.msra.mxu0 0.0
      %3538 = vmatpush.msra.mxu0 0.0
      %3539 = vmatpush.msra.mxu0 0.0
      %3540 = vmatpush.msra.mxu0 0.0
      %3541 = vmatpush.msra.mxu0 0.0
      %3542 = vmatpush.msra.mxu0 0.0
      %3543 = vmatpush.msra.mxu0 0.0
      %3544 = vmatpush.msra.mxu0 %v3463
      %3545 = vmatmul.f32.gmra.mxu0 %v3524
      %v3546 = vpop.f32.mrf.mxu0
      %v3547 = vadd.f32 0.0, %v3546
      %3548 = vmatmul.f32.gmra.mxu0 %v3527
      %v3549 = vpop.f32.mrf.mxu0
      %v3550 = vadd.f32 0.0, %v3549
      %3551 = vdwg.mxu0
      %v3553 = vsel %vm865, %v3455, 0
      %v3556 = vsel %vm865, %v3458, 0
      %3558 = vmatpush.msra.mxu0 0.0
      %3559 = vmatpush.msra.mxu0 0.0
      %3560 = vmatpush.msra.mxu0 0.0
      %3561 = vmatpush.msra.mxu0 0.0
      %3562 = vmatpush.msra.mxu0 0.0
      %3563 = vmatpush.msra.mxu0 0.0
      %3564 = vmatpush.msra.mxu0 0.0
      %3565 = vmatpush.msra.mxu0 0.0
      %3566 = vmatpush.msra.mxu0 0.0
      %3567 = vmatpush.msra.mxu0 0.0
      %3568 = vmatpush.msra.mxu0 0.0
      %3569 = vmatpush.msra.mxu0 0.0
      %3570 = vmatpush.msra.mxu0 0.0
      %3571 = vmatpush.msra.mxu0 0.0
      %3572 = vmatpush.msra.mxu0 0.0
      %3573 = vmatpush.msra.mxu0 %v3464
      %3574 = vmatmul.f32.gmra.mxu0 %v3553
      %v3575 = vpop.f32.mrf.mxu0
      %v3576 = vadd.f32 0.0, %v3575
      %3577 = vmatmul.f32.gmra.mxu0 %v3556
      %v3578 = vpop.f32.mrf.mxu0
      %v3579 = vadd.f32 0.0, %v3578
      %3580 = vdwg.mxu0
      %v3581 = vsel %vm472, %v3489, 0.0
      %v3582 = vsel %vm472, %v3518, 0.0
      %v3583 = vadd.f32 %v3581, %v3582
      %v3584 = vsel %vm472, %v3547, 0.0
      %v3585 = vadd.f32 %v3583, %v3584
      %v3586 = vsel %vm472, %v3576, 0.0
      %v3587 = vadd.f32 %v3585, %v3586
      %v3588 = vsel %vm476, %v3492, 0.0
      %v3589 = vsel %vm476, %v3521, 0.0
      %v3590 = vadd.f32 %v3588, %v3589
      %v3591 = vsel %vm476, %v3550, 0.0
      %v3592 = vadd.f32 %v3590, %v3591
      %v3593 = vsel %vm476, %v3579, 0.0
      %v3594 = vadd.f32 %v3592, %v3593
      %s3595 = scalar_lea.vmem %s7, 2
      %v3596 = vld [vmem:[%s3595] sm:$0x1]
      %v3598 = vperm.slane %v3596, 0
      %v3600 = vadd.f32 %v3587, %v3598
      %v3601 = vadd.f32 %v3594, %v3598
      %v3602 = vadd.f32 %v3600, %v2711
      %v3603 = vadd.f32 %v3601, %v2712
      %s3604 = scalar_lea.vmem %s8, 2
      %v3605 = vld [vmem:[%s3604] sm:$0x1]
      %s3606 = scalar_lea.vmem %s9, 2
      %v3607 = vld [vmem:[%s3606] sm:$0x1]
      %v3608 = vsel %vm472, %v3602, 0.0
      %3609 = vadd.xlane.f32.xlu0 %v3608
      %v3610 = vpop.xlane.xlu0 %3609
      %v3611 = vsel %vm476, %v3603, 0.0
      %3612 = vadd.xlane.f32.xlu0 %v3611
      %v3613 = vpop.xlane.xlu0 %3612
      %v3614 = vmul.f32 %v3610, %v486
      %v3615 = vmul.f32 %v3613, %v486
      %v3616 = vsub.f32 %v3602, %v3614
      %v3617 = vsub.f32 %v3603, %v3615
      %v3618 = vmul.f32 %v3616, %v3616
      %v3619 = vmul.f32 %v3617, %v3617
      %v3620 = vsel %vm472, %v3618, 0.0
      %3621 = vadd.xlane.f32.xlu0 %v3620
      %v3622 = vpop.xlane.xlu0 %3621
      %v3623 = vsel %vm476, %v3619, 0.0
      %3624 = vadd.xlane.f32.xlu0 %v3623
      %v3625 = vpop.xlane.xlu0 %3624
      %v3626 = vmul.f32 %v3622, %v486
      %v3627 = vmul.f32 %v3625, %v486
      %v3628 = vadd.f32 %v3626, 1e-05
      %v3629 = vadd.f32 %v3627, 1e-05
      %v3630 = vrsqrt.pop %v3628
      %v3631 = vmul.f32 %v3630, %v3628
      %v3632 = vmul.f32 %v3631, %v3630
      %v3633 = vmul.f32 0.5, %v3632
      %v3634 = vsub.f32 1.5, %v3633
      %v3635 = vmul.f32 %v3630, %v3634
      %vm3636 = vweird.f32 %v3628
      %vm3637 = vweird.f32 %v3630
      %vm3638 = vmor %vm3636, %vm3637
      %v3639 = vsel %vm3638, %v3630, %v3635
      %v3640 = vrsqrt.pop %v3629
      %v3641 = vmul.f32 %v3640, %v3629
      %v3642 = vmul.f32 %v3641, %v3640
      %v3643 = vmul.f32 0.5, %v3642
      %v3644 = vsub.f32 1.5, %v3643
      %v3645 = vmul.f32 %v3640, %v3644
      %vm3646 = vweird.f32 %v3629
      %vm3647 = vweird.f32 %v3640
      %vm3648 = vmor %vm3646, %vm3647
      %v3649 = vsel %vm3648, %v3640, %v3645
      %v3650 = vmul.f32 %v3616, %v3639
      %v3651 = vmul.f32 %v3617, %v3649
      %v3653 = vperm.slane %v3605, 0
      %v3655 = vmul.f32 %v3650, %v3653
      %v3656 = vmul.f32 %v3651, %v3653
      %v3658 = vperm.slane %v3607, 0
      %v3660 = vadd.f32 %v3655, %v3658
      %v3661 = vadd.f32 %v3656, %v3658
      %s3662 = scalar_lea.vmem %s10, 64
      %v3663 = vld [vmem:[%s3662] sm:$0xff]
      %v3664 = vld [vmem:[%s3662 + $0x8] sm:$0xff]
      %v3665 = vld [vmem:[%s3662 + $0x10] sm:$0xff]
      %v3666 = vld [vmem:[%s3662 + $0x18] sm:$0xff]
      %s3667 = scalar_lea.vmem %s11, 2
      %v3668 = vld [vmem:[%s3667] sm:$0x1]
      %v3670 = vperm.slane %v3668, 0
      %v3673 = vsel %vm472, %v3660, 0
      %v3676 = vsel %vm472, %v3661, 0
      %3678 = vmatpush.msra.mxu0 0.0
      %3679 = vmatpush.msra.mxu0 0.0
      %3680 = vmatpush.msra.mxu0 0.0
      %3681 = vmatpush.msra.mxu0 0.0
      %3682 = vmatpush.msra.mxu0 0.0
      %3683 = vmatpush.msra.mxu0 0.0
      %3684 = vmatpush.msra.mxu0 0.0
      %3685 = vmatpush.msra.mxu0 0.0
      %3686 = vmatpush.msra.mxu0 0.0
      %3687 = vmatpush.msra.mxu0 0.0
      %3688 = vmatpush.msra.mxu0 0.0
      %3689 = vmatpush.msra.mxu0 0.0
      %3690 = vmatpush.msra.mxu0 %v3666
      %3691 = vmatpush.msra.mxu0 %v3665
      %3692 = vmatpush.msra.mxu0 %v3664
      %3693 = vmatpush.msra.mxu0 %v3663
      %3694 = vmatmul.f32.gmra.mxu0 %v3673
      %v3695 = vpop.f32.mrf.mxu0
      %v3696 = vadd.f32 %v3670, %v3695
      %3697 = vmatmul.f32.gmra.mxu0 %v3676
      %v3698 = vpop.f32.mrf.mxu0
      %v3699 = vadd.f32 %v3670, %v3698
      %3700 = vdwg.mxu0
      %v3701 = vmul.f32 %v3696, 0.5
      %v3702 = vmul.f32 %v3699, 0.5
      %v3703 = vmul.f32 %v3696, 0.70710677
      %v3704 = vmul.f32 %v3699, 0.70710677
      %v3705 = vmul.f32 %v3703, %v3703
      %v3706 = vmin.f32 16.0, %v3705
      %v3707 = vmul.f32 %v3706, 2.1237322e-06
      %v3708 = vadd.f32 %v3707, 0.00028619796
      %v3709 = vmul.f32 %v3706, %v3708
      %v3710 = vadd.f32 %v3709, 0.0036580483
      %v3711 = vmul.f32 %v3706, %v3710
      %v3712 = vadd.f32 %v3711, 0.05243302
      %v3713 = vmul.f32 %v3706, %v3712
      %v3714 = vadd.f32 %v3713, 0.18741608
      %v3715 = vmul.f32 %v3706, %v3714
      %v3716 = vadd.f32 %v3715, 1.1283791
      %v3717 = vmul.f32 %v3703, %v3716
      %v3718 = vmul.f32 %v3706, 3.8918573e-05
      %v3719 = vadd.f32 %v3718, 0.001143296
      %v3720 = vmul.f32 %v3706, %v3719
      %v3721 = vadd.f32 %v3720, 0.014752088
      %v3722 = vmul.f32 %v3706, %v3721
      %v3723 = vadd.f32 %v3722, 0.112945676
      %v3724 = vmul.f32 %v3706, %v3723
      %v3725 = vadd.f32 %v3724, 0.4994258
      %v3726 = vmul.f32 %v3706, %v3725
      %v3727 = vadd.f32 %v3726, 1.0
      %v3728 = vrcp.pop %v3727
      %v3729 = vmul.f32 %v3727, %v3728
      %v3730 = vsub.f32 1.0, %v3729
      %v3731 = vmul.f32 %v3728, %v3730
      %v3732 = vadd.f32 %v3728, %v3731
      %vm3733 = vweird.f32 %v3727
      %vm3734 = vweird.f32 %v3728
      %vm3735 = vmor %vm3733, %vm3734
      %v3736 = vsel %vm3735, %v3728, %v3732
      %v3737 = vand.u32 2147483647, %v3727
      %vm3738 = vcmp.eq.f32.partialorder %v3737, 8.507059e+37
      %v3739 = vand.u32 %v3727, 2147483648
      %v3740 = vor.u32 1.1754944e-38, %v3739
      %v3741 = vsel %vm3738, %v3740, %v3736
      %v3742 = vmul.f32 %v3717, %v3741
      %v3743 = vmin.f32 %v3742, 1.0
      %v3744 = vmax.f32 %v3743, -1.0
      %v3745 = vmul.f32 %v3704, %v3704
      %v3746 = vmin.f32 16.0, %v3745
      %v3747 = vmul.f32 %v3746, 2.1237322e-06
      %v3748 = vadd.f32 %v3747, 0.00028619796
      %v3749 = vmul.f32 %v3746, %v3748
      %v3750 = vadd.f32 %v3749, 0.0036580483
      %v3751 = vmul.f32 %v3746, %v3750
      %v3752 = vadd.f32 %v3751, 0.05243302
      %v3753 = vmul.f32 %v3746, %v3752
      %v3754 = vadd.f32 %v3753, 0.18741608
      %v3755 = vmul.f32 %v3746, %v3754
      %v3756 = vadd.f32 %v3755, 1.1283791
      %v3757 = vmul.f32 %v3704, %v3756
      %v3758 = vmul.f32 %v3746, 3.8918573e-05
      %v3759 = vadd.f32 %v3758, 0.001143296
      %v3760 = vmul.f32 %v3746, %v3759
      %v3761 = vadd.f32 %v3760, 0.014752088
      %v3762 = vmul.f32 %v3746, %v3761
      %v3763 = vadd.f32 %v3762, 0.112945676
      %v3764 = vmul.f32 %v3746, %v3763
      %v3765 = vadd.f32 %v3764, 0.4994258
      %v3766 = vmul.f32 %v3746, %v3765
      %v3767 = vadd.f32 %v3766, 1.0
      %v3768 = vrcp.pop %v3767
      %v3769 = vmul.f32 %v3767, %v3768
      %v3770 = vsub.f32 1.0, %v3769
      %v3771 = vmul.f32 %v3768, %v3770
      %v3772 = vadd.f32 %v3768, %v3771
      %vm3773 = vweird.f32 %v3767
      %vm3774 = vweird.f32 %v3768
      %vm3775 = vmor %vm3773, %vm3774
      %v3776 = vsel %vm3775, %v3768, %v3772
      %v3777 = vand.u32 2147483647, %v3767
      %vm3778 = vcmp.eq.f32.partialorder %v3777, 8.507059e+37
      %v3779 = vand.u32 %v3767, 2147483648
      %v3780 = vor.u32 1.1754944e-38, %v3779
      %v3781 = vsel %vm3778, %v3780, %v3776
      %v3782 = vmul.f32 %v3757, %v3781
      %v3783 = vmin.f32 %v3782, 1.0
      %v3784 = vmax.f32 %v3783, -1.0
      %v3785 = vadd.f32 %v3744, 1.0
      %v3786 = vadd.f32 %v3784, 1.0
      %v3787 = vmul.f32 %v3701, %v3785
      %v3788 = vmul.f32 %v3702, %v3786
      %s3789 = scalar_lea.vmem %s12, 128
      %v3790 = vld [vmem:[%s3789] sm:$0xff]
      %v3791 = vld [vmem:[%s3789 + $0x8] sm:$0xff]
      %v3792 = vld [vmem:[%s3789 + $0x10] sm:$0xff]
      %v3793 = vld [vmem:[%s3789 + $0x18] sm:$0xff]
      %v3794 = vld [vmem:[%s3789 + $0x20] sm:$0xff]
      %v3795 = vld [vmem:[%s3789 + $0x28] sm:$0xff]
      %v3796 = vld [vmem:[%s3789 + $0x30] sm:$0xff]
      %v3797 = vld [vmem:[%s3789 + $0x38] sm:$0xff]
      %s3798 = scalar_lea.vmem %s13, 2
      %v3799 = vld [vmem:[%s3798] sm:$0x1]
      %v3801 = vperm.slane %v3799, 0
      %v3804 = vsel %vm1560, %v3787, 0
      %v3807 = vsel %vm1560, %v3788, 0
      %3809 = vmatpush.msra.mxu0 0.0
      %3810 = vmatpush.msra.mxu0 0.0
      %3811 = vmatpush.msra.mxu0 0.0
      %3812 = vmatpush.msra.mxu0 0.0
      %3813 = vmatpush.msra.mxu0 0.0
      %3814 = vmatpush.msra.mxu0 0.0
      %3815 = vmatpush.msra.mxu0 0.0
      %3816 = vmatpush.msra.mxu0 0.0
      %3817 = vmatpush.msra.mxu0 %v3797
      %3818 = vmatpush.msra.mxu0 %v3796
      %3819 = vmatpush.msra.mxu0 %v3795
      %3820 = vmatpush.msra.mxu0 %v3794
      %3821 = vmatpush.msra.mxu0 %v3793
      %3822 = vmatpush.msra.mxu0 %v3792
      %3823 = vmatpush.msra.mxu0 %v3791
      %3824 = vmatpush.msra.mxu0 %v3790
      %3825 = vmatmul.f32.gmra.mxu0 %v3804
      %v3826 = vpop.f32.mrf.mxu0
      %v3827 = vadd.f32 %v3801, %v3826
      %3828 = vmatmul.f32.gmra.mxu0 %v3807
      %v3829 = vpop.f32.mrf.mxu0
      %v3830 = vadd.f32 %v3801, %v3829
      %3831 = vdwg.mxu0
      %v3832 = vadd.f32 %v3827, %v3602
      %v3833 = vadd.f32 %v3830, %v3603
      %3834 = vst.msk [vmem:[%s467] sm:$0xff] %vm472, %v3832
      %3835 = vst.msk [vmem:[%s467 + $0x8] sm:$0x1] %vm476, %v3833
      %p3836 = scmp.lt.s32.totalorder %s25, 1
      %s3837 = scalar_select %p3836, %s25, 1
      %s3838 = smul.addr %s3837, 2
      %s3839 = smul.addr %s3838, 8
      %s3840 = scalar_lea.vmem %s14, %s3839
      // Predicated region
      $region77: #{tpu_custom_call.1} parent=75 // pred_check
        %p3841 = pneg %p342
      $region78: #{tpu_custom_call.1} parent=75 // pred_check_branch
        %3843 = sbr.rel (%p3841) target = $region80
      $region79: #{tpu_custom_call.1} parent=75 // pred_region
        _
      $region80: #{tpu_custom_call.1} parent=75 // pred_fallthru
        _
    $region76: #{tpu_custom_call.1} parent=5 // pred_fallthru
      _
    %p3844 = scmp.le.s32.totalorder 2, %s20
    // Predicated region
    $region81: #{tpu_custom_call.1} parent=5 // pred_check
      %p3845 = pneg %p3844
    $region82: #{tpu_custom_call.1} parent=5 // pred_check_branch
      %3847 = sbr.rel (%p3845) target = $region84
    $region83: #{tpu_custom_call.1} parent=5 // pred_region
      %s3848 = ssub.s32 %s20, 2
      // Predicated region
      $region85: #{tpu_custom_call.1} parent=83 // pred_check
        %p3849 = pneg %p348
      $region86: #{tpu_custom_call.1} parent=83 // pred_check_branch
        %3851 = sbr.rel (%p3849) target = $region88
      $region87: #{tpu_custom_call.1} parent=83 // pred_region
        %p3852 = scmp.lt.s32.totalorder %s26, 1
        %s3853 = scalar_select %p3852, %s26, 1
        %s3854 = smul.addr %s3853, 2
        %s3855 = smul.addr %s3854, 8
        %s3856 = scalar_lea.vmem %s14, %s3855
      $region88: #{tpu_custom_call.1} parent=83 // pred_fallthru
        _
    $region84: #{tpu_custom_call.1} parent=5 // pred_fallthru
      _
  $region6: #{tpu_custom_call.1} parent=0 // loop_footer
    %s24 = sadd.s32 1, %s20
  $region7: #{tpu_custom_call.1} parent=0 // loop_footer_branch
    %19 = sbr.rel target = $region3
  $region8: #{tpu_custom_call.1} parent=0 // loop_exit
    _

</llo_original>
